<compile_context>
chip_gen: v6e
topology: v6e:2x2x1
jax: 0.10.0
libtpu: 0.0.40
codegen_flags: <defaults>
</compile_context>

<pallas_src>
import jax
import jax.numpy as jnp
from jax import lax
from jax.experimental import pallas as pl
from jax.experimental.pallas import tpu as pltpu


# ----------------------------------------------------------------------------
# Fused kernel: spatial conv -> encoder conv (stride 2) -> BatchNorm -> LeakyReLU
# grid axis 0 = output-channel half (2 steps of 4 channels), marked "parallel".
# Stage 1 (channel independent) is recomputed per step; it is ~50 vector FMAs, so
# duplication is cheaper than cross-step/cross-core communication.
# ----------------------------------------------------------------------------
def _fused_kernel(w1_ref, w2_ref, gamma_ref, beta_ref, x_ref,
                  o_ref, xpad_ref, spad_ref):
    # w1_ref:    (T*9,)  f32 SMEM  -- flattened (1, T, 3, 3) spatial-filter weight
    # w2_ref:    (8*9,)  f32 SMEM  -- flattened (8, 1, 3, 3) encoder weight
    # gamma/beta:(8,)    f32 SMEM
    # x_ref:     (B, T, H, W)      VMEM (full block, same block for every step)
    # o_ref:     (B, 4, H, W)      VMEM output block (this step's 4 channels,
    #                              full-width stride-1 grid; wrapper subsamples)
    # xpad_ref:  (B, T, H+2, W+2)  VMEM scratch (halo-padded input)
    # spad_ref:  (B, H+2, W+2)     VMEM scratch (halo-padded space_conv)
    B, OCB, H, W = o_ref.shape
    T = x_ref.shape[1]
    K = 3                      # module fixes kernel_size = 3
    Wp = W + 2

    # ---- halo padding built in VMEM (replaces wrapper-side jnp.pad of x) ----
    xpad_ref[...] = jnp.zeros((B, T, H + 2, W + 2), jnp.float32)
    xpad_ref[:, :, 1:H + 1, 1:W + 1] = x_ref[...]

    # ---- stage 1: Conv2d(T, 1, 3, padding=1, bias=False) ----------------------
    # Factor the kj (lane) shift out of the (c, ki) accumulation: T*3 full-width
    # row loads + T*9 scalar*vector FMAs, then only 3 unit-stride lane slices.
    acc_w = [jnp.zeros((B, H, Wp), jnp.float32) for _ in range(K)]
    for c in range(T):
        for ki in range(K):
            rows = xpad_ref[:, c, ki:ki + H, :]                 # (B, H, W+2)
            for kj in range(K):
                w = w1_ref[(c * K + ki) * K + kj]
                acc_w[kj] = acc_w[kj] + w * rows
    space = (acc_w[0][:, :, 0:W]
             + acc_w[1][:, :, 1:W + 1]
             + acc_w[2][:, :, 2:W + 2])                         # (B, H, W)

    # ---- keep space_conv entirely in VMEM: padded copy for stage 2 ------------
    spad_ref[...] = jnp.zeros((B, H + 2, W + 2), jnp.float32)
    spad_ref[:, 1:H + 1, 1:W + 1] = space

    # Hoist the 3 shared row windows (channel independent, ~4 vregs live).
    srows = [spad_ref[:, ki:ki + H, :] for ki in range(K)]      # 3 x (B, H, W+2)

    # (even row, even col) mask: the stride-2 conv equals the stride-1 conv
    # sampled at these sites, so BN statistics must only see them.
    ri = lax.broadcasted_iota(jnp.int32, (B, H, W), 1)
    ci = lax.broadcasted_iota(jnp.int32, (B, H, W), 2)
    maskf = jnp.where((ri % 2 == 0) & (ci % 2 == 0), 1.0, 0.0).astype(jnp.float32)
    inv_n = 1.0 / float(B * (H // 2) * (W // 2))

    # ---- stage 2: Conv2d(1, 8, 3, stride=2, padding=1) + BN + LeakyReLU -------
    oc0 = pl.program_id(0) * OCB
    for u in range(OCB):
        oc = oc0 + u                                            # global channel id
        acc2 = [jnp.zeros((B, H, Wp), jnp.float32) for _ in range(K)]
        for ki in range(K):
            for kj in range(K):
                w = w2_ref[(oc * K + ki) * K + kj]
                acc2[kj] = acc2[kj] + w * srows[ki]
        # full-width stride-1 conv for this channel; stride-2 result lives at the
        # (even, even) sites.
        v = (acc2[0][:, :, 0:W]
             + acc2[1][:, :, 1:W + 1]
             + acc2[2][:, :, 2:W + 2])                          # (B, H, W)

        # BatchNorm2d, training mode: biased variance over the B*Ho*Wo stride-2
        # sites (whole batch resident -> exact statistics), eps = 1e-5.
        mean = jnp.sum(v * maskf, axis=(0, 1, 2), keepdims=True) * inv_n
        cen = v - mean
        var = jnp.sum(cen * cen * maskf, axis=(0, 1, 2), keepdims=True) * inv_n
        y = gamma_ref[oc] * (cen * lax.rsqrt(var + 1e-5)) + beta_ref[oc]
        y = jnp.where(y >= 0, y, 0.1 * y)                       # LeakyReLU(0.1)
        o_ref[:, u, :, :] = y.astype(o_ref.dtype)


# ----------------------------------------------------------------------------
# Wrapper: single pallas_call + one tiny epilogue slice (stride-2 subsample).
# ----------------------------------------------------------------------------
def tempro_spacial_forward(x, params):
    b, t, H, W = x.shape
    assert H % 2 == 0 and W % 2 == 0
    w1 = params["filter_w"].astype(jnp.float32).reshape(-1)     # (t*9,)
    w2 = params["enc_w"].astype(jnp.float32).reshape(-1)        # (8*9,)
    gamma = params["bn_gamma"].astype(jnp.float32)              # (8,)
    beta = params["bn_beta"].astype(jnp.float32)                # (8,)
    oc_total = params["enc_w"].shape[0]
    assert oc_total % 2 == 0
    oc_blk = oc_total // 2      # 2 "parallel" grid steps -> both v7x TCs get work

    out_full = pl.pallas_call(
        _fused_kernel,
        out_shape=jax.ShapeDtypeStruct((b, oc_total, H, W), jnp.float32),
        grid=(oc_total // oc_blk,),
        in_specs=[
            pl.BlockSpec(memory_space=pltpu.MemorySpace.SMEM),   # w1 (flat)
            pl.BlockSpec(memory_space=pltpu.MemorySpace.SMEM),   # w2 (flat)
            pl.BlockSpec(memory_space=pltpu.MemorySpace.SMEM),   # gamma
            pl.BlockSpec(memory_space=pltpu.MemorySpace.SMEM),   # beta
            pl.BlockSpec((b, t, H, W), lambda g: (0, 0, 0, 0)),  # same block both steps
        ],
        out_specs=pl.BlockSpec((b, oc_blk, H, W), lambda g: (0, g, 0, 0)),
        scratch_shapes=[
            pltpu.VMEM((b, t, H + 2, W + 2), jnp.float32),       # halo-padded x
            pltpu.VMEM((b, H + 2, W + 2), jnp.float32),          # halo-padded space
        ],
        compiler_params=pltpu.CompilerParams(dimension_semantics=("parallel",)),
    )(w1, w2, gamma, beta, x)

    # Epilogue: stride-2 subsample of the full-width stride-1 grid (32 KiB -> 8 KiB).
    # This is the only wrapper-side layout op; output is already NCHW.
    return out_full[:, :, ::2, ::2]


# ----------------------------------------------------------------------------
# Pure-JAX reference (for correctness check)
# ----------------------------------------------------------------------------
def reference_forward(x, params):
    dn = ("NCHW", "OIHW", "NCHW")
    space = lax.conv_general_dilated(x, params["filter_w"], (1, 1),
                                     [(1, 1), (1, 1)], dimension_numbers=dn)
    conv2 = lax.conv_general_dilated(space, params["enc_w"], (2, 2),
                                     [(1, 1), (1, 1)], dimension_numbers=dn)
    mean = jnp.mean(conv2, axis=(0, 2, 3), keepdims=True)
    var = jnp.var(conv2, axis=(0, 2, 3), keepdims=True)
    xhat = (conv2 - mean) / jnp.sqrt(var + 1e-5)
    y = (params["bn_gamma"][None, :, None, None] * xhat
         + params["bn_beta"][None, :, None, None])
    return jnp.where(y >= 0, y, 0.1 * y)


if __name__ == "__main__":
    key = jax.random.PRNGKey(0)
    b, time_range, H, W = 2, 4, 16, 16
    k = 3
    kx, k1, k2, kg, kb = jax.random.split(key, 5)

    x = jax.random.normal(kx, (b, time_range, H, W), jnp.float32)

    # Deterministic synthetic parameter init (shapes from __init__):
    #   filter:          Conv2d(time_range, 1, k, padding=1, bias=False) -> (1, t, k, k)
    #   encoder.conv1:   Conv2d(1, 8, k, stride=2, padding=1)            -> (8, 1, k, k)
    #   BatchNorm2d(8):  gamma/beta -> (8,)
    fan1 = time_range * k * k
    fan2 = 1 * k * k
    w1 = jax.random.uniform(k1, (1, time_range, k, k), jnp.float32, -1.0, 1.0) / jnp.sqrt(fan1)
    w2 = jax.random.uniform(k2, (8, 1, k, k), jnp.float32, -1.0, 1.0) / jnp.sqrt(fan2)
    gamma = 1.0 + 0.1 * jax.random.normal(kg, (8,), jnp.float32)
    beta = 0.1 * jax.random.normal(kb, (8,), jnp.float32)
    params = dict(filter_w=w1, enc_w=w2, bn_gamma=gamma, bn_beta=beta)

    fwd = jax.jit(tempro_spacial_forward)
    out = fwd(x, params)
    out = jax.block_until_ready(out)
    assert out.shape == (b, 8, H // 2, W // 2), out.shape

    ref = reference_forward(x, params)
    err = jnp.max(jnp.abs(out - ref))
    if not bool(jnp.allclose(out, ref, atol=1e-4, rtol=1e-4)):
        raise AssertionError(f"kernel/reference mismatch, max abs err = {err}")

    print("KERNEL_OK")
</pallas_src>

<mosaic_0001>
module attributes {stable_mosaic.version = 11 : i64} {
  func.func @_fused_kernel(%arg0: i32, %arg1: memref<36xf32, #tpu.memory_space<smem>>, %arg2: memref<72xf32, #tpu.memory_space<smem>>, %arg3: memref<8xf32, #tpu.memory_space<smem>>, %arg4: memref<8xf32, #tpu.memory_space<smem>>, %arg5: memref<2x4x16x16xf32, #tpu.memory_space<vmem>>, %arg6: memref<2x4x16x16xf32, #tpu.memory_space<vmem>>, %arg7: memref<2x4x18x18xf32, #tpu.memory_space<vmem>>, %arg8: memref<2x18x18xf32, #tpu.memory_space<vmem>>) attributes {dimension_semantics = [#tpu.dimension_semantics<parallel>], iteration_bounds = array<i64: 2>, scalar_prefetch = 0 : i64, scratch_operands = 2 : i64, tpu.core_type = #tpu.core_type<tc>, window_params = [{transform_indices = @transform_0, window_bounds = array<i64: 36>}, {transform_indices = @transform_1, window_bounds = array<i64: 72>}, {transform_indices = @transform_2, window_bounds = array<i64: 8>}, {transform_indices = @transform_3, window_bounds = array<i64: 8>}, {pipeline_mode = #tpu.pipeline_mode<synchronous>, transform_indices = @transform_4, window_bounds = array<i64: 2, 4, 16, 16>}, {transform_indices = @transform_5, window_bounds = array<i64: 2, 4, 16, 16>}]} {
    %cst = arith.constant 0.000000e+00 : f32
    %0 = vector.broadcast %cst : f32 to vector<2x4x18x18xf32>
    %c0 = arith.constant 0 : index
    %c0_0 = arith.constant 0 : index
    %c0_1 = arith.constant 0 : index
    %c0_2 = arith.constant 0 : index
    %1 = vector.load %arg7[%c0, %c0_0, %c0_1, %c0_2] : memref<2x4x18x18xf32, #tpu.memory_space<vmem>>, vector<2x4x18x18xf32>
    tpu.vector_store %arg7[%c0, %c0_0, %c0_1, %c0_2], %0 {strides = array<i32>} : memref<2x4x18x18xf32, #tpu.memory_space<vmem>>, vector<2x4x18x18xf32>,
    %c0_3 = arith.constant 0 : index
    %c0_4 = arith.constant 0 : index
    %c0_5 = arith.constant 0 : index
    %c0_6 = arith.constant 0 : index
    %2 = vector.load %arg5[%c0_3, %c0_4, %c0_5, %c0_6] : memref<2x4x16x16xf32, #tpu.memory_space<vmem>>, vector<2x4x16x16xf32>
    %c0_7 = arith.constant 0 : index
    %c0_8 = arith.constant 0 : index
    %c1 = arith.constant 1 : index
    %c1_9 = arith.constant 1 : index
    %3 = vector.load %arg7[%c0_7, %c0_8, %c1, %c1_9] : memref<2x4x18x18xf32, #tpu.memory_space<vmem>>, vector<2x4x16x16xf32>
    tpu.vector_store %arg7[%c0_7, %c0_8, %c1, %c1_9], %2 {strides = array<i32>} : memref<2x4x18x18xf32, #tpu.memory_space<vmem>>, vector<2x4x16x16xf32>,
    %cst_10 = arith.constant 0.000000e+00 : f32
    %4 = vector.broadcast %cst_10 : f32 to vector<2x16x18xf32>
    %cst_11 = arith.constant 0.000000e+00 : f32
    %5 = vector.broadcast %cst_11 : f32 to vector<2x16x18xf32>
    %cst_12 = arith.constant 0.000000e+00 : f32
    %6 = vector.broadcast %cst_12 : f32 to vector<2x16x18xf32>
    %c0_13 = arith.constant 0 : index
    %c0_14 = arith.constant 0 : index
    %c0_15 = arith.constant 0 : index
    %c0_16 = arith.constant 0 : index
    %7 = vector.load %arg7[%c0_13, %c0_14, %c0_15, %c0_16] : memref<2x4x18x18xf32, #tpu.memory_space<vmem>>, vector<2x1x16x18xf32>
    %8 = vector.shape_cast %7 : vector<2x1x16x18xf32> to vector<2x16x18xf32>
    %c0_17 = arith.constant 0 : index
    %9 = memref.load %arg1[%c0_17] : memref<36xf32, #tpu.memory_space<smem>>
    %10 = vector.broadcast %9 : f32 to vector<2x16x18xf32>
    %11 = arith.mulf %10, %8 : vector<2x16x18xf32>
    %12 = arith.addf %4, %11 : vector<2x16x18xf32>
    %c1_18 = arith.constant 1 : index
    %13 = memref.load %arg1[%c1_18] : memref<36xf32, #tpu.memory_space<smem>>
    %14 = vector.broadcast %13 : f32 to vector<2x16x18xf32>
    %15 = arith.mulf %14, %8 : vector<2x16x18xf32>
    %16 = arith.addf %5, %15 : vector<2x16x18xf32>
    %c2 = arith.constant 2 : index
    %17 = memref.load %arg1[%c2] : memref<36xf32, #tpu.memory_space<smem>>
    %18 = vector.broadcast %17 : f32 to vector<2x16x18xf32>
    %19 = arith.mulf %18, %8 : vector<2x16x18xf32>
    %20 = arith.addf %6, %19 : vector<2x16x18xf32>
    %c0_19 = arith.constant 0 : index
    %c0_20 = arith.constant 0 : index
    %c1_21 = arith.constant 1 : index
    %c0_22 = arith.constant 0 : index
    %21 = vector.load %arg7[%c0_19, %c0_20, %c1_21, %c0_22] : memref<2x4x18x18xf32, #tpu.memory_space<vmem>>, vector<2x1x16x18xf32>
    %22 = vector.shape_cast %21 : vector<2x1x16x18xf32> to vector<2x16x18xf32>
    %c3 = arith.constant 3 : index
    %23 = memref.load %arg1[%c3] : memref<36xf32, #tpu.memory_space<smem>>
    %24 = vector.broadcast %23 : f32 to vector<2x16x18xf32>
    %25 = arith.mulf %24, %22 : vector<2x16x18xf32>
    %26 = arith.addf %12, %25 : vector<2x16x18xf32>
    %c4 = arith.constant 4 : index
    %27 = memref.load %arg1[%c4] : memref<36xf32, #tpu.memory_space<smem>>
    %28 = vector.broadcast %27 : f32 to vector<2x16x18xf32>
    %29 = arith.mulf %28, %22 : vector<2x16x18xf32>
    %30 = arith.addf %16, %29 : vector<2x16x18xf32>
    %c5 = arith.constant 5 : index
    %31 = memref.load %arg1[%c5] : memref<36xf32, #tpu.memory_space<smem>>
    %32 = vector.broadcast %31 : f32 to vector<2x16x18xf32>
    %33 = arith.mulf %32, %22 : vector<2x16x18xf32>
    %34 = arith.addf %20, %33 : vector<2x16x18xf32>
    %c0_23 = arith.constant 0 : index
    %c0_24 = arith.constant 0 : index
    %c2_25 = arith.constant 2 : index
    %c0_26 = arith.constant 0 : index
    %35 = vector.load %arg7[%c0_23, %c0_24, %c2_25, %c0_26] : memref<2x4x18x18xf32, #tpu.memory_space<vmem>>, vector<2x1x16x18xf32>
    %36 = vector.shape_cast %35 : vector<2x1x16x18xf32> to vector<2x16x18xf32>
    %c6 = arith.constant 6 : index
    %37 = memref.load %arg1[%c6] : memref<36xf32, #tpu.memory_space<smem>>
    %38 = vector.broadcast %37 : f32 to vector<2x16x18xf32>
    %39 = arith.mulf %38, %36 : vector<2x16x18xf32>
    %40 = arith.addf %26, %39 : vector<2x16x18xf32>
    %c7 = arith.constant 7 : index
    %41 = memref.load %arg1[%c7] : memref<36xf32, #tpu.memory_space<smem>>
    %42 = vector.broadcast %41 : f32 to vector<2x16x18xf32>
    %43 = arith.mulf %42, %36 : vector<2x16x18xf32>
    %44 = arith.addf %30, %43 : vector<2x16x18xf32>
    %c8 = arith.constant 8 : index
    %45 = memref.load %arg1[%c8] : memref<36xf32, #tpu.memory_space<smem>>
    %46 = vector.broadcast %45 : f32 to vector<2x16x18xf32>
    %47 = arith.mulf %46, %36 : vector<2x16x18xf32>
    %48 = arith.addf %34, %47 : vector<2x16x18xf32>
    %c0_27 = arith.constant 0 : index
    %c1_28 = arith.constant 1 : index
    %c0_29 = arith.constant 0 : index
    %c0_30 = arith.constant 0 : index
    %49 = vector.load %arg7[%c0_27, %c1_28, %c0_29, %c0_30] : memref<2x4x18x18xf32, #tpu.memory_space<vmem>>, vector<2x1x16x18xf32>
    %50 = vector.shape_cast %49 : vector<2x1x16x18xf32> to vector<2x16x18xf32>
    %c9 = arith.constant 9 : index
    %51 = memref.load %arg1[%c9] : memref<36xf32, #tpu.memory_space<smem>>
    %52 = vector.broadcast %51 : f32 to vector<2x16x18xf32>
    %53 = arith.mulf %52, %50 : vector<2x16x18xf32>
    %54 = arith.addf %40, %53 : vector<2x16x18xf32>
    %c10 = arith.constant 10 : index
    %55 = memref.load %arg1[%c10] : memref<36xf32, #tpu.memory_space<smem>>
    %56 = vector.broadcast %55 : f32 to vector<2x16x18xf32>
    %57 = arith.mulf %56, %50 : vector<2x16x18xf32>
    %58 = arith.addf %44, %57 : vector<2x16x18xf32>
    %c11 = arith.constant 11 : index
    %59 = memref.load %arg1[%c11] : memref<36xf32, #tpu.memory_space<smem>>
    %60 = vector.broadcast %59 : f32 to vector<2x16x18xf32>
    %61 = arith.mulf %60, %50 : vector<2x16x18xf32>
    %62 = arith.addf %48, %61 : vector<2x16x18xf32>
    %c0_31 = arith.constant 0 : index
    %c1_32 = arith.constant 1 : index
    %c1_33 = arith.constant 1 : index
    %c0_34 = arith.constant 0 : index
    %63 = vector.load %arg7[%c0_31, %c1_32, %c1_33, %c0_34] : memref<2x4x18x18xf32, #tpu.memory_space<vmem>>, vector<2x1x16x18xf32>
    %64 = vector.shape_cast %63 : vector<2x1x16x18xf32> to vector<2x16x18xf32>
    %c12 = arith.constant 12 : index
    %65 = memref.load %arg1[%c12] : memref<36xf32, #tpu.memory_space<smem>>
    %66 = vector.broadcast %65 : f32 to vector<2x16x18xf32>
    %67 = arith.mulf %66, %64 : vector<2x16x18xf32>
    %68 = arith.addf %54, %67 : vector<2x16x18xf32>
    %c13 = arith.constant 13 : index
    %69 = memref.load %arg1[%c13] : memref<36xf32, #tpu.memory_space<smem>>
    %70 = vector.broadcast %69 : f32 to vector<2x16x18xf32>
    %71 = arith.mulf %70, %64 : vector<2x16x18xf32>
    %72 = arith.addf %58, %71 : vector<2x16x18xf32>
    %c14 = arith.constant 14 : index
    %73 = memref.load %arg1[%c14] : memref<36xf32, #tpu.memory_space<smem>>
    %74 = vector.broadcast %73 : f32 to vector<2x16x18xf32>
    %75 = arith.mulf %74, %64 : vector<2x16x18xf32>
    %76 = arith.addf %62, %75 : vector<2x16x18xf32>
    %c0_35 = arith.constant 0 : index
    %c1_36 = arith.constant 1 : index
    %c2_37 = arith.constant 2 : index
    %c0_38 = arith.constant 0 : index
    %77 = vector.load %arg7[%c0_35, %c1_36, %c2_37, %c0_38] : memref<2x4x18x18xf32, #tpu.memory_space<vmem>>, vector<2x1x16x18xf32>
    %78 = vector.shape_cast %77 : vector<2x1x16x18xf32> to vector<2x16x18xf32>
    %c15 = arith.constant 15 : index
    %79 = memref.load %arg1[%c15] : memref<36xf32, #tpu.memory_space<smem>>
    %80 = vector.broadcast %79 : f32 to vector<2x16x18xf32>
    %81 = arith.mulf %80, %78 : vector<2x16x18xf32>
    %82 = arith.addf %68, %81 : vector<2x16x18xf32>
    %c16 = arith.constant 16 : index
    %83 = memref.load %arg1[%c16] : memref<36xf32, #tpu.memory_space<smem>>
    %84 = vector.broadcast %83 : f32 to vector<2x16x18xf32>
    %85 = arith.mulf %84, %78 : vector<2x16x18xf32>
    %86 = arith.addf %72, %85 : vector<2x16x18xf32>
    %c17 = arith.constant 17 : index
    %87 = memref.load %arg1[%c17] : memref<36xf32, #tpu.memory_space<smem>>
    %88 = vector.broadcast %87 : f32 to vector<2x16x18xf32>
    %89 = arith.mulf %88, %78 : vector<2x16x18xf32>
    %90 = arith.addf %76, %89 : vector<2x16x18xf32>
    %c0_39 = arith.constant 0 : index
    %c2_40 = arith.constant 2 : index
    %c0_41 = arith.constant 0 : index
    %c0_42 = arith.constant 0 : index
    %91 = vector.load %arg7[%c0_39, %c2_40, %c0_41, %c0_42] : memref<2x4x18x18xf32, #tpu.memory_space<vmem>>, vector<2x1x16x18xf32>
    %92 = vector.shape_cast %91 : vector<2x1x16x18xf32> to vector<2x16x18xf32>
    %c18 = arith.constant 18 : index
    %93 = memref.load %arg1[%c18] : memref<36xf32, #tpu.memory_space<smem>>
    %94 = vector.broadcast %93 : f32 to vector<2x16x18xf32>
    %95 = arith.mulf %94, %92 : vector<2x16x18xf32>
    %96 = arith.addf %82, %95 : vector<2x16x18xf32>
    %c19 = arith.constant 19 : index
    %97 = memref.load %arg1[%c19] : memref<36xf32, #tpu.memory_space<smem>>
    %98 = vector.broadcast %97 : f32 to vector<2x16x18xf32>
    %99 = arith.mulf %98, %92 : vector<2x16x18xf32>
    %100 = arith.addf %86, %99 : vector<2x16x18xf32>
    %c20 = arith.constant 20 : index
    %101 = memref.load %arg1[%c20] : memref<36xf32, #tpu.memory_space<smem>>
    %102 = vector.broadcast %101 : f32 to vector<2x16x18xf32>
    %103 = arith.mulf %102, %92 : vector<2x16x18xf32>
    %104 = arith.addf %90, %103 : vector<2x16x18xf32>
    %c0_43 = arith.constant 0 : index
    %c2_44 = arith.constant 2 : index
    %c1_45 = arith.constant 1 : index
    %c0_46 = arith.constant 0 : index
    %105 = vector.load %arg7[%c0_43, %c2_44, %c1_45, %c0_46] : memref<2x4x18x18xf32, #tpu.memory_space<vmem>>, vector<2x1x16x18xf32>
    %106 = vector.shape_cast %105 : vector<2x1x16x18xf32> to vector<2x16x18xf32>
    %c21 = arith.constant 21 : index
    %107 = memref.load %arg1[%c21] : memref<36xf32, #tpu.memory_space<smem>>
    %108 = vector.broadcast %107 : f32 to vector<2x16x18xf32>
    %109 = arith.mulf %108, %106 : vector<2x16x18xf32>
    %110 = arith.addf %96, %109 : vector<2x16x18xf32>
    %c22 = arith.constant 22 : index
    %111 = memref.load %arg1[%c22] : memref<36xf32, #tpu.memory_space<smem>>
    %112 = vector.broadcast %111 : f32 to vector<2x16x18xf32>
    %113 = arith.mulf %112, %106 : vector<2x16x18xf32>
    %114 = arith.addf %100, %113 : vector<2x16x18xf32>
    %c23 = arith.constant 23 : index
    %115 = memref.load %arg1[%c23] : memref<36xf32, #tpu.memory_space<smem>>
    %116 = vector.broadcast %115 : f32 to vector<2x16x18xf32>
    %117 = arith.mulf %116, %106 : vector<2x16x18xf32>
    %118 = arith.addf %104, %117 : vector<2x16x18xf32>
    %c0_47 = arith.constant 0 : index
    %c2_48 = arith.constant 2 : index
    %c2_49 = arith.constant 2 : index
    %c0_50 = arith.constant 0 : index
    %119 = vector.load %arg7[%c0_47, %c2_48, %c2_49, %c0_50] : memref<2x4x18x18xf32, #tpu.memory_space<vmem>>, vector<2x1x16x18xf32>
    %120 = vector.shape_cast %119 : vector<2x1x16x18xf32> to vector<2x16x18xf32>
    %c24 = arith.constant 24 : index
    %121 = memref.load %arg1[%c24] : memref<36xf32, #tpu.memory_space<smem>>
    %122 = vector.broadcast %121 : f32 to vector<2x16x18xf32>
    %123 = arith.mulf %122, %120 : vector<2x16x18xf32>
    %124 = arith.addf %110, %123 : vector<2x16x18xf32>
    %c25 = arith.constant 25 : index
    %125 = memref.load %arg1[%c25] : memref<36xf32, #tpu.memory_space<smem>>
    %126 = vector.broadcast %125 : f32 to vector<2x16x18xf32>
    %127 = arith.mulf %126, %120 : vector<2x16x18xf32>
    %128 = arith.addf %114, %127 : vector<2x16x18xf32>
    %c26 = arith.constant 26 : index
    %129 = memref.load %arg1[%c26] : memref<36xf32, #tpu.memory_space<smem>>
    %130 = vector.broadcast %129 : f32 to vector<2x16x18xf32>
    %131 = arith.mulf %130, %120 : vector<2x16x18xf32>
    %132 = arith.addf %118, %131 : vector<2x16x18xf32>
    %c0_51 = arith.constant 0 : index
    %c3_52 = arith.constant 3 : index
    %c0_53 = arith.constant 0 : index
    %c0_54 = arith.constant 0 : index
    %133 = vector.load %arg7[%c0_51, %c3_52, %c0_53, %c0_54] : memref<2x4x18x18xf32, #tpu.memory_space<vmem>>, vector<2x1x16x18xf32>
    %134 = vector.shape_cast %133 : vector<2x1x16x18xf32> to vector<2x16x18xf32>
    %c27 = arith.constant 27 : index
    %135 = memref.load %arg1[%c27] : memref<36xf32, #tpu.memory_space<smem>>
    %136 = vector.broadcast %135 : f32 to vector<2x16x18xf32>
    %137 = arith.mulf %136, %134 : vector<2x16x18xf32>
    %138 = arith.addf %124, %137 : vector<2x16x18xf32>
    %c28 = arith.constant 28 : index
    %139 = memref.load %arg1[%c28] : memref<36xf32, #tpu.memory_space<smem>>
    %140 = vector.broadcast %139 : f32 to vector<2x16x18xf32>
    %141 = arith.mulf %140, %134 : vector<2x16x18xf32>
    %142 = arith.addf %128, %141 : vector<2x16x18xf32>
    %c29 = arith.constant 29 : index
    %143 = memref.load %arg1[%c29] : memref<36xf32, #tpu.memory_space<smem>>
    %144 = vector.broadcast %143 : f32 to vector<2x16x18xf32>
    %145 = arith.mulf %144, %134 : vector<2x16x18xf32>
    %146 = arith.addf %132, %145 : vector<2x16x18xf32>
    %c0_55 = arith.constant 0 : index
    %c3_56 = arith.constant 3 : index
    %c1_57 = arith.constant 1 : index
    %c0_58 = arith.constant 0 : index
    %147 = vector.load %arg7[%c0_55, %c3_56, %c1_57, %c0_58] : memref<2x4x18x18xf32, #tpu.memory_space<vmem>>, vector<2x1x16x18xf32>
    %148 = vector.shape_cast %147 : vector<2x1x16x18xf32> to vector<2x16x18xf32>
    %c30 = arith.constant 30 : index
    %149 = memref.load %arg1[%c30] : memref<36xf32, #tpu.memory_space<smem>>
    %150 = vector.broadcast %149 : f32 to vector<2x16x18xf32>
    %151 = arith.mulf %150, %148 : vector<2x16x18xf32>
    %152 = arith.addf %138, %151 : vector<2x16x18xf32>
    %c31 = arith.constant 31 : index
    %153 = memref.load %arg1[%c31] : memref<36xf32, #tpu.memory_space<smem>>
    %154 = vector.broadcast %153 : f32 to vector<2x16x18xf32>
    %155 = arith.mulf %154, %148 : vector<2x16x18xf32>
    %156 = arith.addf %142, %155 : vector<2x16x18xf32>
    %c32 = arith.constant 32 : index
    %157 = memref.load %arg1[%c32] : memref<36xf32, #tpu.memory_space<smem>>
    %158 = vector.broadcast %157 : f32 to vector<2x16x18xf32>
    %159 = arith.mulf %158, %148 : vector<2x16x18xf32>
    %160 = arith.addf %146, %159 : vector<2x16x18xf32>
    %c0_59 = arith.constant 0 : index
    %c3_60 = arith.constant 3 : index
    %c2_61 = arith.constant 2 : index
    %c0_62 = arith.constant 0 : index
    %161 = vector.load %arg7[%c0_59, %c3_60, %c2_61, %c0_62] : memref<2x4x18x18xf32, #tpu.memory_space<vmem>>, vector<2x1x16x18xf32>
    %162 = vector.shape_cast %161 : vector<2x1x16x18xf32> to vector<2x16x18xf32>
    %c33 = arith.constant 33 : index
    %163 = memref.load %arg1[%c33] : memref<36xf32, #tpu.memory_space<smem>>
    %164 = vector.broadcast %163 : f32 to vector<2x16x18xf32>
    %165 = arith.mulf %164, %162 : vector<2x16x18xf32>
    %166 = arith.addf %152, %165 : vector<2x16x18xf32>
    %c34 = arith.constant 34 : index
    %167 = memref.load %arg1[%c34] : memref<36xf32, #tpu.memory_space<smem>>
    %168 = vector.broadcast %167 : f32 to vector<2x16x18xf32>
    %169 = arith.mulf %168, %162 : vector<2x16x18xf32>
    %170 = arith.addf %156, %169 : vector<2x16x18xf32>
    %c35 = arith.constant 35 : index
    %171 = memref.load %arg1[%c35] : memref<36xf32, #tpu.memory_space<smem>>
    %172 = vector.broadcast %171 : f32 to vector<2x16x18xf32>
    %173 = arith.mulf %172, %162 : vector<2x16x18xf32>
    %174 = arith.addf %160, %173 : vector<2x16x18xf32>
    %175 = vector.extract_strided_slice %166 {offsets = [0, 0, 0], sizes = [2, 16, 16], strides = [1, 1, 1]} : vector<2x16x18xf32> to vector<2x16x16xf32>
    %176 = vector.extract_strided_slice %170 {offsets = [0, 0, 1], sizes = [2, 16, 16], strides = [1, 1, 1]} : vector<2x16x18xf32> to vector<2x16x16xf32>
    %177 = arith.addf %175, %176 : vector<2x16x16xf32>
    %178 = vector.extract_strided_slice %174 {offsets = [0, 0, 2], sizes = [2, 16, 16], strides = [1, 1, 1]} : vector<2x16x18xf32> to vector<2x16x16xf32>
    %179 = arith.addf %177, %178 : vector<2x16x16xf32>
    %cst_63 = arith.constant 0.000000e+00 : f32
    %180 = vector.broadcast %cst_63 : f32 to vector<2x18x18xf32>
    %c0_64 = arith.constant 0 : index
    %c0_65 = arith.constant 0 : index
    %c0_66 = arith.constant 0 : index
    %181 = vector.load %arg8[%c0_64, %c0_65, %c0_66] : memref<2x18x18xf32, #tpu.memory_space<vmem>>, vector<2x18x18xf32>
    tpu.vector_store %arg8[%c0_64, %c0_65, %c0_66], %180 {strides = array<i32>} : memref<2x18x18xf32, #tpu.memory_space<vmem>>, vector<2x18x18xf32>,
    %c0_67 = arith.constant 0 : index
    %c1_68 = arith.constant 1 : index
    %c1_69 = arith.constant 1 : index
    %182 = vector.load %arg8[%c0_67, %c1_68, %c1_69] : memref<2x18x18xf32, #tpu.memory_space<vmem>>, vector<2x16x16xf32>
    tpu.vector_store %arg8[%c0_67, %c1_68, %c1_69], %179 {strides = array<i32>} : memref<2x18x18xf32, #tpu.memory_space<vmem>>, vector<2x16x16xf32>,
    %c0_70 = arith.constant 0 : index
    %c0_71 = arith.constant 0 : index
    %c0_72 = arith.constant 0 : index
    %183 = vector.load %arg8[%c0_70, %c0_71, %c0_72] : memref<2x18x18xf32, #tpu.memory_space<vmem>>, vector<2x16x18xf32>
    %c0_73 = arith.constant 0 : index
    %c1_74 = arith.constant 1 : index
    %c0_75 = arith.constant 0 : index
    %184 = vector.load %arg8[%c0_73, %c1_74, %c0_75] : memref<2x18x18xf32, #tpu.memory_space<vmem>>, vector<2x16x18xf32>
    %c0_76 = arith.constant 0 : index
    %c2_77 = arith.constant 2 : index
    %c0_78 = arith.constant 0 : index
    %185 = vector.load %arg8[%c0_76, %c2_77, %c0_78] : memref<2x18x18xf32, #tpu.memory_space<vmem>>, vector<2x16x18xf32>
    %186 = tpu.iota {dimensions = array<i32: 1>} : vector<2x16x16xi32>
    %187 = tpu.iota {dimensions = array<i32: 2>} : vector<2x16x16xi32>
    %c2_i32 = arith.constant 2 : i32
    %c0_i32 = arith.constant 0 : i32
    %188 = arith.cmpi eq, %c2_i32, %c0_i32 : i32
    %c1_i32 = arith.constant 1 : i32
    %189 = arith.select %188, %c1_i32, %c2_i32 : i32
    %190 = vector.broadcast %189 : i32 to vector<2x16x16xi32>
    %191 = arith.remsi %186, %190 : vector<2x16x16xi32>
    %c0_i32_79 = arith.constant 0 : i32
    %192 = vector.broadcast %c0_i32_79 : i32 to vector<2x16x16xi32>
    %193 = arith.cmpi ne, %191, %192 : vector<2x16x16xi32>
    %c0_i32_80 = arith.constant 0 : i32
    %194 = vector.broadcast %c0_i32_80 : i32 to vector<2x16x16xi32>
    %195 = arith.cmpi slt, %191, %194 : vector<2x16x16xi32>
    %c0_i32_81 = arith.constant 0 : i32
    %196 = arith.cmpi slt, %189, %c0_i32_81 : i32
    %197 = vector.broadcast %196 : i1 to vector<2x16x16xi1>
    %198 = vector.broadcast %197 : vector<2x16x16xi1> to vector<2x16x16xi1>
    %199 = arith.xori %195, %198 : vector<2x16x16xi1>
    %200 = arith.andi %199, %193 : vector<2x16x16xi1>
    %201 = vector.broadcast %189 : i32 to vector<2x16x16xi32>
    %202 = arith.addi %191, %201 : vector<2x16x16xi32>
    %203 = arith.select %200, %202, %191 : vector<2x16x16xi1>, vector<2x16x16xi32>
    %c0_i32_82 = arith.constant 0 : i32
    %204 = vector.broadcast %c0_i32_82 : i32 to vector<2x16x16xi32>
    %205 = arith.cmpi eq, %203, %204 : vector<2x16x16xi32>
    %c2_i32_83 = arith.constant 2 : i32
    %c0_i32_84 = arith.constant 0 : i32
    %206 = arith.cmpi eq, %c2_i32_83, %c0_i32_84 : i32
    %c1_i32_85 = arith.constant 1 : i32
    %207 = arith.select %206, %c1_i32_85, %c2_i32_83 : i32
    %208 = vector.broadcast %207 : i32 to vector<2x16x16xi32>
    %209 = arith.remsi %187, %208 : vector<2x16x16xi32>
    %c0_i32_86 = arith.constant 0 : i32
    %210 = vector.broadcast %c0_i32_86 : i32 to vector<2x16x16xi32>
    %211 = arith.cmpi ne, %209, %210 : vector<2x16x16xi32>
    %c0_i32_87 = arith.constant 0 : i32
    %212 = vector.broadcast %c0_i32_87 : i32 to vector<2x16x16xi32>
    %213 = arith.cmpi slt, %209, %212 : vector<2x16x16xi32>
    %c0_i32_88 = arith.constant 0 : i32
    %214 = arith.cmpi slt, %207, %c0_i32_88 : i32
    %215 = vector.broadcast %214 : i1 to vector<2x16x16xi1>
    %216 = vector.broadcast %215 : vector<2x16x16xi1> to vector<2x16x16xi1>
    %217 = arith.xori %213, %216 : vector<2x16x16xi1>
    %218 = arith.andi %217, %211 : vector<2x16x16xi1>
    %219 = vector.broadcast %207 : i32 to vector<2x16x16xi32>
    %220 = arith.addi %209, %219 : vector<2x16x16xi32>
    %221 = arith.select %218, %220, %209 : vector<2x16x16xi1>, vector<2x16x16xi32>
    %c0_i32_89 = arith.constant 0 : i32
    %222 = vector.broadcast %c0_i32_89 : i32 to vector<2x16x16xi32>
    %223 = arith.cmpi eq, %221, %222 : vector<2x16x16xi32>
    %224 = arith.andi %205, %223 : vector<2x16x16xi1>
    %cst_90 = arith.constant 1.000000e+00 : f32
    %cst_91 = arith.constant 0.000000e+00 : f32
    %225 = vector.broadcast %cst_90 : f32 to vector<2x16x16xf32>
    %226 = vector.broadcast %cst_91 : f32 to vector<2x16x16xf32>
    %227 = arith.select %224, %225, %226 : vector<2x16x16xi1>, vector<2x16x16xf32>
    %c4_i32 = arith.constant 4 : i32
    %228 = arith.muli %arg0, %c4_i32 : i32
    %c0_i32_92 = arith.constant 0 : i32
    %229 = arith.addi %228, %c0_i32_92 : i32
    %cst_93 = arith.constant 0.000000e+00 : f32
    %230 = vector.broadcast %cst_93 : f32 to vector<2x16x18xf32>
    %cst_94 = arith.constant 0.000000e+00 : f32
    %231 = vector.broadcast %cst_94 : f32 to vector<2x16x18xf32>
    %cst_95 = arith.constant 0.000000e+00 : f32
    %232 = vector.broadcast %cst_95 : f32 to vector<2x16x18xf32>
    %c3_i32 = arith.constant 3 : i32
    %233 = arith.muli %229, %c3_i32 : i32
    %c0_i32_96 = arith.constant 0 : i32
    %234 = arith.addi %233, %c0_i32_96 : i32
    %c3_i32_97 = arith.constant 3 : i32
    %235 = arith.muli %234, %c3_i32_97 : i32
    %c0_i32_98 = arith.constant 0 : i32
    %236 = arith.addi %235, %c0_i32_98 : i32
    %237 = arith.index_cast %236 : i32 to index
    %238 = memref.load %arg2[%237] : memref<72xf32, #tpu.memory_space<smem>>
    %239 = vector.broadcast %238 : f32 to vector<2x16x18xf32>
    %240 = arith.mulf %239, %183 : vector<2x16x18xf32>
    %241 = arith.addf %230, %240 : vector<2x16x18xf32>
    %c3_i32_99 = arith.constant 3 : i32
    %242 = arith.muli %229, %c3_i32_99 : i32
    %c0_i32_100 = arith.constant 0 : i32
    %243 = arith.addi %242, %c0_i32_100 : i32
    %c3_i32_101 = arith.constant 3 : i32
    %244 = arith.muli %243, %c3_i32_101 : i32
    %c1_i32_102 = arith.constant 1 : i32
    %245 = arith.addi %244, %c1_i32_102 : i32
    %246 = arith.index_cast %245 : i32 to index
    %247 = memref.load %arg2[%246] : memref<72xf32, #tpu.memory_space<smem>>
    %248 = vector.broadcast %247 : f32 to vector<2x16x18xf32>
    %249 = arith.mulf %248, %183 : vector<2x16x18xf32>
    %250 = arith.addf %231, %249 : vector<2x16x18xf32>
    %c3_i32_103 = arith.constant 3 : i32
    %251 = arith.muli %229, %c3_i32_103 : i32
    %c0_i32_104 = arith.constant 0 : i32
    %252 = arith.addi %251, %c0_i32_104 : i32
    %c3_i32_105 = arith.constant 3 : i32
    %253 = arith.muli %252, %c3_i32_105 : i32
    %c2_i32_106 = arith.constant 2 : i32
    %254 = arith.addi %253, %c2_i32_106 : i32
    %255 = arith.index_cast %254 : i32 to index
    %256 = memref.load %arg2[%255] : memref<72xf32, #tpu.memory_space<smem>>
    %257 = vector.broadcast %256 : f32 to vector<2x16x18xf32>
    %258 = arith.mulf %257, %183 : vector<2x16x18xf32>
    %259 = arith.addf %232, %258 : vector<2x16x18xf32>
    %c3_i32_107 = arith.constant 3 : i32
    %260 = arith.muli %229, %c3_i32_107 : i32
    %c1_i32_108 = arith.constant 1 : i32
    %261 = arith.addi %260, %c1_i32_108 : i32
    %c3_i32_109 = arith.constant 3 : i32
    %262 = arith.muli %261, %c3_i32_109 : i32
    %c0_i32_110 = arith.constant 0 : i32
    %263 = arith.addi %262, %c0_i32_110 : i32
    %264 = arith.index_cast %263 : i32 to index
    %265 = memref.load %arg2[%264] : memref<72xf32, #tpu.memory_space<smem>>
    %266 = vector.broadcast %265 : f32 to vector<2x16x18xf32>
    %267 = arith.mulf %266, %184 : vector<2x16x18xf32>
    %268 = arith.addf %241, %267 : vector<2x16x18xf32>
    %c3_i32_111 = arith.constant 3 : i32
    %269 = arith.muli %229, %c3_i32_111 : i32
    %c1_i32_112 = arith.constant 1 : i32
    %270 = arith.addi %269, %c1_i32_112 : i32
    %c3_i32_113 = arith.constant 3 : i32
    %271 = arith.muli %270, %c3_i32_113 : i32
    %c1_i32_114 = arith.constant 1 : i32
    %272 = arith.addi %271, %c1_i32_114 : i32
    %273 = arith.index_cast %272 : i32 to index
    %274 = memref.load %arg2[%273] : memref<72xf32, #tpu.memory_space<smem>>
    %275 = vector.broadcast %274 : f32 to vector<2x16x18xf32>
    %276 = arith.mulf %275, %184 : vector<2x16x18xf32>
    %277 = arith.addf %250, %276 : vector<2x16x18xf32>
    %c3_i32_115 = arith.constant 3 : i32
    %278 = arith.muli %229, %c3_i32_115 : i32
    %c1_i32_116 = arith.constant 1 : i32
    %279 = arith.addi %278, %c1_i32_116 : i32
    %c3_i32_117 = arith.constant 3 : i32
    %280 = arith.muli %279, %c3_i32_117 : i32
    %c2_i32_118 = arith.constant 2 : i32
    %281 = arith.addi %280, %c2_i32_118 : i32
    %282 = arith.index_cast %281 : i32 to index
    %283 = memref.load %arg2[%282] : memref<72xf32, #tpu.memory_space<smem>>
    %284 = vector.broadcast %283 : f32 to vector<2x16x18xf32>
    %285 = arith.mulf %284, %184 : vector<2x16x18xf32>
    %286 = arith.addf %259, %285 : vector<2x16x18xf32>
    %c3_i32_119 = arith.constant 3 : i32
    %287 = arith.muli %229, %c3_i32_119 : i32
    %c2_i32_120 = arith.constant 2 : i32
    %288 = arith.addi %287, %c2_i32_120 : i32
    %c3_i32_121 = arith.constant 3 : i32
    %289 = arith.muli %288, %c3_i32_121 : i32
    %c0_i32_122 = arith.constant 0 : i32
    %290 = arith.addi %289, %c0_i32_122 : i32
    %291 = arith.index_cast %290 : i32 to index
    %292 = memref.load %arg2[%291] : memref<72xf32, #tpu.memory_space<smem>>
    %293 = vector.broadcast %292 : f32 to vector<2x16x18xf32>
    %294 = arith.mulf %293, %185 : vector<2x16x18xf32>
    %295 = arith.addf %268, %294 : vector<2x16x18xf32>
    %c3_i32_123 = arith.constant 3 : i32
    %296 = arith.muli %229, %c3_i32_123 : i32
    %c2_i32_124 = arith.constant 2 : i32
    %297 = arith.addi %296, %c2_i32_124 : i32
    %c3_i32_125 = arith.constant 3 : i32
    %298 = arith.muli %297, %c3_i32_125 : i32
    %c1_i32_126 = arith.constant 1 : i32
    %299 = arith.addi %298, %c1_i32_126 : i32
    %300 = arith.index_cast %299 : i32 to index
    %301 = memref.load %arg2[%300] : memref<72xf32, #tpu.memory_space<smem>>
    %302 = vector.broadcast %301 : f32 to vector<2x16x18xf32>
    %303 = arith.mulf %302, %185 : vector<2x16x18xf32>
    %304 = arith.addf %277, %303 : vector<2x16x18xf32>
    %c3_i32_127 = arith.constant 3 : i32
    %305 = arith.muli %229, %c3_i32_127 : i32
    %c2_i32_128 = arith.constant 2 : i32
    %306 = arith.addi %305, %c2_i32_128 : i32
    %c3_i32_129 = arith.constant 3 : i32
    %307 = arith.muli %306, %c3_i32_129 : i32
    %c2_i32_130 = arith.constant 2 : i32
    %308 = arith.addi %307, %c2_i32_130 : i32
    %309 = arith.index_cast %308 : i32 to index
    %310 = memref.load %arg2[%309] : memref<72xf32, #tpu.memory_space<smem>>
    %311 = vector.broadcast %310 : f32 to vector<2x16x18xf32>
    %312 = arith.mulf %311, %185 : vector<2x16x18xf32>
    %313 = arith.addf %286, %312 : vector<2x16x18xf32>
    %314 = vector.extract_strided_slice %295 {offsets = [0, 0, 0], sizes = [2, 16, 16], strides = [1, 1, 1]} : vector<2x16x18xf32> to vector<2x16x16xf32>
    %315 = vector.extract_strided_slice %304 {offsets = [0, 0, 1], sizes = [2, 16, 16], strides = [1, 1, 1]} : vector<2x16x18xf32> to vector<2x16x16xf32>
    %316 = arith.addf %314, %315 : vector<2x16x16xf32>
    %317 = vector.extract_strided_slice %313 {offsets = [0, 0, 2], sizes = [2, 16, 16], strides = [1, 1, 1]} : vector<2x16x18xf32> to vector<2x16x16xf32>
    %318 = arith.addf %316, %317 : vector<2x16x16xf32>
    %319 = arith.mulf %318, %227 : vector<2x16x16xf32>
    %320 = vector.shape_cast %319 : vector<2x16x16xf32> to vector<1x2x16x16xf32>
    %cst_131 = arith.constant dense<0.000000e+00> : vector<1xf32>
    %321 = vector.multi_reduction <add>, %320, %cst_131 [1, 2, 3] : vector<1x2x16x16xf32> to vector<1xf32>
    %322 = vector.shape_cast %321 : vector<1xf32> to vector<1x1x1x1xf32>
    %323 = vector.extract %322[0, 0, 0, 0] : f32 from vector<1x1x1x1xf32>
    %324 = vector.broadcast %323 : f32 to vector<1x1x1xf32>
    %cst_132 = arith.constant 7.812500e-03 : f32
    %325 = vector.broadcast %cst_132 : f32 to vector<1x1x1xf32>
    %326 = arith.mulf %324, %325 : vector<1x1x1xf32>
    %327 = vector.broadcast %326 : vector<1x1x1xf32> to vector<2x16x16xf32>
    %328 = arith.subf %318, %327 : vector<2x16x16xf32>
    %329 = arith.mulf %328, %328 : vector<2x16x16xf32>
    %330 = arith.mulf %329, %227 : vector<2x16x16xf32>
    %331 = vector.shape_cast %330 : vector<2x16x16xf32> to vector<1x2x16x16xf32>
    %cst_133 = arith.constant dense<0.000000e+00> : vector<1xf32>
    %332 = vector.multi_reduction <add>, %331, %cst_133 [1, 2, 3] : vector<1x2x16x16xf32> to vector<1xf32>
    %333 = vector.shape_cast %332 : vector<1xf32> to vector<1x1x1x1xf32>
    %334 = vector.extract %333[0, 0, 0, 0] : f32 from vector<1x1x1x1xf32>
    %335 = vector.broadcast %334 : f32 to vector<1x1x1xf32>
    %cst_134 = arith.constant 7.812500e-03 : f32
    %336 = vector.broadcast %cst_134 : f32 to vector<1x1x1xf32>
    %337 = arith.mulf %335, %336 : vector<1x1x1xf32>
    %338 = arith.index_cast %229 : i32 to index
    %339 = memref.load %arg3[%338] : memref<8xf32, #tpu.memory_space<smem>>
    %cst_135 = arith.constant 9.99999974E-6 : f32
    %340 = vector.broadcast %cst_135 : f32 to vector<1x1x1xf32>
    %341 = arith.addf %337, %340 : vector<1x1x1xf32>
    %342 = math.rsqrt %341 : vector<1x1x1xf32>
    %343 = vector.broadcast %342 : vector<1x1x1xf32> to vector<2x16x16xf32>
    %344 = arith.mulf %328, %343 : vector<2x16x16xf32>
    %345 = vector.broadcast %339 : f32 to vector<2x16x16xf32>
    %346 = arith.mulf %345, %344 : vector<2x16x16xf32>
    %347 = arith.index_cast %229 : i32 to index
    %348 = memref.load %arg4[%347] : memref<8xf32, #tpu.memory_space<smem>>
    %349 = vector.broadcast %348 : f32 to vector<2x16x16xf32>
    %350 = arith.addf %346, %349 : vector<2x16x16xf32>
    %cst_136 = arith.constant 0.000000e+00 : f32
    %351 = vector.broadcast %cst_136 : f32 to vector<2x16x16xf32>
    %352 = arith.cmpf oge, %350, %351 : vector<2x16x16xf32>
    %cst_137 = arith.constant 1.000000e-01 : f32
    %353 = vector.broadcast %cst_137 : f32 to vector<2x16x16xf32>
    %354 = arith.mulf %353, %350 : vector<2x16x16xf32>
    %355 = arith.select %352, %350, %354 : vector<2x16x16xi1>, vector<2x16x16xf32>
    %c0_138 = arith.constant 0 : index
    %c0_139 = arith.constant 0 : index
    %c0_140 = arith.constant 0 : index
    %c0_141 = arith.constant 0 : index
    %356 = vector.load %arg6[%c0_138, %c0_139, %c0_140, %c0_141] : memref<2x4x16x16xf32, #tpu.memory_space<vmem>>, vector<2x1x16x16xf32>
    %357 = vector.shape_cast %356 : vector<2x1x16x16xf32> to vector<2x16x16xf32>
    %358 = vector.shape_cast %355 : vector<2x16x16xf32> to vector<2x1x16x16xf32>
    tpu.vector_store %arg6[%c0_138, %c0_139, %c0_140, %c0_141], %358 {strides = array<i32>} : memref<2x4x16x16xf32, #tpu.memory_space<vmem>>, vector<2x1x16x16xf32>,
    %c1_i32_142 = arith.constant 1 : i32
    %359 = arith.addi %228, %c1_i32_142 : i32
    %cst_143 = arith.constant 0.000000e+00 : f32
    %360 = vector.broadcast %cst_143 : f32 to vector<2x16x18xf32>
    %cst_144 = arith.constant 0.000000e+00 : f32
    %361 = vector.broadcast %cst_144 : f32 to vector<2x16x18xf32>
    %cst_145 = arith.constant 0.000000e+00 : f32
    %362 = vector.broadcast %cst_145 : f32 to vector<2x16x18xf32>
    %c3_i32_146 = arith.constant 3 : i32
    %363 = arith.muli %359, %c3_i32_146 : i32
    %c0_i32_147 = arith.constant 0 : i32
    %364 = arith.addi %363, %c0_i32_147 : i32
    %c3_i32_148 = arith.constant 3 : i32
    %365 = arith.muli %364, %c3_i32_148 : i32
    %c0_i32_149 = arith.constant 0 : i32
    %366 = arith.addi %365, %c0_i32_149 : i32
    %367 = arith.index_cast %366 : i32 to index
    %368 = memref.load %arg2[%367] : memref<72xf32, #tpu.memory_space<smem>>
    %369 = vector.broadcast %368 : f32 to vector<2x16x18xf32>
    %370 = arith.mulf %369, %183 : vector<2x16x18xf32>
    %371 = arith.addf %360, %370 : vector<2x16x18xf32>
    %c3_i32_150 = arith.constant 3 : i32
    %372 = arith.muli %359, %c3_i32_150 : i32
    %c0_i32_151 = arith.constant 0 : i32
    %373 = arith.addi %372, %c0_i32_151 : i32
    %c3_i32_152 = arith.constant 3 : i32
    %374 = arith.muli %373, %c3_i32_152 : i32
    %c1_i32_153 = arith.constant 1 : i32
    %375 = arith.addi %374, %c1_i32_153 : i32
    %376 = arith.index_cast %375 : i32 to index
    %377 = memref.load %arg2[%376] : memref<72xf32, #tpu.memory_space<smem>>
    %378 = vector.broadcast %377 : f32 to vector<2x16x18xf32>
    %379 = arith.mulf %378, %183 : vector<2x16x18xf32>
    %380 = arith.addf %361, %379 : vector<2x16x18xf32>
    %c3_i32_154 = arith.constant 3 : i32
    %381 = arith.muli %359, %c3_i32_154 : i32
    %c0_i32_155 = arith.constant 0 : i32
    %382 = arith.addi %381, %c0_i32_155 : i32
    %c3_i32_156 = arith.constant 3 : i32
    %383 = arith.muli %382, %c3_i32_156 : i32
    %c2_i32_157 = arith.constant 2 : i32
    %384 = arith.addi %383, %c2_i32_157 : i32
    %385 = arith.index_cast %384 : i32 to index
    %386 = memref.load %arg2[%385] : memref<72xf32, #tpu.memory_space<smem>>
    %387 = vector.broadcast %386 : f32 to vector<2x16x18xf32>
    %388 = arith.mulf %387, %183 : vector<2x16x18xf32>
    %389 = arith.addf %362, %388 : vector<2x16x18xf32>
    %c3_i32_158 = arith.constant 3 : i32
    %390 = arith.muli %359, %c3_i32_158 : i32
    %c1_i32_159 = arith.constant 1 : i32
    %391 = arith.addi %390, %c1_i32_159 : i32
    %c3_i32_160 = arith.constant 3 : i32
    %392 = arith.muli %391, %c3_i32_160 : i32
    %c0_i32_161 = arith.constant 0 : i32
    %393 = arith.addi %392, %c0_i32_161 : i32
    %394 = arith.index_cast %393 : i32 to index
    %395 = memref.load %arg2[%394] : memref<72xf32, #tpu.memory_space<smem>>
    %396 = vector.broadcast %395 : f32 to vector<2x16x18xf32>
    %397 = arith.mulf %396, %184 : vector<2x16x18xf32>
    %398 = arith.addf %371, %397 : vector<2x16x18xf32>
    %c3_i32_162 = arith.constant 3 : i32
    %399 = arith.muli %359, %c3_i32_162 : i32
    %c1_i32_163 = arith.constant 1 : i32
    %400 = arith.addi %399, %c1_i32_163 : i32
    %c3_i32_164 = arith.constant 3 : i32
    %401 = arith.muli %400, %c3_i32_164 : i32
    %c1_i32_165 = arith.constant 1 : i32
    %402 = arith.addi %401, %c1_i32_165 : i32
    %403 = arith.index_cast %402 : i32 to index
    %404 = memref.load %arg2[%403] : memref<72xf32, #tpu.memory_space<smem>>
    %405 = vector.broadcast %404 : f32 to vector<2x16x18xf32>
    %406 = arith.mulf %405, %184 : vector<2x16x18xf32>
    %407 = arith.addf %380, %406 : vector<2x16x18xf32>
    %c3_i32_166 = arith.constant 3 : i32
    %408 = arith.muli %359, %c3_i32_166 : i32
    %c1_i32_167 = arith.constant 1 : i32
    %409 = arith.addi %408, %c1_i32_167 : i32
    %c3_i32_168 = arith.constant 3 : i32
    %410 = arith.muli %409, %c3_i32_168 : i32
    %c2_i32_169 = arith.constant 2 : i32
    %411 = arith.addi %410, %c2_i32_169 : i32
    %412 = arith.index_cast %411 : i32 to index
    %413 = memref.load %arg2[%412] : memref<72xf32, #tpu.memory_space<smem>>
    %414 = vector.broadcast %413 : f32 to vector<2x16x18xf32>
    %415 = arith.mulf %414, %184 : vector<2x16x18xf32>
    %416 = arith.addf %389, %415 : vector<2x16x18xf32>
    %c3_i32_170 = arith.constant 3 : i32
    %417 = arith.muli %359, %c3_i32_170 : i32
    %c2_i32_171 = arith.constant 2 : i32
    %418 = arith.addi %417, %c2_i32_171 : i32
    %c3_i32_172 = arith.constant 3 : i32
    %419 = arith.muli %418, %c3_i32_172 : i32
    %c0_i32_173 = arith.constant 0 : i32
    %420 = arith.addi %419, %c0_i32_173 : i32
    %421 = arith.index_cast %420 : i32 to index
    %422 = memref.load %arg2[%421] : memref<72xf32, #tpu.memory_space<smem>>
    %423 = vector.broadcast %422 : f32 to vector<2x16x18xf32>
    %424 = arith.mulf %423, %185 : vector<2x16x18xf32>
    %425 = arith.addf %398, %424 : vector<2x16x18xf32>
    %c3_i32_174 = arith.constant 3 : i32
    %426 = arith.muli %359, %c3_i32_174 : i32
    %c2_i32_175 = arith.constant 2 : i32
    %427 = arith.addi %426, %c2_i32_175 : i32
    %c3_i32_176 = arith.constant 3 : i32
    %428 = arith.muli %427, %c3_i32_176 : i32
    %c1_i32_177 = arith.constant 1 : i32
    %429 = arith.addi %428, %c1_i32_177 : i32
    %430 = arith.index_cast %429 : i32 to index
    %431 = memref.load %arg2[%430] : memref<72xf32, #tpu.memory_space<smem>>
    %432 = vector.broadcast %431 : f32 to vector<2x16x18xf32>
    %433 = arith.mulf %432, %185 : vector<2x16x18xf32>
    %434 = arith.addf %407, %433 : vector<2x16x18xf32>
    %c3_i32_178 = arith.constant 3 : i32
    %435 = arith.muli %359, %c3_i32_178 : i32
    %c2_i32_179 = arith.constant 2 : i32
    %436 = arith.addi %435, %c2_i32_179 : i32
    %c3_i32_180 = arith.constant 3 : i32
    %437 = arith.muli %436, %c3_i32_180 : i32
    %c2_i32_181 = arith.constant 2 : i32
    %438 = arith.addi %437, %c2_i32_181 : i32
    %439 = arith.index_cast %438 : i32 to index
    %440 = memref.load %arg2[%439] : memref<72xf32, #tpu.memory_space<smem>>
    %441 = vector.broadcast %440 : f32 to vector<2x16x18xf32>
    %442 = arith.mulf %441, %185 : vector<2x16x18xf32>
    %443 = arith.addf %416, %442 : vector<2x16x18xf32>
    %444 = vector.extract_strided_slice %425 {offsets = [0, 0, 0], sizes = [2, 16, 16], strides = [1, 1, 1]} : vector<2x16x18xf32> to vector<2x16x16xf32>
    %445 = vector.extract_strided_slice %434 {offsets = [0, 0, 1], sizes = [2, 16, 16], strides = [1, 1, 1]} : vector<2x16x18xf32> to vector<2x16x16xf32>
    %446 = arith.addf %444, %445 : vector<2x16x16xf32>
    %447 = vector.extract_strided_slice %443 {offsets = [0, 0, 2], sizes = [2, 16, 16], strides = [1, 1, 1]} : vector<2x16x18xf32> to vector<2x16x16xf32>
    %448 = arith.addf %446, %447 : vector<2x16x16xf32>
    %449 = arith.mulf %448, %227 : vector<2x16x16xf32>
    %450 = vector.shape_cast %449 : vector<2x16x16xf32> to vector<1x2x16x16xf32>
    %cst_182 = arith.constant dense<0.000000e+00> : vector<1xf32>
    %451 = vector.multi_reduction <add>, %450, %cst_182 [1, 2, 3] : vector<1x2x16x16xf32> to vector<1xf32>
    %452 = vector.shape_cast %451 : vector<1xf32> to vector<1x1x1x1xf32>
    %453 = vector.extract %452[0, 0, 0, 0] : f32 from vector<1x1x1x1xf32>
    %454 = vector.broadcast %453 : f32 to vector<1x1x1xf32>
    %cst_183 = arith.constant 7.812500e-03 : f32
    %455 = vector.broadcast %cst_183 : f32 to vector<1x1x1xf32>
    %456 = arith.mulf %454, %455 : vector<1x1x1xf32>
    %457 = vector.broadcast %456 : vector<1x1x1xf32> to vector<2x16x16xf32>
    %458 = arith.subf %448, %457 : vector<2x16x16xf32>
    %459 = arith.mulf %458, %458 : vector<2x16x16xf32>
    %460 = arith.mulf %459, %227 : vector<2x16x16xf32>
    %461 = vector.shape_cast %460 : vector<2x16x16xf32> to vector<1x2x16x16xf32>
    %cst_184 = arith.constant dense<0.000000e+00> : vector<1xf32>
    %462 = vector.multi_reduction <add>, %461, %cst_184 [1, 2, 3] : vector<1x2x16x16xf32> to vector<1xf32>
    %463 = vector.shape_cast %462 : vector<1xf32> to vector<1x1x1x1xf32>
    %464 = vector.extract %463[0, 0, 0, 0] : f32 from vector<1x1x1x1xf32>
    %465 = vector.broadcast %464 : f32 to vector<1x1x1xf32>
    %cst_185 = arith.constant 7.812500e-03 : f32
    %466 = vector.broadcast %cst_185 : f32 to vector<1x1x1xf32>
    %467 = arith.mulf %465, %466 : vector<1x1x1xf32>
    %468 = arith.index_cast %359 : i32 to index
    %469 = memref.load %arg3[%468] : memref<8xf32, #tpu.memory_space<smem>>
    %cst_186 = arith.constant 9.99999974E-6 : f32
    %470 = vector.broadcast %cst_186 : f32 to vector<1x1x1xf32>
    %471 = arith.addf %467, %470 : vector<1x1x1xf32>
    %472 = math.rsqrt %471 : vector<1x1x1xf32>
    %473 = vector.broadcast %472 : vector<1x1x1xf32> to vector<2x16x16xf32>
    %474 = arith.mulf %458, %473 : vector<2x16x16xf32>
    %475 = vector.broadcast %469 : f32 to vector<2x16x16xf32>
    %476 = arith.mulf %475, %474 : vector<2x16x16xf32>
    %477 = arith.index_cast %359 : i32 to index
    %478 = memref.load %arg4[%477] : memref<8xf32, #tpu.memory_space<smem>>
    %479 = vector.broadcast %478 : f32 to vector<2x16x16xf32>
    %480 = arith.addf %476, %479 : vector<2x16x16xf32>
    %cst_187 = arith.constant 0.000000e+00 : f32
    %481 = vector.broadcast %cst_187 : f32 to vector<2x16x16xf32>
    %482 = arith.cmpf oge, %480, %481 : vector<2x16x16xf32>
    %cst_188 = arith.constant 1.000000e-01 : f32
    %483 = vector.broadcast %cst_188 : f32 to vector<2x16x16xf32>
    %484 = arith.mulf %483, %480 : vector<2x16x16xf32>
    %485 = arith.select %482, %480, %484 : vector<2x16x16xi1>, vector<2x16x16xf32>
    %c0_189 = arith.constant 0 : index
    %c1_190 = arith.constant 1 : index
    %c0_191 = arith.constant 0 : index
    %c0_192 = arith.constant 0 : index
    %486 = vector.load %arg6[%c0_189, %c1_190, %c0_191, %c0_192] : memref<2x4x16x16xf32, #tpu.memory_space<vmem>>, vector<2x1x16x16xf32>
    %487 = vector.shape_cast %486 : vector<2x1x16x16xf32> to vector<2x16x16xf32>
    %488 = vector.shape_cast %485 : vector<2x16x16xf32> to vector<2x1x16x16xf32>
    tpu.vector_store %arg6[%c0_189, %c1_190, %c0_191, %c0_192], %488 {strides = array<i32>} : memref<2x4x16x16xf32, #tpu.memory_space<vmem>>, vector<2x1x16x16xf32>,
    %c2_i32_193 = arith.constant 2 : i32
    %489 = arith.addi %228, %c2_i32_193 : i32
    %cst_194 = arith.constant 0.000000e+00 : f32
    %490 = vector.broadcast %cst_194 : f32 to vector<2x16x18xf32>
    %cst_195 = arith.constant 0.000000e+00 : f32
    %491 = vector.broadcast %cst_195 : f32 to vector<2x16x18xf32>
    %cst_196 = arith.constant 0.000000e+00 : f32
    %492 = vector.broadcast %cst_196 : f32 to vector<2x16x18xf32>
    %c3_i32_197 = arith.constant 3 : i32
    %493 = arith.muli %489, %c3_i32_197 : i32
    %c0_i32_198 = arith.constant 0 : i32
    %494 = arith.addi %493, %c0_i32_198 : i32
    %c3_i32_199 = arith.constant 3 : i32
    %495 = arith.muli %494, %c3_i32_199 : i32
    %c0_i32_200 = arith.constant 0 : i32
    %496 = arith.addi %495, %c0_i32_200 : i32
    %497 = arith.index_cast %496 : i32 to index
    %498 = memref.load %arg2[%497] : memref<72xf32, #tpu.memory_space<smem>>
    %499 = vector.broadcast %498 : f32 to vector<2x16x18xf32>
    %500 = arith.mulf %499, %183 : vector<2x16x18xf32>
    %501 = arith.addf %490, %500 : vector<2x16x18xf32>
    %c3_i32_201 = arith.constant 3 : i32
    %502 = arith.muli %489, %c3_i32_201 : i32
    %c0_i32_202 = arith.constant 0 : i32
    %503 = arith.addi %502, %c0_i32_202 : i32
    %c3_i32_203 = arith.constant 3 : i32
    %504 = arith.muli %503, %c3_i32_203 : i32
    %c1_i32_204 = arith.constant 1 : i32
    %505 = arith.addi %504, %c1_i32_204 : i32
    %506 = arith.index_cast %505 : i32 to index
    %507 = memref.load %arg2[%506] : memref<72xf32, #tpu.memory_space<smem>>
    %508 = vector.broadcast %507 : f32 to vector<2x16x18xf32>
    %509 = arith.mulf %508, %183 : vector<2x16x18xf32>
    %510 = arith.addf %491, %509 : vector<2x16x18xf32>
    %c3_i32_205 = arith.constant 3 : i32
    %511 = arith.muli %489, %c3_i32_205 : i32
    %c0_i32_206 = arith.constant 0 : i32
    %512 = arith.addi %511, %c0_i32_206 : i32
    %c3_i32_207 = arith.constant 3 : i32
    %513 = arith.muli %512, %c3_i32_207 : i32
    %c2_i32_208 = arith.constant 2 : i32
    %514 = arith.addi %513, %c2_i32_208 : i32
    %515 = arith.index_cast %514 : i32 to index
    %516 = memref.load %arg2[%515] : memref<72xf32, #tpu.memory_space<smem>>
    %517 = vector.broadcast %516 : f32 to vector<2x16x18xf32>
    %518 = arith.mulf %517, %183 : vector<2x16x18xf32>
    %519 = arith.addf %492, %518 : vector<2x16x18xf32>
    %c3_i32_209 = arith.constant 3 : i32
    %520 = arith.muli %489, %c3_i32_209 : i32
    %c1_i32_210 = arith.constant 1 : i32
    %521 = arith.addi %520, %c1_i32_210 : i32
    %c3_i32_211 = arith.constant 3 : i32
    %522 = arith.muli %521, %c3_i32_211 : i32
    %c0_i32_212 = arith.constant 0 : i32
    %523 = arith.addi %522, %c0_i32_212 : i32
    %524 = arith.index_cast %523 : i32 to index
    %525 = memref.load %arg2[%524] : memref<72xf32, #tpu.memory_space<smem>>
    %526 = vector.broadcast %525 : f32 to vector<2x16x18xf32>
    %527 = arith.mulf %526, %184 : vector<2x16x18xf32>
    %528 = arith.addf %501, %527 : vector<2x16x18xf32>
    %c3_i32_213 = arith.constant 3 : i32
    %529 = arith.muli %489, %c3_i32_213 : i32
    %c1_i32_214 = arith.constant 1 : i32
    %530 = arith.addi %529, %c1_i32_214 : i32
    %c3_i32_215 = arith.constant 3 : i32
    %531 = arith.muli %530, %c3_i32_215 : i32
    %c1_i32_216 = arith.constant 1 : i32
    %532 = arith.addi %531, %c1_i32_216 : i32
    %533 = arith.index_cast %532 : i32 to index
    %534 = memref.load %arg2[%533] : memref<72xf32, #tpu.memory_space<smem>>
    %535 = vector.broadcast %534 : f32 to vector<2x16x18xf32>
    %536 = arith.mulf %535, %184 : vector<2x16x18xf32>
    %537 = arith.addf %510, %536 : vector<2x16x18xf32>
    %c3_i32_217 = arith.constant 3 : i32
    %538 = arith.muli %489, %c3_i32_217 : i32
    %c1_i32_218 = arith.constant 1 : i32
    %539 = arith.addi %538, %c1_i32_218 : i32
    %c3_i32_219 = arith.constant 3 : i32
    %540 = arith.muli %539, %c3_i32_219 : i32
    %c2_i32_220 = arith.constant 2 : i32
    %541 = arith.addi %540, %c2_i32_220 : i32
    %542 = arith.index_cast %541 : i32 to index
    %543 = memref.load %arg2[%542] : memref<72xf32, #tpu.memory_space<smem>>
    %544 = vector.broadcast %543 : f32 to vector<2x16x18xf32>
    %545 = arith.mulf %544, %184 : vector<2x16x18xf32>
    %546 = arith.addf %519, %545 : vector<2x16x18xf32>
    %c3_i32_221 = arith.constant 3 : i32
    %547 = arith.muli %489, %c3_i32_221 : i32
    %c2_i32_222 = arith.constant 2 : i32
    %548 = arith.addi %547, %c2_i32_222 : i32
    %c3_i32_223 = arith.constant 3 : i32
    %549 = arith.muli %548, %c3_i32_223 : i32
    %c0_i32_224 = arith.constant 0 : i32
    %550 = arith.addi %549, %c0_i32_224 : i32
    %551 = arith.index_cast %550 : i32 to index
    %552 = memref.load %arg2[%551] : memref<72xf32, #tpu.memory_space<smem>>
    %553 = vector.broadcast %552 : f32 to vector<2x16x18xf32>
    %554 = arith.mulf %553, %185 : vector<2x16x18xf32>
    %555 = arith.addf %528, %554 : vector<2x16x18xf32>
    %c3_i32_225 = arith.constant 3 : i32
    %556 = arith.muli %489, %c3_i32_225 : i32
    %c2_i32_226 = arith.constant 2 : i32
    %557 = arith.addi %556, %c2_i32_226 : i32
    %c3_i32_227 = arith.constant 3 : i32
    %558 = arith.muli %557, %c3_i32_227 : i32
    %c1_i32_228 = arith.constant 1 : i32
    %559 = arith.addi %558, %c1_i32_228 : i32
    %560 = arith.index_cast %559 : i32 to index
    %561 = memref.load %arg2[%560] : memref<72xf32, #tpu.memory_space<smem>>
    %562 = vector.broadcast %561 : f32 to vector<2x16x18xf32>
    %563 = arith.mulf %562, %185 : vector<2x16x18xf32>
    %564 = arith.addf %537, %563 : vector<2x16x18xf32>
    %c3_i32_229 = arith.constant 3 : i32
    %565 = arith.muli %489, %c3_i32_229 : i32
    %c2_i32_230 = arith.constant 2 : i32
    %566 = arith.addi %565, %c2_i32_230 : i32
    %c3_i32_231 = arith.constant 3 : i32
    %567 = arith.muli %566, %c3_i32_231 : i32
    %c2_i32_232 = arith.constant 2 : i32
    %568 = arith.addi %567, %c2_i32_232 : i32
    %569 = arith.index_cast %568 : i32 to index
    %570 = memref.load %arg2[%569] : memref<72xf32, #tpu.memory_space<smem>>
    %571 = vector.broadcast %570 : f32 to vector<2x16x18xf32>
    %572 = arith.mulf %571, %185 : vector<2x16x18xf32>
    %573 = arith.addf %546, %572 : vector<2x16x18xf32>
    %574 = vector.extract_strided_slice %555 {offsets = [0, 0, 0], sizes = [2, 16, 16], strides = [1, 1, 1]} : vector<2x16x18xf32> to vector<2x16x16xf32>
    %575 = vector.extract_strided_slice %564 {offsets = [0, 0, 1], sizes = [2, 16, 16], strides = [1, 1, 1]} : vector<2x16x18xf32> to vector<2x16x16xf32>
    %576 = arith.addf %574, %575 : vector<2x16x16xf32>
    %577 = vector.extract_strided_slice %573 {offsets = [0, 0, 2], sizes = [2, 16, 16], strides = [1, 1, 1]} : vector<2x16x18xf32> to vector<2x16x16xf32>
    %578 = arith.addf %576, %577 : vector<2x16x16xf32>
    %579 = arith.mulf %578, %227 : vector<2x16x16xf32>
    %580 = vector.shape_cast %579 : vector<2x16x16xf32> to vector<1x2x16x16xf32>
    %cst_233 = arith.constant dense<0.000000e+00> : vector<1xf32>
    %581 = vector.multi_reduction <add>, %580, %cst_233 [1, 2, 3] : vector<1x2x16x16xf32> to vector<1xf32>
    %582 = vector.shape_cast %581 : vector<1xf32> to vector<1x1x1x1xf32>
    %583 = vector.extract %582[0, 0, 0, 0] : f32 from vector<1x1x1x1xf32>
    %584 = vector.broadcast %583 : f32 to vector<1x1x1xf32>
    %cst_234 = arith.constant 7.812500e-03 : f32
    %585 = vector.broadcast %cst_234 : f32 to vector<1x1x1xf32>
    %586 = arith.mulf %584, %585 : vector<1x1x1xf32>
    %587 = vector.broadcast %586 : vector<1x1x1xf32> to vector<2x16x16xf32>
    %588 = arith.subf %578, %587 : vector<2x16x16xf32>
    %589 = arith.mulf %588, %588 : vector<2x16x16xf32>
    %590 = arith.mulf %589, %227 : vector<2x16x16xf32>
    %591 = vector.shape_cast %590 : vector<2x16x16xf32> to vector<1x2x16x16xf32>
    %cst_235 = arith.constant dense<0.000000e+00> : vector<1xf32>
    %592 = vector.multi_reduction <add>, %591, %cst_235 [1, 2, 3] : vector<1x2x16x16xf32> to vector<1xf32>
    %593 = vector.shape_cast %592 : vector<1xf32> to vector<1x1x1x1xf32>
    %594 = vector.extract %593[0, 0, 0, 0] : f32 from vector<1x1x1x1xf32>
    %595 = vector.broadcast %594 : f32 to vector<1x1x1xf32>
    %cst_236 = arith.constant 7.812500e-03 : f32
    %596 = vector.broadcast %cst_236 : f32 to vector<1x1x1xf32>
    %597 = arith.mulf %595, %596 : vector<1x1x1xf32>
    %598 = arith.index_cast %489 : i32 to index
    %599 = memref.load %arg3[%598] : memref<8xf32, #tpu.memory_space<smem>>
    %cst_237 = arith.constant 9.99999974E-6 : f32
    %600 = vector.broadcast %cst_237 : f32 to vector<1x1x1xf32>
    %601 = arith.addf %597, %600 : vector<1x1x1xf32>
    %602 = math.rsqrt %601 : vector<1x1x1xf32>
    %603 = vector.broadcast %602 : vector<1x1x1xf32> to vector<2x16x16xf32>
    %604 = arith.mulf %588, %603 : vector<2x16x16xf32>
    %605 = vector.broadcast %599 : f32 to vector<2x16x16xf32>
    %606 = arith.mulf %605, %604 : vector<2x16x16xf32>
    %607 = arith.index_cast %489 : i32 to index
    %608 = memref.load %arg4[%607] : memref<8xf32, #tpu.memory_space<smem>>
    %609 = vector.broadcast %608 : f32 to vector<2x16x16xf32>
    %610 = arith.addf %606, %609 : vector<2x16x16xf32>
    %cst_238 = arith.constant 0.000000e+00 : f32
    %611 = vector.broadcast %cst_238 : f32 to vector<2x16x16xf32>
    %612 = arith.cmpf oge, %610, %611 : vector<2x16x16xf32>
    %cst_239 = arith.constant 1.000000e-01 : f32
    %613 = vector.broadcast %cst_239 : f32 to vector<2x16x16xf32>
    %614 = arith.mulf %613, %610 : vector<2x16x16xf32>
    %615 = arith.select %612, %610, %614 : vector<2x16x16xi1>, vector<2x16x16xf32>
    %c0_240 = arith.constant 0 : index
    %c2_241 = arith.constant 2 : index
    %c0_242 = arith.constant 0 : index
    %c0_243 = arith.constant 0 : index
    %616 = vector.load %arg6[%c0_240, %c2_241, %c0_242, %c0_243] : memref<2x4x16x16xf32, #tpu.memory_space<vmem>>, vector<2x1x16x16xf32>
    %617 = vector.shape_cast %616 : vector<2x1x16x16xf32> to vector<2x16x16xf32>
    %618 = vector.shape_cast %615 : vector<2x16x16xf32> to vector<2x1x16x16xf32>
    tpu.vector_store %arg6[%c0_240, %c2_241, %c0_242, %c0_243], %618 {strides = array<i32>} : memref<2x4x16x16xf32, #tpu.memory_space<vmem>>, vector<2x1x16x16xf32>,
    %c3_i32_244 = arith.constant 3 : i32
    %619 = arith.addi %228, %c3_i32_244 : i32
    %cst_245 = arith.constant 0.000000e+00 : f32
    %620 = vector.broadcast %cst_245 : f32 to vector<2x16x18xf32>
    %cst_246 = arith.constant 0.000000e+00 : f32
    %621 = vector.broadcast %cst_246 : f32 to vector<2x16x18xf32>
    %cst_247 = arith.constant 0.000000e+00 : f32
    %622 = vector.broadcast %cst_247 : f32 to vector<2x16x18xf32>
    %c3_i32_248 = arith.constant 3 : i32
    %623 = arith.muli %619, %c3_i32_248 : i32
    %c0_i32_249 = arith.constant 0 : i32
    %624 = arith.addi %623, %c0_i32_249 : i32
    %c3_i32_250 = arith.constant 3 : i32
    %625 = arith.muli %624, %c3_i32_250 : i32
    %c0_i32_251 = arith.constant 0 : i32
    %626 = arith.addi %625, %c0_i32_251 : i32
    %627 = arith.index_cast %626 : i32 to index
    %628 = memref.load %arg2[%627] : memref<72xf32, #tpu.memory_space<smem>>
    %629 = vector.broadcast %628 : f32 to vector<2x16x18xf32>
    %630 = arith.mulf %629, %183 : vector<2x16x18xf32>
    %631 = arith.addf %620, %630 : vector<2x16x18xf32>
    %c3_i32_252 = arith.constant 3 : i32
    %632 = arith.muli %619, %c3_i32_252 : i32
    %c0_i32_253 = arith.constant 0 : i32
    %633 = arith.addi %632, %c0_i32_253 : i32
    %c3_i32_254 = arith.constant 3 : i32
    %634 = arith.muli %633, %c3_i32_254 : i32
    %c1_i32_255 = arith.constant 1 : i32
    %635 = arith.addi %634, %c1_i32_255 : i32
    %636 = arith.index_cast %635 : i32 to index
    %637 = memref.load %arg2[%636] : memref<72xf32, #tpu.memory_space<smem>>
    %638 = vector.broadcast %637 : f32 to vector<2x16x18xf32>
    %639 = arith.mulf %638, %183 : vector<2x16x18xf32>
    %640 = arith.addf %621, %639 : vector<2x16x18xf32>
    %c3_i32_256 = arith.constant 3 : i32
    %641 = arith.muli %619, %c3_i32_256 : i32
    %c0_i32_257 = arith.constant 0 : i32
    %642 = arith.addi %641, %c0_i32_257 : i32
    %c3_i32_258 = arith.constant 3 : i32
    %643 = arith.muli %642, %c3_i32_258 : i32
    %c2_i32_259 = arith.constant 2 : i32
    %644 = arith.addi %643, %c2_i32_259 : i32
    %645 = arith.index_cast %644 : i32 to index
    %646 = memref.load %arg2[%645] : memref<72xf32, #tpu.memory_space<smem>>
    %647 = vector.broadcast %646 : f32 to vector<2x16x18xf32>
    %648 = arith.mulf %647, %183 : vector<2x16x18xf32>
    %649 = arith.addf %622, %648 : vector<2x16x18xf32>
    %c3_i32_260 = arith.constant 3 : i32
    %650 = arith.muli %619, %c3_i32_260 : i32
    %c1_i32_261 = arith.constant 1 : i32
    %651 = arith.addi %650, %c1_i32_261 : i32
    %c3_i32_262 = arith.constant 3 : i32
    %652 = arith.muli %651, %c3_i32_262 : i32
    %c0_i32_263 = arith.constant 0 : i32
    %653 = arith.addi %652, %c0_i32_263 : i32
    %654 = arith.index_cast %653 : i32 to index
    %655 = memref.load %arg2[%654] : memref<72xf32, #tpu.memory_space<smem>>
    %656 = vector.broadcast %655 : f32 to vector<2x16x18xf32>
    %657 = arith.mulf %656, %184 : vector<2x16x18xf32>
    %658 = arith.addf %631, %657 : vector<2x16x18xf32>
    %c3_i32_264 = arith.constant 3 : i32
    %659 = arith.muli %619, %c3_i32_264 : i32
    %c1_i32_265 = arith.constant 1 : i32
    %660 = arith.addi %659, %c1_i32_265 : i32
    %c3_i32_266 = arith.constant 3 : i32
    %661 = arith.muli %660, %c3_i32_266 : i32
    %c1_i32_267 = arith.constant 1 : i32
    %662 = arith.addi %661, %c1_i32_267 : i32
    %663 = arith.index_cast %662 : i32 to index
    %664 = memref.load %arg2[%663] : memref<72xf32, #tpu.memory_space<smem>>
    %665 = vector.broadcast %664 : f32 to vector<2x16x18xf32>
    %666 = arith.mulf %665, %184 : vector<2x16x18xf32>
    %667 = arith.addf %640, %666 : vector<2x16x18xf32>
    %c3_i32_268 = arith.constant 3 : i32
    %668 = arith.muli %619, %c3_i32_268 : i32
    %c1_i32_269 = arith.constant 1 : i32
    %669 = arith.addi %668, %c1_i32_269 : i32
    %c3_i32_270 = arith.constant 3 : i32
    %670 = arith.muli %669, %c3_i32_270 : i32
    %c2_i32_271 = arith.constant 2 : i32
    %671 = arith.addi %670, %c2_i32_271 : i32
    %672 = arith.index_cast %671 : i32 to index
    %673 = memref.load %arg2[%672] : memref<72xf32, #tpu.memory_space<smem>>
    %674 = vector.broadcast %673 : f32 to vector<2x16x18xf32>
    %675 = arith.mulf %674, %184 : vector<2x16x18xf32>
    %676 = arith.addf %649, %675 : vector<2x16x18xf32>
    %c3_i32_272 = arith.constant 3 : i32
    %677 = arith.muli %619, %c3_i32_272 : i32
    %c2_i32_273 = arith.constant 2 : i32
    %678 = arith.addi %677, %c2_i32_273 : i32
    %c3_i32_274 = arith.constant 3 : i32
    %679 = arith.muli %678, %c3_i32_274 : i32
    %c0_i32_275 = arith.constant 0 : i32
    %680 = arith.addi %679, %c0_i32_275 : i32
    %681 = arith.index_cast %680 : i32 to index
    %682 = memref.load %arg2[%681] : memref<72xf32, #tpu.memory_space<smem>>
    %683 = vector.broadcast %682 : f32 to vector<2x16x18xf32>
    %684 = arith.mulf %683, %185 : vector<2x16x18xf32>
    %685 = arith.addf %658, %684 : vector<2x16x18xf32>
    %c3_i32_276 = arith.constant 3 : i32
    %686 = arith.muli %619, %c3_i32_276 : i32
    %c2_i32_277 = arith.constant 2 : i32
    %687 = arith.addi %686, %c2_i32_277 : i32
    %c3_i32_278 = arith.constant 3 : i32
    %688 = arith.muli %687, %c3_i32_278 : i32
    %c1_i32_279 = arith.constant 1 : i32
    %689 = arith.addi %688, %c1_i32_279 : i32
    %690 = arith.index_cast %689 : i32 to index
    %691 = memref.load %arg2[%690] : memref<72xf32, #tpu.memory_space<smem>>
    %692 = vector.broadcast %691 : f32 to vector<2x16x18xf32>
    %693 = arith.mulf %692, %185 : vector<2x16x18xf32>
    %694 = arith.addf %667, %693 : vector<2x16x18xf32>
    %c3_i32_280 = arith.constant 3 : i32
    %695 = arith.muli %619, %c3_i32_280 : i32
    %c2_i32_281 = arith.constant 2 : i32
    %696 = arith.addi %695, %c2_i32_281 : i32
    %c3_i32_282 = arith.constant 3 : i32
    %697 = arith.muli %696, %c3_i32_282 : i32
    %c2_i32_283 = arith.constant 2 : i32
    %698 = arith.addi %697, %c2_i32_283 : i32
    %699 = arith.index_cast %698 : i32 to index
    %700 = memref.load %arg2[%699] : memref<72xf32, #tpu.memory_space<smem>>
    %701 = vector.broadcast %700 : f32 to vector<2x16x18xf32>
    %702 = arith.mulf %701, %185 : vector<2x16x18xf32>
    %703 = arith.addf %676, %702 : vector<2x16x18xf32>
    %704 = vector.extract_strided_slice %685 {offsets = [0, 0, 0], sizes = [2, 16, 16], strides = [1, 1, 1]} : vector<2x16x18xf32> to vector<2x16x16xf32>
    %705 = vector.extract_strided_slice %694 {offsets = [0, 0, 1], sizes = [2, 16, 16], strides = [1, 1, 1]} : vector<2x16x18xf32> to vector<2x16x16xf32>
    %706 = arith.addf %704, %705 : vector<2x16x16xf32>
    %707 = vector.extract_strided_slice %703 {offsets = [0, 0, 2], sizes = [2, 16, 16], strides = [1, 1, 1]} : vector<2x16x18xf32> to vector<2x16x16xf32>
    %708 = arith.addf %706, %707 : vector<2x16x16xf32>
    %709 = arith.mulf %708, %227 : vector<2x16x16xf32>
    %710 = vector.shape_cast %709 : vector<2x16x16xf32> to vector<1x2x16x16xf32>
    %cst_284 = arith.constant dense<0.000000e+00> : vector<1xf32>
    %711 = vector.multi_reduction <add>, %710, %cst_284 [1, 2, 3] : vector<1x2x16x16xf32> to vector<1xf32>
    %712 = vector.shape_cast %711 : vector<1xf32> to vector<1x1x1x1xf32>
    %713 = vector.extract %712[0, 0, 0, 0] : f32 from vector<1x1x1x1xf32>
    %714 = vector.broadcast %713 : f32 to vector<1x1x1xf32>
    %cst_285 = arith.constant 7.812500e-03 : f32
    %715 = vector.broadcast %cst_285 : f32 to vector<1x1x1xf32>
    %716 = arith.mulf %714, %715 : vector<1x1x1xf32>
    %717 = vector.broadcast %716 : vector<1x1x1xf32> to vector<2x16x16xf32>
    %718 = arith.subf %708, %717 : vector<2x16x16xf32>
    %719 = arith.mulf %718, %718 : vector<2x16x16xf32>
    %720 = arith.mulf %719, %227 : vector<2x16x16xf32>
    %721 = vector.shape_cast %720 : vector<2x16x16xf32> to vector<1x2x16x16xf32>
    %cst_286 = arith.constant dense<0.000000e+00> : vector<1xf32>
    %722 = vector.multi_reduction <add>, %721, %cst_286 [1, 2, 3] : vector<1x2x16x16xf32> to vector<1xf32>
    %723 = vector.shape_cast %722 : vector<1xf32> to vector<1x1x1x1xf32>
    %724 = vector.extract %723[0, 0, 0, 0] : f32 from vector<1x1x1x1xf32>
    %725 = vector.broadcast %724 : f32 to vector<1x1x1xf32>
    %cst_287 = arith.constant 7.812500e-03 : f32
    %726 = vector.broadcast %cst_287 : f32 to vector<1x1x1xf32>
    %727 = arith.mulf %725, %726 : vector<1x1x1xf32>
    %728 = arith.index_cast %619 : i32 to index
    %729 = memref.load %arg3[%728] : memref<8xf32, #tpu.memory_space<smem>>
    %cst_288 = arith.constant 9.99999974E-6 : f32
    %730 = vector.broadcast %cst_288 : f32 to vector<1x1x1xf32>
    %731 = arith.addf %727, %730 : vector<1x1x1xf32>
    %732 = math.rsqrt %731 : vector<1x1x1xf32>
    %733 = vector.broadcast %732 : vector<1x1x1xf32> to vector<2x16x16xf32>
    %734 = arith.mulf %718, %733 : vector<2x16x16xf32>
    %735 = vector.broadcast %729 : f32 to vector<2x16x16xf32>
    %736 = arith.mulf %735, %734 : vector<2x16x16xf32>
    %737 = arith.index_cast %619 : i32 to index
    %738 = memref.load %arg4[%737] : memref<8xf32, #tpu.memory_space<smem>>
    %739 = vector.broadcast %738 : f32 to vector<2x16x16xf32>
    %740 = arith.addf %736, %739 : vector<2x16x16xf32>
    %cst_289 = arith.constant 0.000000e+00 : f32
    %741 = vector.broadcast %cst_289 : f32 to vector<2x16x16xf32>
    %742 = arith.cmpf oge, %740, %741 : vector<2x16x16xf32>
    %cst_290 = arith.constant 1.000000e-01 : f32
    %743 = vector.broadcast %cst_290 : f32 to vector<2x16x16xf32>
    %744 = arith.mulf %743, %740 : vector<2x16x16xf32>
    %745 = arith.select %742, %740, %744 : vector<2x16x16xi1>, vector<2x16x16xf32>
    %c0_291 = arith.constant 0 : index
    %c3_292 = arith.constant 3 : index
    %c0_293 = arith.constant 0 : index
    %c0_294 = arith.constant 0 : index
    %746 = vector.load %arg6[%c0_291, %c3_292, %c0_293, %c0_294] : memref<2x4x16x16xf32, #tpu.memory_space<vmem>>, vector<2x1x16x16xf32>
    %747 = vector.shape_cast %746 : vector<2x1x16x16xf32> to vector<2x16x16xf32>
    %748 = vector.shape_cast %745 : vector<2x16x16xf32> to vector<2x1x16x16xf32>
    tpu.vector_store %arg6[%c0_291, %c3_292, %c0_293, %c0_294], %748 {strides = array<i32>} : memref<2x4x16x16xf32, #tpu.memory_space<vmem>>, vector<2x1x16x16xf32>,
    return
  }
  func.func @transform_0(%arg0: i32) -> i32 {
    %c0_i32 = arith.constant 0 : i32
    %c0_i32_0 = arith.constant 0 : i32
    return %c0_i32 : i32
  }
  func.func @transform_1(%arg0: i32) -> i32 {
    %c0_i32 = arith.constant 0 : i32
    %c0_i32_0 = arith.constant 0 : i32
    return %c0_i32 : i32
  }
  func.func @transform_2(%arg0: i32) -> i32 {
    %c0_i32 = arith.constant 0 : i32
    %c0_i32_0 = arith.constant 0 : i32
    return %c0_i32 : i32
  }
  func.func @transform_3(%arg0: i32) -> i32 {
    %c0_i32 = arith.constant 0 : i32
    %c0_i32_0 = arith.constant 0 : i32
    return %c0_i32 : i32
  }
  func.func @transform_4(%arg0: i32) -> (i32, i32, i32, i32) {
    %c0_i32 = arith.constant 0 : i32
    %c0_i32_0 = arith.constant 0 : i32
    %c0_i32_1 = arith.constant 0 : i32
    %c0_i32_2 = arith.constant 0 : i32
    %c0_i32_3 = arith.constant 0 : i32
    return %c0_i32, %c0_i32_0, %c0_i32_1, %c0_i32_2 : i32, i32, i32, i32
  }
  func.func @transform_5(%arg0: i32) -> (i32, i32, i32, i32) {
    %c0_i32 = arith.constant 0 : i32
    %c0_i32_0 = arith.constant 0 : i32
    %c0_i32_1 = arith.constant 0 : i32
    %c0_i32_2 = arith.constant 0 : i32
    return %c0_i32, %arg0, %c0_i32_0, %c0_i32_1 : i32, i32, i32, i32
  }
}

</mosaic_0001>

<llo_original>
// kernel: tempro_spacial_forward.1
$region0: #{tempro_spacial_forward.1}
  #allocation0 [shape = 'u32[]', space=smem, size = 0x4, offset = 0x4, fixed_abs, tag = 'smem constant byte address 0x4 - core index']
  #allocation1 [shape = 'u32[144,128]{1,0:T(1,128)}', space=vmem, size = 0x12000, scoped, tag = 'internal scratch']
  #allocation2 [shape = 'f32[2,4,18,18]{3,2,1,0:T(8,128)}', space=vmem, size = 0x18000, scoped, tag = 'scratch operand']
  #allocation3 [shape = 'f32[2,18,18]{2,1,0:T(8,128)}', space=vmem, size = 0x6000, scoped, tag = 'scratch operand']
  %s0 = inlined_call_operand.vmem [shape: f32[36], index: 0, kind: input, shape index: {}]
  %s1 = inlined_call_operand.vmem [shape: f32[72], index: 1, kind: input, shape index: {}]
  %s2 = inlined_call_operand.vmem [shape: f32[8], index: 2, kind: input, shape index: {}]
  %s3 = inlined_call_operand.vmem [shape: f32[8], index: 3, kind: input, shape index: {}]
  %s4 = inlined_call_operand.hbm [shape: f32[2,4,16,16], index: 4, kind: input, shape index: {}]
  %s5 = inlined_call_operand.vmem [shape: f32[2,8,16,16], index: 5, kind: output, shape index: {}]
  %s6 = sld [smem:[#allocation0]]
  $region107: #{tempro_spacial_forward.1} parent=0
    _
  %s8 = ssub.s32 1, %s6
  %s9 = scalar_select 0, %s8, %s6
  $region1: #{tempro_spacial_forward.1} parent=0
    #allocation4 [shape = 'u8[512]{0}', space=smem, size = 0x200, scoped, tag = 'input window, operand 0, single buffered']
    #allocation5 [shape = 's32[2]{0}', space=sflag, size = 0x8, scoped, tag = 'scoped memory for tempro_spacial_forward.1']
    #allocation6 [shape = 's32[2]{0}', space=sflag, size = 0x8, scoped, tag = 'scoped memory for tempro_spacial_forward.1']
    #allocation7 [shape = 'u8[512]{0}', space=smem, size = 0x200, scoped, tag = 'input window, operand 1, single buffered']
    #allocation8 [shape = 's32[1]{0}', space=sflag, size = 0x4, scoped, tag = 'scoped memory for tempro_spacial_forward.1']
    #allocation9 [shape = 'u8[512]{0}', space=smem, size = 0x200, scoped, tag = 'input window, operand 2, single buffered']
    #allocation10 [shape = 'u8[512]{0}', space=smem, size = 0x200, scoped, tag = 'input window, operand 3, single buffered']
    #allocation11 [shape = 's32[1]{0}', space=sflag, size = 0x4, scoped, tag = 'scoped memory for tempro_spacial_forward.1']
    #allocation12 [shape = 'u8[65536]{0}', space=vmem, size = 0x10000, scoped, tag = 'input window, operand 4, single buffered']
    #allocation13 [shape = 'u8[131072]{0}', space=vmem, size = 0x20000, scoped, tag = 'output window, operand 0']
    %10 = vsyncpa [#allocation6], 0
    %11 = vsyncpa [#allocation8], 0
    %12 = vsyncpa [#allocation11], 0
    %13 = vsyncpa [#allocation5], 0
    loop: start=0, step=1, limit=4
    $region2: #{tempro_spacial_forward.1} parent=1 // loop_pre_header
      _
    $region3: #{tempro_spacial_forward.1} parent=1 // loop_header
      %s15 = sphi 0, %s19
      %p16 = scmp.ge.s32.totalorder %s15, 4
      %s23 = sphi 0, %s23
      %s25 = sphi 0, %s23
      %s26 = sphi 0, %s25
      %s40 = sphi 0, %s26
      %s44 = sphi 0, %s44
      %s46 = sphi 0, %s44
      %s47 = sphi 0, %s46
      %s61 = sphi 0, %s47
      %s65 = sphi 0, %s65
      %s67 = sphi 0, %s65
      %s68 = sphi 0, %s67
      %s82 = sphi 0, %s68
      %s86 = sphi 0, %s86
      %s88 = sphi 0, %s86
      %s89 = sphi 0, %s88
      %s103 = sphi 0, %s89
      %s107 = sphi 0, %s107
      %s109 = sphi 0, %s107
      %s110 = sphi 0, %s109
      %s124 = sphi 0, %s110
      %s130 = sphi 0, %s132
      %s133 = sphi 0, %s130
      %s134 = sphi 0, %s133
      %s150 = sphi 0, %s134
    $region4: #{tempro_spacial_forward.1} parent=1 // loop_header_branch
      %18 = sbr.rel (%p16) target = $region8
    $region5: #{tempro_spacial_forward.1} parent=1 // loop_body
      %s20 = ssub.s32 %s15, 1
      %s21 = ssub.s32 %s15, 2
      %s22 = sadd.s32 %s15, 1
      %s24 = sadd.s32 %s23, 1
      %p27 = scmp.eq.s32.totalorder %s15, 1
      %p28 = scmp.ne.s32.totalorder %s23, %s25
      %p29 = scmp.eq.s32.totalorder %s15, 0
      %p30 = por %p28, %p29
      %p31 = scmp.ne.s32.totalorder %s23, %s25
      %p32 = scmp.eq.s32.totalorder %s20, 1
      %p33 = por %p31, %p32
      %p34 = scmp.ne.s32.totalorder %s25, %s26
      %p35 = scmp.eq.s32.totalorder %s20, 0
      %p36 = por %p34, %p35
      %p37 = scmp.ne.s32.totalorder %s25, %s26
      %p38 = scmp.eq.s32.totalorder %s21, 1
      %p39 = por %p37, %p38
      %p41 = scmp.ne.s32.totalorder %s26, %s40
      %p42 = scmp.eq.s32.totalorder %s21, 0
      %p43 = por %p41, %p42
      %s45 = sadd.s32 %s44, 1
      %p48 = scmp.eq.s32.totalorder %s15, 1
      %p49 = scmp.ne.s32.totalorder %s44, %s46
      %p50 = scmp.eq.s32.totalorder %s15, 0
      %p51 = por %p49, %p50
      %p52 = scmp.ne.s32.totalorder %s44, %s46
      %p53 = scmp.eq.s32.totalorder %s20, 1
      %p54 = por %p52, %p53
      %p55 = scmp.ne.s32.totalorder %s46, %s47
      %p56 = scmp.eq.s32.totalorder %s20, 0
      %p57 = por %p55, %p56
      %p58 = scmp.ne.s32.totalorder %s46, %s47
      %p59 = scmp.eq.s32.totalorder %s21, 1
      %p60 = por %p58, %p59
      %p62 = scmp.ne.s32.totalorder %s47, %s61
      %p63 = scmp.eq.s32.totalorder %s21, 0
      %p64 = por %p62, %p63
      %s66 = sadd.s32 %s65, 1
      %p69 = scmp.eq.s32.totalorder %s15, 1
      %p70 = scmp.ne.s32.totalorder %s65, %s67
      %p71 = scmp.eq.s32.totalorder %s15, 0
      %p72 = por %p70, %p71
      %p73 = scmp.ne.s32.totalorder %s65, %s67
      %p74 = scmp.eq.s32.totalorder %s20, 1
      %p75 = por %p73, %p74
      %p76 = scmp.ne.s32.totalorder %s67, %s68
      %p77 = scmp.eq.s32.totalorder %s20, 0
      %p78 = por %p76, %p77
      %p79 = scmp.ne.s32.totalorder %s67, %s68
      %p80 = scmp.eq.s32.totalorder %s21, 1
      %p81 = por %p79, %p80
      %p83 = scmp.ne.s32.totalorder %s68, %s82
      %p84 = scmp.eq.s32.totalorder %s21, 0
      %p85 = por %p83, %p84
      %s87 = sadd.s32 %s86, 1
      %p90 = scmp.eq.s32.totalorder %s15, 1
      %p91 = scmp.ne.s32.totalorder %s86, %s88
      %p92 = scmp.eq.s32.totalorder %s15, 0
      %p93 = por %p91, %p92
      %p94 = scmp.ne.s32.totalorder %s86, %s88
      %p95 = scmp.eq.s32.totalorder %s20, 1
      %p96 = por %p94, %p95
      %p97 = scmp.ne.s32.totalorder %s88, %s89
      %p98 = scmp.eq.s32.totalorder %s20, 0
      %p99 = por %p97, %p98
      %p100 = scmp.ne.s32.totalorder %s88, %s89
      %p101 = scmp.eq.s32.totalorder %s21, 1
      %p102 = por %p100, %p101
      %p104 = scmp.ne.s32.totalorder %s89, %s103
      %p105 = scmp.eq.s32.totalorder %s21, 0
      %p106 = por %p104, %p105
      %s108 = sadd.s32 %s107, 1
      %p111 = scmp.eq.s32.totalorder %s15, 1
      %p112 = scmp.ne.s32.totalorder %s107, %s109
      %p113 = scmp.eq.s32.totalorder %s15, 0
      %p114 = por %p112, %p113
      %p115 = scmp.ne.s32.totalorder %s107, %s109
      %p116 = scmp.eq.s32.totalorder %s20, 1
      %p117 = por %p115, %p116
      %p118 = scmp.ne.s32.totalorder %s109, %s110
      %p119 = scmp.eq.s32.totalorder %s20, 0
      %p120 = por %p118, %p119
      %p121 = scmp.ne.s32.totalorder %s109, %s110
      %p122 = scmp.eq.s32.totalorder %s21, 1
      %p123 = por %p121, %p122
      %p125 = scmp.ne.s32.totalorder %s110, %s124
      %p126 = scmp.eq.s32.totalorder %s21, 0
      %p127 = por %p125, %p126
      %s128 = ssub.s32 %s15, %s22
      %p129 = scmp.eq.s32.totalorder %s128, 0
      %s131 = sadd.s32 %s130, 1
      %s132 = scalar_select %p129, %s130, %s131
      %p135 = pneg %p129
      %p136 = scmp.eq.s32.totalorder %s15, 1
      %p137 = por %p135, %p136
      %p138 = scmp.ne.s32.totalorder %s130, %s133
      %p139 = scmp.eq.s32.totalorder %s15, 0
      %p140 = por %p138, %p139
      %p141 = scmp.ne.s32.totalorder %s130, %s133
      %p142 = scmp.eq.s32.totalorder %s20, 1
      %p143 = por %p141, %p142
      %p144 = scmp.ne.s32.totalorder %s133, %s134
      %p145 = scmp.eq.s32.totalorder %s20, 0
      %p146 = por %p144, %p145
      %p147 = scmp.ne.s32.totalorder %s133, %s134
      %p148 = scmp.eq.s32.totalorder %s21, 1
      %p149 = por %p147, %p148
      %p151 = scmp.ne.s32.totalorder %s134, %s150
      %p152 = scmp.eq.s32.totalorder %s21, 0
      %p153 = por %p151, %p152
      %p154 = scmp.le.s32.totalorder 1, %s15
      %p155 = scmp.lt.s32.totalorder %s15, 3
      %p156 = pnand %p154, %p155
      %p157 = pneg %p156
      // Predicated region
      $region9: #{tempro_spacial_forward.1} parent=5 // pred_check
        _
      $region10: #{tempro_spacial_forward.1} parent=5 // pred_check_branch
        %159 = sbr.rel (%p156) target = $region12
      $region11: #{tempro_spacial_forward.1} parent=5 // pred_region
        %s160 = ssub.s32 %s15, 1
        // Predicated region
        $region13: #{tempro_spacial_forward.1} parent=11 // pred_check
          %p161 = pneg %p36
        $region14: #{tempro_spacial_forward.1} parent=11 // pred_check_branch
          %163 = sbr.rel (%p161) target = $region16
        $region15: #{tempro_spacial_forward.1} parent=11 // pred_region
          %s165 = ssub.s32 16, 16
          %166 = vsyncadd [#allocation6], %s165
          %s168 = sshll.u32 %s0, 4
          %s169 = int_to_ptr.vmem [resolvable:$true] %s168
          %171 = dma.vmem_to_smem %s169, 16, [#allocation4], [#allocation6]
        $region16: #{tempro_spacial_forward.1} parent=11 // pred_fallthru
          _
        // Predicated region
        $region17: #{tempro_spacial_forward.1} parent=11 // pred_check
          %p172 = pneg %p57
        $region18: #{tempro_spacial_forward.1} parent=11 // pred_check_branch
          %174 = sbr.rel (%p172) target = $region20
        $region19: #{tempro_spacial_forward.1} parent=11 // pred_region
          %s176 = ssub.s32 16, 16
          %177 = vsyncadd [#allocation8], %s176
          %s179 = sshll.u32 %s1, 4
          %s180 = int_to_ptr.vmem [resolvable:$true] %s179
          %182 = dma.vmem_to_smem %s180, 16, [#allocation7], [#allocation8]
        $region20: #{tempro_spacial_forward.1} parent=11 // pred_fallthru
          _
        // Predicated region
        $region21: #{tempro_spacial_forward.1} parent=11 // pred_check
          %p183 = pneg %p78
        $region22: #{tempro_spacial_forward.1} parent=11 // pred_check_branch
          %185 = sbr.rel (%p183) target = $region24
        $region23: #{tempro_spacial_forward.1} parent=11 // pred_region
          %s187 = ssub.s32 16, 16
          %188 = vsyncadd [#allocation8], %s187
          %s190 = sshll.u32 %s2, 4
          %s191 = int_to_ptr.vmem [resolvable:$true] %s190
          %193 = dma.vmem_to_smem %s191, 16, [#allocation9], [#allocation8]
        $region24: #{tempro_spacial_forward.1} parent=11 // pred_fallthru
          _
        // Predicated region
        $region25: #{tempro_spacial_forward.1} parent=11 // pred_check
          %p194 = pneg %p99
        $region26: #{tempro_spacial_forward.1} parent=11 // pred_check_branch
          %196 = sbr.rel (%p194) target = $region28
        $region27: #{tempro_spacial_forward.1} parent=11 // pred_region
          %s198 = ssub.s32 16, 16
          %199 = vsyncadd [#allocation11], %s198
          %s201 = sshll.u32 %s3, 4
          %s202 = int_to_ptr.vmem [resolvable:$true] %s201
          %204 = dma.vmem_to_smem %s202, 16, [#allocation10], [#allocation11]
        $region28: #{tempro_spacial_forward.1} parent=11 // pred_fallthru
          _
        // Predicated region
        $region29: #{tempro_spacial_forward.1} parent=11 // pred_check
          %p205 = pneg %p120
        $region30: #{tempro_spacial_forward.1} parent=11 // pred_check_branch
          %207 = sbr.rel (%p205) target = $region32
        $region31: #{tempro_spacial_forward.1} parent=11 // pred_region
          %s209 = ssub.s32 2048, 2048
          %210 = vsyncadd [#allocation5], %s209
          %s211 = sshll.u32 [#allocation12], 4
          %s212 = int_to_ptr.vmem [resolvable:$true] %s211
          %217 = dma.hbm_to_vmem [thread:$0]  %s4, 2048, %s212, [#allocation5], 128, 128, 8
        $region32: #{tempro_spacial_forward.1} parent=11 // pred_fallthru
          _
      $region12: #{tempro_spacial_forward.1} parent=5 // pred_fallthru
        _
      %p218 = scmp.lt.s32.totalorder %s15, 2
      // Predicated region
      $region33: #{tempro_spacial_forward.1} parent=5 // pred_check
        %p219 = pneg %p218
      $region34: #{tempro_spacial_forward.1} parent=5 // pred_check_branch
        %221 = sbr.rel (%p219) target = $region36
      $region35: #{tempro_spacial_forward.1} parent=5 // pred_region
        _
      $region36: #{tempro_spacial_forward.1} parent=5 // pred_fallthru
        _
      %p222 = scmp.le.s32.totalorder 1, %s15
      %p223 = scmp.lt.s32.totalorder %s15, 3
      %p224 = pnand %p222, %p223
      %p225 = pneg %p224
      // Predicated region
      $region37: #{tempro_spacial_forward.1} parent=5 // pred_check
        _
      $region38: #{tempro_spacial_forward.1} parent=5 // pred_check_branch
        %227 = sbr.rel (%p224) target = $region40
      $region39: #{tempro_spacial_forward.1} parent=5 // pred_region
        %s228 = ssub.s32 %s15, 1
        // Predicated region
        $region41: #{tempro_spacial_forward.1} parent=39 // pred_check
          %p229 = pneg %p36
        $region42: #{tempro_spacial_forward.1} parent=39 // pred_check_branch
          %231 = sbr.rel (%p229) target = $region44
        $region43: #{tempro_spacial_forward.1} parent=39 // pred_region
          %232 = dma.done [#allocation6], 16
        $region44: #{tempro_spacial_forward.1} parent=39 // pred_fallthru
          _
        // Predicated region
        $region45: #{tempro_spacial_forward.1} parent=39 // pred_check
          %p233 = pneg %p57
        $region46: #{tempro_spacial_forward.1} parent=39 // pred_check_branch
          %235 = sbr.rel (%p233) target = $region48
        $region47: #{tempro_spacial_forward.1} parent=39 // pred_region
          %236 = dma.done [#allocation8], 16
        $region48: #{tempro_spacial_forward.1} parent=39 // pred_fallthru
          _
        // Predicated region
        $region49: #{tempro_spacial_forward.1} parent=39 // pred_check
          %p237 = pneg %p78
        $region50: #{tempro_spacial_forward.1} parent=39 // pred_check_branch
          %239 = sbr.rel (%p237) target = $region52
        $region51: #{tempro_spacial_forward.1} parent=39 // pred_region
          %240 = dma.done [#allocation8], 16
        $region52: #{tempro_spacial_forward.1} parent=39 // pred_fallthru
          _
        // Predicated region
        $region53: #{tempro_spacial_forward.1} parent=39 // pred_check
          %p241 = pneg %p99
        $region54: #{tempro_spacial_forward.1} parent=39 // pred_check_branch
          %243 = sbr.rel (%p241) target = $region56
        $region55: #{tempro_spacial_forward.1} parent=39 // pred_region
          %244 = dma.done [#allocation11], 16
        $region56: #{tempro_spacial_forward.1} parent=39 // pred_fallthru
          _
        // Predicated region
        $region57: #{tempro_spacial_forward.1} parent=39 // pred_check
          %p245 = pneg %p120
        $region58: #{tempro_spacial_forward.1} parent=39 // pred_check_branch
          %247 = sbr.rel (%p245) target = $region60
        $region59: #{tempro_spacial_forward.1} parent=39 // pred_region
          %248 = dma.done [#allocation5], 2048
        $region60: #{tempro_spacial_forward.1} parent=39 // pred_fallthru
          _
        %249 = sfence
        %p250 = pneg %p36
        %p251 = pneg %p33
        %p252 = pneg %p57
        %p253 = pneg %p54
        %p254 = pneg %p78
        %p255 = pneg %p75
        %p256 = pneg %p99
        %p257 = pneg %p96
        %p258 = pneg %p120
        %p259 = pneg %p117
        %p260 = pneg %p146
        %p261 = pneg %p143
        %s262 = sand.u32 %s133, 1
        %s263 = sand.u32 %s133, 1
        %s264 = smul.addr %s263, 128
        %s265 = scalar_lea.vmem [#allocation13], %s264
        %s266 = smul.u32 4, %s20
        %vm267 = vcmask 146432
        %268 = vst.msk [vmem:[#allocation2] sm:$0xff] %vm267, 0.0
        %269 = vst.msk [vmem:[#allocation2 + $0x8] sm:$0xff] %vm267, 0.0
        %vm270 = vcmask 140288
        %271 = vst.msk [vmem:[#allocation2 + $0x10] sm:$0x3] %vm270, 0.0
        %272 = vst.msk [vmem:[#allocation2 + $0x18] sm:$0xff] %vm267, 0.0
        %273 = vst.msk [vmem:[#allocation2 + $0x20] sm:$0xff] %vm267, 0.0
        %274 = vst.msk [vmem:[#allocation2 + $0x28] sm:$0x3] %vm270, 0.0
        %275 = vst.msk [vmem:[#allocation2 + $0x30] sm:$0xff] %vm267, 0.0
        %276 = vst.msk [vmem:[#allocation2 + $0x38] sm:$0xff] %vm267, 0.0
        %277 = vst.msk [vmem:[#allocation2 + $0x40] sm:$0x3] %vm270, 0.0
        %278 = vst.msk [vmem:[#allocation2 + $0x48] sm:$0xff] %vm267, 0.0
        %279 = vst.msk [vmem:[#allocation2 + $0x50] sm:$0xff] %vm267, 0.0
        %280 = vst.msk [vmem:[#allocation2 + $0x58] sm:$0x3] %vm270, 0.0
        %281 = vst.msk [vmem:[#allocation2 + $0x60] sm:$0xff] %vm267, 0.0
        %282 = vst.msk [vmem:[#allocation2 + $0x68] sm:$0xff] %vm267, 0.0
        %283 = vst.msk [vmem:[#allocation2 + $0x70] sm:$0x3] %vm270, 0.0
        %284 = vst.msk [vmem:[#allocation2 + $0x78] sm:$0xff] %vm267, 0.0
        %285 = vst.msk [vmem:[#allocation2 + $0x80] sm:$0xff] %vm267, 0.0
        %286 = vst.msk [vmem:[#allocation2 + $0x88] sm:$0x3] %vm270, 0.0
        %287 = vst.msk [vmem:[#allocation2 + $0x90] sm:$0xff] %vm267, 0.0
        %288 = vst.msk [vmem:[#allocation2 + $0x98] sm:$0xff] %vm267, 0.0
        %289 = vst.msk [vmem:[#allocation2 + $0xa0] sm:$0x3] %vm270, 0.0
        %290 = vst.msk [vmem:[#allocation2 + $0xa8] sm:$0xff] %vm267, 0.0
        %291 = vst.msk [vmem:[#allocation2 + $0xb0] sm:$0xff] %vm267, 0.0
        %292 = vst.msk [vmem:[#allocation2 + $0xb8] sm:$0x3] %vm270, 0.0
        %v293 = vld [vmem:[#allocation12] sm:$0xff]
        %v294 = vld [vmem:[#allocation12 + $0x8] sm:$0xff]
        %v295 = vld [vmem:[#allocation12 + $0x10] sm:$0xff]
        %v296 = vld [vmem:[#allocation12 + $0x18] sm:$0xff]
        %v297 = vld [vmem:[#allocation12 + $0x20] sm:$0xff]
        %v298 = vld [vmem:[#allocation12 + $0x28] sm:$0xff]
        %v299 = vld [vmem:[#allocation12 + $0x30] sm:$0xff]
        %v300 = vld [vmem:[#allocation12 + $0x38] sm:$0xff]
        %v301 = vld [vmem:[#allocation12 + $0x40] sm:$0xff]
        %v302 = vld [vmem:[#allocation12 + $0x48] sm:$0xff]
        %v303 = vld [vmem:[#allocation12 + $0x50] sm:$0xff]
        %v304 = vld [vmem:[#allocation12 + $0x58] sm:$0xff]
        %v305 = vld [vmem:[#allocation12 + $0x60] sm:$0xff]
        %v306 = vld [vmem:[#allocation12 + $0x68] sm:$0xff]
        %v307 = vld [vmem:[#allocation12 + $0x70] sm:$0xff]
        %v308 = vld [vmem:[#allocation12 + $0x78] sm:$0xff]
        %325 = vrot.lane.b32.xlu0 %v293, 1
        %v326 = vpop.permute.xlu0 %325
        %327 = vrot.lane.b32.xlu0 %v294, 1
        %v328 = vpop.permute.xlu0 %327
        %329 = vrot.lane.b32.xlu0 %v295, 1
        %v330 = vpop.permute.xlu0 %329
        %331 = vrot.lane.b32.xlu0 %v296, 1
        %v332 = vpop.permute.xlu0 %331
        %333 = vrot.lane.b32.xlu0 %v297, 1
        %v334 = vpop.permute.xlu0 %333
        %335 = vrot.lane.b32.xlu0 %v298, 1
        %v336 = vpop.permute.xlu0 %335
        %337 = vrot.lane.b32.xlu0 %v299, 1
        %v338 = vpop.permute.xlu0 %337
        %339 = vrot.lane.b32.xlu0 %v300, 1
        %v340 = vpop.permute.xlu0 %339
        %341 = vrot.lane.b32.xlu0 %v301, 1
        %v342 = vpop.permute.xlu0 %341
        %343 = vrot.lane.b32.xlu0 %v302, 1
        %v344 = vpop.permute.xlu0 %343
        %345 = vrot.lane.b32.xlu0 %v303, 1
        %v346 = vpop.permute.xlu0 %345
        %347 = vrot.lane.b32.xlu0 %v304, 1
        %v348 = vpop.permute.xlu0 %347
        %349 = vrot.lane.b32.xlu0 %v305, 1
        %v350 = vpop.permute.xlu0 %349
        %351 = vrot.lane.b32.xlu0 %v306, 1
        %v352 = vpop.permute.xlu0 %351
        %353 = vrot.lane.b32.xlu0 %v307, 1
        %v354 = vpop.permute.xlu0 %353
        %355 = vrot.lane.b32.xlu0 %v308, 1
        %v356 = vpop.permute.xlu0 %355
        %vm373 = vcmask 138248
        %374 = vst.msk [vmem:[#allocation2 + $0x1] sm:$0xff] %vm373, %v326
        %375 = vst.msk [vmem:[#allocation2 + $0x9] sm:$0xff] %vm373, %v328
        %376 = vst.msk [vmem:[#allocation2 + $0x19] sm:$0xff] %vm373, %v330
        %377 = vst.msk [vmem:[#allocation2 + $0x21] sm:$0xff] %vm373, %v332
        %378 = vst.msk [vmem:[#allocation2 + $0x31] sm:$0xff] %vm373, %v334
        %379 = vst.msk [vmem:[#allocation2 + $0x39] sm:$0xff] %vm373, %v336
        %380 = vst.msk [vmem:[#allocation2 + $0x49] sm:$0xff] %vm373, %v338
        %381 = vst.msk [vmem:[#allocation2 + $0x51] sm:$0xff] %vm373, %v340
        %382 = vst.msk [vmem:[#allocation2 + $0x61] sm:$0xff] %vm373, %v342
        %383 = vst.msk [vmem:[#allocation2 + $0x69] sm:$0xff] %vm373, %v344
        %384 = vst.msk [vmem:[#allocation2 + $0x79] sm:$0xff] %vm373, %v346
        %385 = vst.msk [vmem:[#allocation2 + $0x81] sm:$0xff] %vm373, %v348
        %386 = vst.msk [vmem:[#allocation2 + $0x91] sm:$0xff] %vm373, %v350
        %387 = vst.msk [vmem:[#allocation2 + $0x99] sm:$0xff] %vm373, %v352
        %388 = vst.msk [vmem:[#allocation2 + $0xa9] sm:$0xff] %vm373, %v354
        %389 = vst.msk [vmem:[#allocation2 + $0xb1] sm:$0xff] %vm373, %v356
        %v390 = vld [vmem:[#allocation2] sm:$0xff]
        %v391 = vld [vmem:[#allocation2 + $0x8] sm:$0xff]
        %v392 = vld [vmem:[#allocation2 + $0x60] sm:$0xff]
        %v393 = vld [vmem:[#allocation2 + $0x68] sm:$0xff]
        %s394 = sld [smem:[#allocation4]]
        %v395 = vstv %s394
        %v396 = vmul.f32 %v395, %v390
        %v397 = vmul.f32 %v395, %v391
        %v398 = vmul.f32 %v395, %v392
        %v399 = vmul.f32 %v395, %v393
        %v400 = vadd.f32 %v396, 0.0
        %v401 = vadd.f32 %v397, 0.0
        %v402 = vadd.f32 %v398, 0.0
        %v403 = vadd.f32 %v399, 0.0
        %s404 = sld [smem:[#allocation4 + $0x1]]
        %v405 = vstv %s404
        %v406 = vmul.f32 %v405, %v390
        %v407 = vmul.f32 %v405, %v391
        %v408 = vmul.f32 %v405, %v392
        %v409 = vmul.f32 %v405, %v393
        %v410 = vadd.f32 %v406, 0.0
        %v411 = vadd.f32 %v407, 0.0
        %v412 = vadd.f32 %v408, 0.0
        %v413 = vadd.f32 %v409, 0.0
        %s414 = sld [smem:[#allocation4 + $0x2]]
        %v415 = vstv %s414
        %v416 = vmul.f32 %v415, %v390
        %v417 = vmul.f32 %v415, %v391
        %v418 = vmul.f32 %v415, %v392
        %v419 = vmul.f32 %v415, %v393
        %v420 = vadd.f32 %v416, 0.0
        %v421 = vadd.f32 %v417, 0.0
        %v422 = vadd.f32 %v418, 0.0
        %v423 = vadd.f32 %v419, 0.0
        %v424 = vld [vmem:[#allocation2 + $0x1] sm:$0xff]
        %v425 = vld [vmem:[#allocation2 + $0x9] sm:$0xff]
        %v426 = vld [vmem:[#allocation2 + $0x61] sm:$0xff]
        %v427 = vld [vmem:[#allocation2 + $0x69] sm:$0xff]
        %s428 = sld [smem:[#allocation4 + $0x3]]
        %v429 = vstv %s428
        %v430 = vmul.f32 %v429, %v424
        %v431 = vmul.f32 %v429, %v425
        %v432 = vmul.f32 %v429, %v426
        %v433 = vmul.f32 %v429, %v427
        %v434 = vadd.f32 %v400, %v430
        %v435 = vadd.f32 %v401, %v431
        %v436 = vadd.f32 %v402, %v432
        %v437 = vadd.f32 %v403, %v433
        %s438 = sld [smem:[#allocation4 + $0x4]]
        %v439 = vstv %s438
        %v440 = vmul.f32 %v439, %v424
        %v441 = vmul.f32 %v439, %v425
        %v442 = vmul.f32 %v439, %v426
        %v443 = vmul.f32 %v439, %v427
        %v444 = vadd.f32 %v410, %v440
        %v445 = vadd.f32 %v411, %v441
        %v446 = vadd.f32 %v412, %v442
        %v447 = vadd.f32 %v413, %v443
        %s448 = sld [smem:[#allocation4 + $0x5]]
        %v449 = vstv %s448
        %v450 = vmul.f32 %v449, %v424
        %v451 = vmul.f32 %v449, %v425
        %v452 = vmul.f32 %v449, %v426
        %v453 = vmul.f32 %v449, %v427
        %v454 = vadd.f32 %v420, %v450
        %v455 = vadd.f32 %v421, %v451
        %v456 = vadd.f32 %v422, %v452
        %v457 = vadd.f32 %v423, %v453
        %v458 = vld [vmem:[#allocation2 + $0x2] sm:$0xff]
        %v459 = vld [vmem:[#allocation2 + $0xa] sm:$0xff]
        %v460 = vld [vmem:[#allocation2 + $0x62] sm:$0xff]
        %v461 = vld [vmem:[#allocation2 + $0x6a] sm:$0xff]
        %s462 = sld [smem:[#allocation4 + $0x6]]
        %v463 = vstv %s462
        %v464 = vmul.f32 %v463, %v458
        %v465 = vmul.f32 %v463, %v459
        %v466 = vmul.f32 %v463, %v460
        %v467 = vmul.f32 %v463, %v461
        %v468 = vadd.f32 %v434, %v464
        %v469 = vadd.f32 %v435, %v465
        %v470 = vadd.f32 %v436, %v466
        %v471 = vadd.f32 %v437, %v467
        %s472 = sld [smem:[#allocation4 + $0x7]]
        %v473 = vstv %s472
        %v474 = vmul.f32 %v473, %v458
        %v475 = vmul.f32 %v473, %v459
        %v476 = vmul.f32 %v473, %v460
        %v477 = vmul.f32 %v473, %v461
        %v478 = vadd.f32 %v444, %v474
        %v479 = vadd.f32 %v445, %v475
        %v480 = vadd.f32 %v446, %v476
        %v481 = vadd.f32 %v447, %v477
        %s482 = sld [smem:[#allocation4 + $0x8]]
        %v483 = vstv %s482
        %v484 = vmul.f32 %v483, %v458
        %v485 = vmul.f32 %v483, %v459
        %v486 = vmul.f32 %v483, %v460
        %v487 = vmul.f32 %v483, %v461
        %v488 = vadd.f32 %v454, %v484
        %v489 = vadd.f32 %v455, %v485
        %v490 = vadd.f32 %v456, %v486
        %v491 = vadd.f32 %v457, %v487
        %s492 = scalar_lea.vmem [#allocation2], 24
        %v493 = vld [vmem:[%s492] sm:$0xff]
        %v494 = vld [vmem:[%s492 + $0x8] sm:$0xff]
        %v495 = vld [vmem:[%s492 + $0x60] sm:$0xff]
        %v496 = vld [vmem:[%s492 + $0x68] sm:$0xff]
        %s497 = sld [smem:[#allocation4 + $0x9]]
        %v498 = vstv %s497
        %v499 = vmul.f32 %v498, %v493
        %v500 = vmul.f32 %v498, %v494
        %v501 = vmul.f32 %v498, %v495
        %v502 = vmul.f32 %v498, %v496
        %v503 = vadd.f32 %v468, %v499
        %v504 = vadd.f32 %v469, %v500
        %v505 = vadd.f32 %v470, %v501
        %v506 = vadd.f32 %v471, %v502
        %s507 = sld [smem:[#allocation4 + $0xa]]
        %v508 = vstv %s507
        %v509 = vmul.f32 %v508, %v493
        %v510 = vmul.f32 %v508, %v494
        %v511 = vmul.f32 %v508, %v495
        %v512 = vmul.f32 %v508, %v496
        %v513 = vadd.f32 %v478, %v509
        %v514 = vadd.f32 %v479, %v510
        %v515 = vadd.f32 %v480, %v511
        %v516 = vadd.f32 %v481, %v512
        %s517 = sld [smem:[#allocation4 + $0xb]]
        %v518 = vstv %s517
        %v519 = vmul.f32 %v518, %v493
        %v520 = vmul.f32 %v518, %v494
        %v521 = vmul.f32 %v518, %v495
        %v522 = vmul.f32 %v518, %v496
        %v523 = vadd.f32 %v488, %v519
        %v524 = vadd.f32 %v489, %v520
        %v525 = vadd.f32 %v490, %v521
        %v526 = vadd.f32 %v491, %v522
        %v527 = vld [vmem:[%s492 + $0x1] sm:$0xff]
        %v528 = vld [vmem:[%s492 + $0x9] sm:$0xff]
        %v529 = vld [vmem:[%s492 + $0x61] sm:$0xff]
        %v530 = vld [vmem:[%s492 + $0x69] sm:$0xff]
        %s531 = sld [smem:[#allocation4 + $0xc]]
        %v532 = vstv %s531
        %v533 = vmul.f32 %v532, %v527
        %v534 = vmul.f32 %v532, %v528
        %v535 = vmul.f32 %v532, %v529
        %v536 = vmul.f32 %v532, %v530
        %v537 = vadd.f32 %v503, %v533
        %v538 = vadd.f32 %v504, %v534
        %v539 = vadd.f32 %v505, %v535
        %v540 = vadd.f32 %v506, %v536
        %s541 = sld [smem:[#allocation4 + $0xd]]
        %v542 = vstv %s541
        %v543 = vmul.f32 %v542, %v527
        %v544 = vmul.f32 %v542, %v528
        %v545 = vmul.f32 %v542, %v529
        %v546 = vmul.f32 %v542, %v530
        %v547 = vadd.f32 %v513, %v543
        %v548 = vadd.f32 %v514, %v544
        %v549 = vadd.f32 %v515, %v545
        %v550 = vadd.f32 %v516, %v546
        %s551 = sld [smem:[#allocation4 + $0xe]]
        %v552 = vstv %s551
        %v553 = vmul.f32 %v552, %v527
        %v554 = vmul.f32 %v552, %v528
        %v555 = vmul.f32 %v552, %v529
        %v556 = vmul.f32 %v552, %v530
        %v557 = vadd.f32 %v523, %v553
        %v558 = vadd.f32 %v524, %v554
        %v559 = vadd.f32 %v525, %v555
        %v560 = vadd.f32 %v526, %v556
        %v561 = vld [vmem:[%s492 + $0x2] sm:$0xff]
        %v562 = vld [vmem:[%s492 + $0xa] sm:$0xff]
        %v563 = vld [vmem:[%s492 + $0x62] sm:$0xff]
        %v564 = vld [vmem:[%s492 + $0x6a] sm:$0xff]
        %s565 = sld [smem:[#allocation4 + $0xf]]
        %v566 = vstv %s565
        %v567 = vmul.f32 %v566, %v561
        %v568 = vmul.f32 %v566, %v562
        %v569 = vmul.f32 %v566, %v563
        %v570 = vmul.f32 %v566, %v564
        %v571 = vadd.f32 %v537, %v567
        %v572 = vadd.f32 %v538, %v568
        %v573 = vadd.f32 %v539, %v569
        %v574 = vadd.f32 %v540, %v570
        %s575 = sld [smem:[#allocation4 + $0x10]]
        %v576 = vstv %s575
        %v577 = vmul.f32 %v576, %v561
        %v578 = vmul.f32 %v576, %v562
        %v579 = vmul.f32 %v576, %v563
        %v580 = vmul.f32 %v576, %v564
        %v581 = vadd.f32 %v547, %v577
        %v582 = vadd.f32 %v548, %v578
        %v583 = vadd.f32 %v549, %v579
        %v584 = vadd.f32 %v550, %v580
        %s585 = sld [smem:[#allocation4 + $0x11]]
        %v586 = vstv %s585
        %v587 = vmul.f32 %v586, %v561
        %v588 = vmul.f32 %v586, %v562
        %v589 = vmul.f32 %v586, %v563
        %v590 = vmul.f32 %v586, %v564
        %v591 = vadd.f32 %v557, %v587
        %v592 = vadd.f32 %v558, %v588
        %v593 = vadd.f32 %v559, %v589
        %v594 = vadd.f32 %v560, %v590
        %s595 = scalar_lea.vmem [#allocation2], 48
        %v596 = vld [vmem:[%s595] sm:$0xff]
        %v597 = vld [vmem:[%s595 + $0x8] sm:$0xff]
        %v598 = vld [vmem:[%s595 + $0x60] sm:$0xff]
        %v599 = vld [vmem:[%s595 + $0x68] sm:$0xff]
        %s600 = sld [smem:[#allocation4 + $0x12]]
        %v601 = vstv %s600
        %v602 = vmul.f32 %v601, %v596
        %v603 = vmul.f32 %v601, %v597
        %v604 = vmul.f32 %v601, %v598
        %v605 = vmul.f32 %v601, %v599
        %v606 = vadd.f32 %v571, %v602
        %v607 = vadd.f32 %v572, %v603
        %v608 = vadd.f32 %v573, %v604
        %v609 = vadd.f32 %v574, %v605
        %s610 = sld [smem:[#allocation4 + $0x13]]
        %v611 = vstv %s610
        %v612 = vmul.f32 %v611, %v596
        %v613 = vmul.f32 %v611, %v597
        %v614 = vmul.f32 %v611, %v598
        %v615 = vmul.f32 %v611, %v599
        %v616 = vadd.f32 %v581, %v612
        %v617 = vadd.f32 %v582, %v613
        %v618 = vadd.f32 %v583, %v614
        %v619 = vadd.f32 %v584, %v615
        %s620 = sld [smem:[#allocation4 + $0x14]]
        %v621 = vstv %s620
        %v622 = vmul.f32 %v621, %v596
        %v623 = vmul.f32 %v621, %v597
        %v624 = vmul.f32 %v621, %v598
        %v625 = vmul.f32 %v621, %v599
        %v626 = vadd.f32 %v591, %v622
        %v627 = vadd.f32 %v592, %v623
        %v628 = vadd.f32 %v593, %v624
        %v629 = vadd.f32 %v594, %v625
        %v630 = vld [vmem:[%s595 + $0x1] sm:$0xff]
        %v631 = vld [vmem:[%s595 + $0x9] sm:$0xff]
        %v632 = vld [vmem:[%s595 + $0x61] sm:$0xff]
        %v633 = vld [vmem:[%s595 + $0x69] sm:$0xff]
        %s634 = sld [smem:[#allocation4 + $0x15]]
        %v635 = vstv %s634
        %v636 = vmul.f32 %v635, %v630
        %v637 = vmul.f32 %v635, %v631
        %v638 = vmul.f32 %v635, %v632
        %v639 = vmul.f32 %v635, %v633
        %v640 = vadd.f32 %v606, %v636
        %v641 = vadd.f32 %v607, %v637
        %v642 = vadd.f32 %v608, %v638
        %v643 = vadd.f32 %v609, %v639
        %s644 = sld [smem:[#allocation4 + $0x16]]
        %v645 = vstv %s644
        %v646 = vmul.f32 %v645, %v630
        %v647 = vmul.f32 %v645, %v631
        %v648 = vmul.f32 %v645, %v632
        %v649 = vmul.f32 %v645, %v633
        %v650 = vadd.f32 %v616, %v646
        %v651 = vadd.f32 %v617, %v647
        %v652 = vadd.f32 %v618, %v648
        %v653 = vadd.f32 %v619, %v649
        %s654 = sld [smem:[#allocation4 + $0x17]]
        %v655 = vstv %s654
        %v656 = vmul.f32 %v655, %v630
        %v657 = vmul.f32 %v655, %v631
        %v658 = vmul.f32 %v655, %v632
        %v659 = vmul.f32 %v655, %v633
        %v660 = vadd.f32 %v626, %v656
        %v661 = vadd.f32 %v627, %v657
        %v662 = vadd.f32 %v628, %v658
        %v663 = vadd.f32 %v629, %v659
        %v664 = vld [vmem:[%s595 + $0x2] sm:$0xff]
        %v665 = vld [vmem:[%s595 + $0xa] sm:$0xff]
        %v666 = vld [vmem:[%s595 + $0x62] sm:$0xff]
        %v667 = vld [vmem:[%s595 + $0x6a] sm:$0xff]
        %s668 = sld [smem:[#allocation4 + $0x18]]
        %v669 = vstv %s668
        %v670 = vmul.f32 %v669, %v664
        %v671 = vmul.f32 %v669, %v665
        %v672 = vmul.f32 %v669, %v666
        %v673 = vmul.f32 %v669, %v667
        %v674 = vadd.f32 %v640, %v670
        %v675 = vadd.f32 %v641, %v671
        %v676 = vadd.f32 %v642, %v672
        %v677 = vadd.f32 %v643, %v673
        %s678 = sld [smem:[#allocation4 + $0x19]]
        %v679 = vstv %s678
        %v680 = vmul.f32 %v679, %v664
        %v681 = vmul.f32 %v679, %v665
        %v682 = vmul.f32 %v679, %v666
        %v683 = vmul.f32 %v679, %v667
        %v684 = vadd.f32 %v650, %v680
        %v685 = vadd.f32 %v651, %v681
        %v686 = vadd.f32 %v652, %v682
        %v687 = vadd.f32 %v653, %v683
        %s688 = sld [smem:[#allocation4 + $0x1a]]
        %v689 = vstv %s688
        %v690 = vmul.f32 %v689, %v664
        %v691 = vmul.f32 %v689, %v665
        %v692 = vmul.f32 %v689, %v666
        %v693 = vmul.f32 %v689, %v667
        %v694 = vadd.f32 %v660, %v690
        %v695 = vadd.f32 %v661, %v691
        %v696 = vadd.f32 %v662, %v692
        %v697 = vadd.f32 %v663, %v693
        %s698 = scalar_lea.vmem [#allocation2], 72
        %v699 = vld [vmem:[%s698] sm:$0xff]
        %v700 = vld [vmem:[%s698 + $0x8] sm:$0xff]
        %v701 = vld [vmem:[%s698 + $0x60] sm:$0xff]
        %v702 = vld [vmem:[%s698 + $0x68] sm:$0xff]
        %s703 = sld [smem:[#allocation4 + $0x1b]]
        %v704 = vstv %s703
        %v705 = vmul.f32 %v704, %v699
        %v706 = vmul.f32 %v704, %v700
        %v707 = vmul.f32 %v704, %v701
        %v708 = vmul.f32 %v704, %v702
        %v709 = vadd.f32 %v674, %v705
        %v710 = vadd.f32 %v675, %v706
        %v711 = vadd.f32 %v676, %v707
        %v712 = vadd.f32 %v677, %v708
        %s713 = sld [smem:[#allocation4 + $0x1c]]
        %v714 = vstv %s713
        %v715 = vmul.f32 %v714, %v699
        %v716 = vmul.f32 %v714, %v700
        %v717 = vmul.f32 %v714, %v701
        %v718 = vmul.f32 %v714, %v702
        %v719 = vadd.f32 %v684, %v715
        %v720 = vadd.f32 %v685, %v716
        %v721 = vadd.f32 %v686, %v717
        %v722 = vadd.f32 %v687, %v718
        %s723 = sld [smem:[#allocation4 + $0x1d]]
        %v724 = vstv %s723
        %v725 = vmul.f32 %v724, %v699
        %v726 = vmul.f32 %v724, %v700
        %v727 = vmul.f32 %v724, %v701
        %v728 = vmul.f32 %v724, %v702
        %v729 = vadd.f32 %v694, %v725
        %v730 = vadd.f32 %v695, %v726
        %v731 = vadd.f32 %v696, %v727
        %v732 = vadd.f32 %v697, %v728
        %v733 = vld [vmem:[%s698 + $0x1] sm:$0xff]
        %v734 = vld [vmem:[%s698 + $0x9] sm:$0xff]
        %v735 = vld [vmem:[%s698 + $0x61] sm:$0xff]
        %v736 = vld [vmem:[%s698 + $0x69] sm:$0xff]
        %s737 = sld [smem:[#allocation4 + $0x1e]]
        %v738 = vstv %s737
        %v739 = vmul.f32 %v738, %v733
        %v740 = vmul.f32 %v738, %v734
        %v741 = vmul.f32 %v738, %v735
        %v742 = vmul.f32 %v738, %v736
        %v743 = vadd.f32 %v709, %v739
        %v744 = vadd.f32 %v710, %v740
        %v745 = vadd.f32 %v711, %v741
        %v746 = vadd.f32 %v712, %v742
        %s747 = sld [smem:[#allocation4 + $0x1f]]
        %v748 = vstv %s747
        %v749 = vmul.f32 %v748, %v733
        %v750 = vmul.f32 %v748, %v734
        %v751 = vmul.f32 %v748, %v735
        %v752 = vmul.f32 %v748, %v736
        %v753 = vadd.f32 %v719, %v749
        %v754 = vadd.f32 %v720, %v750
        %v755 = vadd.f32 %v721, %v751
        %v756 = vadd.f32 %v722, %v752
        %s757 = sld [smem:[#allocation4 + $0x20]]
        %v758 = vstv %s757
        %v759 = vmul.f32 %v758, %v733
        %v760 = vmul.f32 %v758, %v734
        %v761 = vmul.f32 %v758, %v735
        %v762 = vmul.f32 %v758, %v736
        %v763 = vadd.f32 %v729, %v759
        %v764 = vadd.f32 %v730, %v760
        %v765 = vadd.f32 %v731, %v761
        %v766 = vadd.f32 %v732, %v762
        %v767 = vld [vmem:[%s698 + $0x2] sm:$0xff]
        %v768 = vld [vmem:[%s698 + $0xa] sm:$0xff]
        %v769 = vld [vmem:[%s698 + $0x62] sm:$0xff]
        %v770 = vld [vmem:[%s698 + $0x6a] sm:$0xff]
        %s771 = sld [smem:[#allocation4 + $0x21]]
        %v772 = vstv %s771
        %v773 = vmul.f32 %v772, %v767
        %v774 = vmul.f32 %v772, %v768
        %v775 = vmul.f32 %v772, %v769
        %v776 = vmul.f32 %v772, %v770
        %v777 = vadd.f32 %v743, %v773
        %v778 = vadd.f32 %v744, %v774
        %v779 = vadd.f32 %v745, %v775
        %v780 = vadd.f32 %v746, %v776
        %s781 = sld [smem:[#allocation4 + $0x22]]
        %v782 = vstv %s781
        %v783 = vmul.f32 %v782, %v767
        %v784 = vmul.f32 %v782, %v768
        %v785 = vmul.f32 %v782, %v769
        %v786 = vmul.f32 %v782, %v770
        %v787 = vadd.f32 %v753, %v783
        %v788 = vadd.f32 %v754, %v784
        %v789 = vadd.f32 %v755, %v785
        %v790 = vadd.f32 %v756, %v786
        %s791 = sld [smem:[#allocation4 + $0x23]]
        %v792 = vstv %s791
        %v793 = vmul.f32 %v792, %v767
        %v794 = vmul.f32 %v792, %v768
        %v795 = vmul.f32 %v792, %v769
        %v796 = vmul.f32 %v792, %v770
        %v797 = vadd.f32 %v763, %v793
        %v798 = vadd.f32 %v764, %v794
        %v799 = vadd.f32 %v765, %v795
        %v800 = vadd.f32 %v766, %v796
        %805 = vrot.lane.b32.xlu0 %v787, 127
        %v806 = vpop.permute.xlu0 %805
        %807 = vrot.lane.b32.xlu0 %v788, 127
        %v808 = vpop.permute.xlu0 %807
        %809 = vrot.lane.b32.xlu0 %v789, 127
        %v810 = vpop.permute.xlu0 %809
        %811 = vrot.lane.b32.xlu0 %v790, 127
        %v812 = vpop.permute.xlu0 %811
        %v817 = vadd.f32 %v777, %v806
        %v818 = vadd.f32 %v778, %v808
        %v819 = vadd.f32 %v779, %v810
        %v820 = vadd.f32 %v780, %v812
        %825 = vrot.lane.b32.xlu0 %v797, 126
        %v826 = vpop.permute.xlu0 %825
        %827 = vrot.lane.b32.xlu0 %v798, 126
        %v828 = vpop.permute.xlu0 %827
        %829 = vrot.lane.b32.xlu0 %v799, 126
        %v830 = vpop.permute.xlu0 %829
        %831 = vrot.lane.b32.xlu0 %v800, 126
        %v832 = vpop.permute.xlu0 %831
        %v837 = vadd.f32 %v817, %v826
        %v838 = vadd.f32 %v818, %v828
        %v839 = vadd.f32 %v819, %v830
        %v840 = vadd.f32 %v820, %v832
        %841 = vst.msk [vmem:[#allocation3] sm:$0xff] %vm267, 0.0
        %842 = vst.msk [vmem:[#allocation3 + $0x8] sm:$0xff] %vm267, 0.0
        %843 = vst.msk [vmem:[#allocation3 + $0x10] sm:$0x3] %vm270, 0.0
        %844 = vst.msk [vmem:[#allocation3 + $0x18] sm:$0xff] %vm267, 0.0
        %845 = vst.msk [vmem:[#allocation3 + $0x20] sm:$0xff] %vm267, 0.0
        %846 = vst.msk [vmem:[#allocation3 + $0x28] sm:$0x3] %vm270, 0.0
        %851 = vrot.lane.b32.xlu0 %v837, 1
        %v852 = vpop.permute.xlu0 %851
        %853 = vrot.lane.b32.xlu0 %v838, 1
        %v854 = vpop.permute.xlu0 %853
        %855 = vrot.lane.b32.xlu0 %v839, 1
        %v856 = vpop.permute.xlu0 %855
        %857 = vrot.lane.b32.xlu0 %v840, 1
        %v858 = vpop.permute.xlu0 %857
        %863 = vst.msk [vmem:[#allocation3 + $0x1] sm:$0xff] %vm373, %v852
        %864 = vst.msk [vmem:[#allocation3 + $0x9] sm:$0xff] %vm373, %v854
        %865 = vst.msk [vmem:[#allocation3 + $0x19] sm:$0xff] %vm373, %v856
        %866 = vst.msk [vmem:[#allocation3 + $0x21] sm:$0xff] %vm373, %v858
        %v867 = vld [vmem:[#allocation3] sm:$0xff]
        %v868 = vld [vmem:[#allocation3 + $0x8] sm:$0xff]
        %v869 = vld [vmem:[#allocation3 + $0x18] sm:$0xff]
        %v870 = vld [vmem:[#allocation3 + $0x20] sm:$0xff]
        %v871 = vld [vmem:[#allocation3 + $0x1] sm:$0xff]
        %v872 = vld [vmem:[#allocation3 + $0x9] sm:$0xff]
        %v873 = vld [vmem:[#allocation3 + $0x19] sm:$0xff]
        %v874 = vld [vmem:[#allocation3 + $0x21] sm:$0xff]
        %v875 = vld [vmem:[#allocation3 + $0x2] sm:$0xff]
        %v876 = vld [vmem:[#allocation3 + $0xa] sm:$0xff]
        %v877 = vld [vmem:[#allocation3 + $0x1a] sm:$0xff]
        %v878 = vld [vmem:[#allocation3 + $0x22] sm:$0xff]
        %v879 = vlaneseq
        %v880 = vshrl.u32 %v879, 7
        %v881 = vadd.s32 %v880, 8
        %v882 = vlaneseq
        %v883 = vand.u32 %v882, 127
        %vm884 = vcmp.lt.s32.totalorder %v880, 0
        %v885 = vsub.s32 0, %v880
        %v886 = vsel %vm884, %v885, %v880
        %v887 = vshrl.u32 %v886, 1
        %v888 = vand.u32 %v886, 1
        %v889 = vsub.s32 0, %v888
        %v890 = vsel %vm884, %v889, %v888
        %vm891 = vcmp.lt.s32.totalorder %v881, 0
        %v892 = vsub.s32 0, %v881
        %v893 = vsel %vm891, %v892, %v881
        %v894 = vshrl.u32 %v893, 1
        %v895 = vand.u32 %v893, 1
        %v896 = vsub.s32 0, %v895
        %v897 = vsel %vm891, %v896, %v895
        %vm898 = vcmp.ne.s32.totalorder %v890, 0
        %vm899 = vcmp.ne.s32.totalorder %v897, 0
        %vm900 = vcmp.lt.s32.totalorder %v890, 0
        %vm901 = vcmp.lt.s32.totalorder %v897, 0
        %vm902 = vmand %vm900, %vm898
        %vm903 = vmand %vm901, %vm899
        %v904 = vadd.s32 %v890, 2
        %v905 = vadd.s32 %v897, 2
        %v906 = vsel %vm902, %v904, %v890
        %v907 = vsel %vm903, %v905, %v897
        %vm908 = vcmp.eq.s32.totalorder %v906, 0
        %vm909 = vcmp.eq.s32.totalorder %v907, 0
        %vm910 = vcmp.lt.s32.totalorder %v883, 0
        %v911 = vsub.s32 0, %v883
        %v912 = vsel %vm910, %v911, %v883
        %v913 = vshrl.u32 %v912, 1
        %v914 = vand.u32 %v912, 1
        %v915 = vsub.s32 0, %v914
        %v916 = vsel %vm910, %v915, %v914
        %vm917 = vcmp.ne.s32.totalorder %v916, 0
        %vm918 = vcmp.lt.s32.totalorder %v916, 0
        %vm919 = vmand %vm918, %vm917
        %v920 = vadd.s32 %v916, 2
        %v921 = vsel %vm919, %v920, %v916
        %vm922 = vcmp.eq.s32.totalorder %v921, 0
        %vm923 = vmand %vm908, %vm922
        %vm924 = vmand %vm909, %vm922
        %v925 = vsel %vm923, 1.0, 0.0
        %v926 = vsel %vm924, 1.0, 0.0
        %s927 = smul.u32 %s20, 4
        %s928 = smul.u32 %s20, 36
        %s929 = sld [smem:[#allocation7 + %s928]]
        %v930 = vstv %s929
        %v931 = vmul.f32 %v930, %v867
        %v932 = vmul.f32 %v930, %v868
        %v933 = vmul.f32 %v930, %v869
        %v934 = vmul.f32 %v930, %v870
        %v935 = vadd.f32 %v931, 0.0
        %v936 = vadd.f32 %v932, 0.0
        %v937 = vadd.f32 %v933, 0.0
        %v938 = vadd.f32 %v934, 0.0
        %s939 = sadd.s32 %s928, 1
        %s940 = sld [smem:[#allocation7 + %s939]]
        %v941 = vstv %s940
        %v942 = vmul.f32 %v941, %v867
        %v943 = vmul.f32 %v941, %v868
        %v944 = vmul.f32 %v941, %v869
        %v945 = vmul.f32 %v941, %v870
        %v946 = vadd.f32 %v942, 0.0
        %v947 = vadd.f32 %v943, 0.0
        %v948 = vadd.f32 %v944, 0.0
        %v949 = vadd.f32 %v945, 0.0
        %s950 = sadd.s32 %s928, 2
        %s951 = sld [smem:[#allocation7 + %s950]]
        %v952 = vstv %s951
        %v953 = vmul.f32 %v952, %v867
        %v954 = vmul.f32 %v952, %v868
        %v955 = vmul.f32 %v952, %v869
        %v956 = vmul.f32 %v952, %v870
        %v957 = vadd.f32 %v953, 0.0
        %v958 = vadd.f32 %v954, 0.0
        %v959 = vadd.f32 %v955, 0.0
        %v960 = vadd.f32 %v956, 0.0
        %s961 = smul.u32 %s20, 12
        %s962 = sadd.s32 %s961, 1
        %s963 = smul.u32 %s962, 3
        %s964 = sld [smem:[#allocation7 + %s963]]
        %v965 = vstv %s964
        %v966 = vmul.f32 %v965, %v871
        %v967 = vmul.f32 %v965, %v872
        %v968 = vmul.f32 %v965, %v873
        %v969 = vmul.f32 %v965, %v874
        %v970 = vadd.f32 %v935, %v966
        %v971 = vadd.f32 %v936, %v967
        %v972 = vadd.f32 %v937, %v968
        %v973 = vadd.f32 %v938, %v969
        %s974 = sadd.s32 %s963, 1
        %s975 = sld [smem:[#allocation7 + %s974]]
        %v976 = vstv %s975
        %v977 = vmul.f32 %v976, %v871
        %v978 = vmul.f32 %v976, %v872
        %v979 = vmul.f32 %v976, %v873
        %v980 = vmul.f32 %v976, %v874
        %v981 = vadd.f32 %v946, %v977
        %v982 = vadd.f32 %v947, %v978
        %v983 = vadd.f32 %v948, %v979
        %v984 = vadd.f32 %v949, %v980
        %s985 = sadd.s32 %s963, 2
        %s986 = sld [smem:[#allocation7 + %s985]]
        %v987 = vstv %s986
        %v988 = vmul.f32 %v987, %v871
        %v989 = vmul.f32 %v987, %v872
        %v990 = vmul.f32 %v987, %v873
        %v991 = vmul.f32 %v987, %v874
        %v992 = vadd.f32 %v957, %v988
        %v993 = vadd.f32 %v958, %v989
        %v994 = vadd.f32 %v959, %v990
        %v995 = vadd.f32 %v960, %v991
        %s996 = sadd.s32 %s961, 2
        %s997 = smul.u32 %s996, 3
        %s998 = sld [smem:[#allocation7 + %s997]]
        %v999 = vstv %s998
        %v1000 = vmul.f32 %v999, %v875
        %v1001 = vmul.f32 %v999, %v876
        %v1002 = vmul.f32 %v999, %v877
        %v1003 = vmul.f32 %v999, %v878
        %v1004 = vadd.f32 %v970, %v1000
        %v1005 = vadd.f32 %v971, %v1001
        %v1006 = vadd.f32 %v972, %v1002
        %v1007 = vadd.f32 %v973, %v1003
        %s1008 = sadd.s32 %s997, 1
        %s1009 = sld [smem:[#allocation7 + %s1008]]
        %v1010 = vstv %s1009
        %v1011 = vmul.f32 %v1010, %v875
        %v1012 = vmul.f32 %v1010, %v876
        %v1013 = vmul.f32 %v1010, %v877
        %v1014 = vmul.f32 %v1010, %v878
        %v1015 = vadd.f32 %v981, %v1011
        %v1016 = vadd.f32 %v982, %v1012
        %v1017 = vadd.f32 %v983, %v1013
        %v1018 = vadd.f32 %v984, %v1014
        %s1019 = sadd.s32 %s997, 2
        %s1020 = sld [smem:[#allocation7 + %s1019]]
        %v1021 = vstv %s1020
        %v1022 = vmul.f32 %v1021, %v875
        %v1023 = vmul.f32 %v1021, %v876
        %v1024 = vmul.f32 %v1021, %v877
        %v1025 = vmul.f32 %v1021, %v878
        %v1026 = vadd.f32 %v992, %v1022
        %v1027 = vadd.f32 %v993, %v1023
        %v1028 = vadd.f32 %v994, %v1024
        %v1029 = vadd.f32 %v995, %v1025
        %1034 = vrot.lane.b32.xlu0 %v1015, 127
        %v1035 = vpop.permute.xlu0 %1034
        %1036 = vrot.lane.b32.xlu0 %v1016, 127
        %v1037 = vpop.permute.xlu0 %1036
        %1038 = vrot.lane.b32.xlu0 %v1017, 127
        %v1039 = vpop.permute.xlu0 %1038
        %1040 = vrot.lane.b32.xlu0 %v1018, 127
        %v1041 = vpop.permute.xlu0 %1040
        %v1046 = vadd.f32 %v1004, %v1035
        %v1047 = vadd.f32 %v1005, %v1037
        %v1048 = vadd.f32 %v1006, %v1039
        %v1049 = vadd.f32 %v1007, %v1041
        %1054 = vrot.lane.b32.xlu0 %v1026, 126
        %v1055 = vpop.permute.xlu0 %1054
        %1056 = vrot.lane.b32.xlu0 %v1027, 126
        %v1057 = vpop.permute.xlu0 %1056
        %1058 = vrot.lane.b32.xlu0 %v1028, 126
        %v1059 = vpop.permute.xlu0 %1058
        %1060 = vrot.lane.b32.xlu0 %v1029, 126
        %v1061 = vpop.permute.xlu0 %1060
        %v1066 = vadd.f32 %v1046, %v1055
        %v1067 = vadd.f32 %v1047, %v1057
        %v1068 = vadd.f32 %v1048, %v1059
        %v1069 = vadd.f32 %v1049, %v1061
        %v1070 = vmul.f32 %v1066, %v925
        %v1071 = vmul.f32 %v1067, %v926
        %v1072 = vmul.f32 %v1068, %v925
        %v1073 = vmul.f32 %v1069, %v926
        %vm1074 = vcmask 130048
        %v1075 = vsel %vm1074, %v1070, 0.0
        %v1076 = vsel %vm1074, %v1071, 0.0
        %v1077 = vadd.f32 %v1075, %v1076
        %v1078 = vsel %vm1074, %v1072, 0.0
        %v1079 = vadd.f32 %v1077, %v1078
        %v1080 = vsel %vm1074, %v1073, 0.0
        %v1081 = vadd.f32 %v1079, %v1080
        %1082 = vadd.xlane.f32.xlu0 %v1081
        %v1083 = vpop.xlane.xlu0 %1082
        %v1084 = vrot.slane %v1083, 4
        %v1085 = vadd.f32 %v1083, %v1084
        %v1086 = vrot.slane %v1085, 2
        %v1087 = vadd.f32 %v1085, %v1086
        %v1088 = vrot.slane %v1087, 1
        %v1089 = vadd.f32 %v1087, %v1088
        %s1090 = vtos %v1089
        %v1091 = vstv %s1090
        %v1092 = vmul.f32 %v1091, 0.0078125
        %v1093 = vsub.f32 %v1066, %v1092
        %v1094 = vsub.f32 %v1067, %v1092
        %v1095 = vsub.f32 %v1068, %v1092
        %v1096 = vsub.f32 %v1069, %v1092
        %v1097 = vmul.f32 %v1093, %v1093
        %v1098 = vmul.f32 %v1094, %v1094
        %v1099 = vmul.f32 %v1095, %v1095
        %v1100 = vmul.f32 %v1096, %v1096
        %v1101 = vmul.f32 %v1097, %v925
        %v1102 = vmul.f32 %v1098, %v926
        %v1103 = vmul.f32 %v1099, %v925
        %v1104 = vmul.f32 %v1100, %v926
        %v1105 = vsel %vm1074, %v1101, 0.0
        %v1106 = vsel %vm1074, %v1102, 0.0
        %v1107 = vadd.f32 %v1105, %v1106
        %v1108 = vsel %vm1074, %v1103, 0.0
        %v1109 = vadd.f32 %v1107, %v1108
        %v1110 = vsel %vm1074, %v1104, 0.0
        %v1111 = vadd.f32 %v1109, %v1110
        %1112 = vadd.xlane.f32.xlu0 %v1111
        %v1113 = vpop.xlane.xlu0 %1112
        %v1114 = vrot.slane %v1113, 4
        %v1115 = vadd.f32 %v1113, %v1114
        %v1116 = vrot.slane %v1115, 2
        %v1117 = vadd.f32 %v1115, %v1116
        %v1118 = vrot.slane %v1117, 1
        %v1119 = vadd.f32 %v1117, %v1118
        %s1120 = vtos %v1119
        %v1121 = vstv %s1120
        %v1122 = vmul.f32 %v1121, 0.0078125
        %s1123 = sld [smem:[#allocation9 + %s927]]
        %v1124 = vadd.f32 %v1122, 1e-05
        %v1125 = vrsqrt.pop %v1124
        %v1126 = vmul.f32 %v1093, %v1125
        %v1127 = vmul.f32 %v1094, %v1125
        %v1128 = vmul.f32 %v1095, %v1125
        %v1129 = vmul.f32 %v1096, %v1125
        %v1130 = vstv %s1123
        %v1131 = vmul.f32 %v1130, %v1126
        %v1132 = vmul.f32 %v1130, %v1127
        %v1133 = vmul.f32 %v1130, %v1128
        %v1134 = vmul.f32 %v1130, %v1129
        %s1135 = sld [smem:[#allocation10 + %s927]]
        %v1136 = vstv %s1135
        %v1137 = vadd.f32 %v1131, %v1136
        %v1138 = vadd.f32 %v1132, %v1136
        %v1139 = vadd.f32 %v1133, %v1136
        %v1140 = vadd.f32 %v1134, %v1136
        %vm1141 = vcmp.ge.f32.partialorder %v1137, 0.0
        %vm1142 = vcmp.ge.f32.partialorder %v1138, 0.0
        %vm1143 = vcmp.ge.f32.partialorder %v1139, 0.0
        %vm1144 = vcmp.ge.f32.partialorder %v1140, 0.0
        %v1145 = vmul.f32 %v1137, 0.1
        %v1146 = vmul.f32 %v1138, 0.1
        %v1147 = vmul.f32 %v1139, 0.1
        %v1148 = vmul.f32 %v1140, 0.1
        %v1149 = vsel %vm1141, %v1137, %v1145
        %v1150 = vsel %vm1142, %v1138, %v1146
        %v1151 = vsel %vm1143, %v1139, %v1147
        %v1152 = vsel %vm1144, %v1140, %v1148
        %1153 = vst.msk [vmem:[%s265] sm:$0xff] %vm1074, %v1149
        %1154 = vst.msk [vmem:[%s265 + $0x8] sm:$0xff] %vm1074, %v1150
        %1155 = vst.msk [vmem:[%s265 + $0x40] sm:$0xff] %vm1074, %v1151
        %1156 = vst.msk [vmem:[%s265 + $0x48] sm:$0xff] %vm1074, %v1152
        %s1157 = sadd.s32 %s927, 1
        %s1158 = smul.u32 %s1157, 9
        %s1159 = sld [smem:[#allocation7 + %s1158]]
        %v1160 = vstv %s1159
        %v1161 = vmul.f32 %v1160, %v867
        %v1162 = vmul.f32 %v1160, %v868
        %v1163 = vmul.f32 %v1160, %v869
        %v1164 = vmul.f32 %v1160, %v870
        %v1165 = vadd.f32 %v1161, 0.0
        %v1166 = vadd.f32 %v1162, 0.0
        %v1167 = vadd.f32 %v1163, 0.0
        %v1168 = vadd.f32 %v1164, 0.0
        %s1169 = sadd.s32 %s1158, 1
        %s1170 = sld [smem:[#allocation7 + %s1169]]
        %v1171 = vstv %s1170
        %v1172 = vmul.f32 %v1171, %v867
        %v1173 = vmul.f32 %v1171, %v868
        %v1174 = vmul.f32 %v1171, %v869
        %v1175 = vmul.f32 %v1171, %v870
        %v1176 = vadd.f32 %v1172, 0.0
        %v1177 = vadd.f32 %v1173, 0.0
        %v1178 = vadd.f32 %v1174, 0.0
        %v1179 = vadd.f32 %v1175, 0.0
        %s1180 = sadd.s32 %s1158, 2
        %s1181 = sld [smem:[#allocation7 + %s1180]]
        %v1182 = vstv %s1181
        %v1183 = vmul.f32 %v1182, %v867
        %v1184 = vmul.f32 %v1182, %v868
        %v1185 = vmul.f32 %v1182, %v869
        %v1186 = vmul.f32 %v1182, %v870
        %v1187 = vadd.f32 %v1183, 0.0
        %v1188 = vadd.f32 %v1184, 0.0
        %v1189 = vadd.f32 %v1185, 0.0
        %v1190 = vadd.f32 %v1186, 0.0
        %s1191 = smul.u32 %s1157, 3
        %s1192 = sadd.s32 %s1191, 1
        %s1193 = smul.u32 %s1192, 3
        %s1194 = sld [smem:[#allocation7 + %s1193]]
        %v1195 = vstv %s1194
        %v1196 = vmul.f32 %v1195, %v871
        %v1197 = vmul.f32 %v1195, %v872
        %v1198 = vmul.f32 %v1195, %v873
        %v1199 = vmul.f32 %v1195, %v874
        %v1200 = vadd.f32 %v1165, %v1196
        %v1201 = vadd.f32 %v1166, %v1197
        %v1202 = vadd.f32 %v1167, %v1198
        %v1203 = vadd.f32 %v1168, %v1199
        %s1204 = sadd.s32 %s1193, 1
        %s1205 = sld [smem:[#allocation7 + %s1204]]
        %v1206 = vstv %s1205
        %v1207 = vmul.f32 %v1206, %v871
        %v1208 = vmul.f32 %v1206, %v872
        %v1209 = vmul.f32 %v1206, %v873
        %v1210 = vmul.f32 %v1206, %v874
        %v1211 = vadd.f32 %v1176, %v1207
        %v1212 = vadd.f32 %v1177, %v1208
        %v1213 = vadd.f32 %v1178, %v1209
        %v1214 = vadd.f32 %v1179, %v1210
        %s1215 = sadd.s32 %s1193, 2
        %s1216 = sld [smem:[#allocation7 + %s1215]]
        %v1217 = vstv %s1216
        %v1218 = vmul.f32 %v1217, %v871
        %v1219 = vmul.f32 %v1217, %v872
        %v1220 = vmul.f32 %v1217, %v873
        %v1221 = vmul.f32 %v1217, %v874
        %v1222 = vadd.f32 %v1187, %v1218
        %v1223 = vadd.f32 %v1188, %v1219
        %v1224 = vadd.f32 %v1189, %v1220
        %v1225 = vadd.f32 %v1190, %v1221
        %s1226 = sadd.s32 %s1191, 2
        %s1227 = smul.u32 %s1226, 3
        %s1228 = sld [smem:[#allocation7 + %s1227]]
        %v1229 = vstv %s1228
        %v1230 = vmul.f32 %v1229, %v875
        %v1231 = vmul.f32 %v1229, %v876
        %v1232 = vmul.f32 %v1229, %v877
        %v1233 = vmul.f32 %v1229, %v878
        %v1234 = vadd.f32 %v1200, %v1230
        %v1235 = vadd.f32 %v1201, %v1231
        %v1236 = vadd.f32 %v1202, %v1232
        %v1237 = vadd.f32 %v1203, %v1233
        %s1238 = sadd.s32 %s1227, 1
        %s1239 = sld [smem:[#allocation7 + %s1238]]
        %v1240 = vstv %s1239
        %v1241 = vmul.f32 %v1240, %v875
        %v1242 = vmul.f32 %v1240, %v876
        %v1243 = vmul.f32 %v1240, %v877
        %v1244 = vmul.f32 %v1240, %v878
        %v1245 = vadd.f32 %v1211, %v1241
        %v1246 = vadd.f32 %v1212, %v1242
        %v1247 = vadd.f32 %v1213, %v1243
        %v1248 = vadd.f32 %v1214, %v1244
        %s1249 = sadd.s32 %s1227, 2
        %s1250 = sld [smem:[#allocation7 + %s1249]]
        %v1251 = vstv %s1250
        %v1252 = vmul.f32 %v1251, %v875
        %v1253 = vmul.f32 %v1251, %v876
        %v1254 = vmul.f32 %v1251, %v877
        %v1255 = vmul.f32 %v1251, %v878
        %v1256 = vadd.f32 %v1222, %v1252
        %v1257 = vadd.f32 %v1223, %v1253
        %v1258 = vadd.f32 %v1224, %v1254
        %v1259 = vadd.f32 %v1225, %v1255
        %1264 = vrot.lane.b32.xlu0 %v1245, 127
        %v1265 = vpop.permute.xlu0 %1264
        %1266 = vrot.lane.b32.xlu0 %v1246, 127
        %v1267 = vpop.permute.xlu0 %1266
        %1268 = vrot.lane.b32.xlu0 %v1247, 127
        %v1269 = vpop.permute.xlu0 %1268
        %1270 = vrot.lane.b32.xlu0 %v1248, 127
        %v1271 = vpop.permute.xlu0 %1270
        %v1276 = vadd.f32 %v1234, %v1265
        %v1277 = vadd.f32 %v1235, %v1267
        %v1278 = vadd.f32 %v1236, %v1269
        %v1279 = vadd.f32 %v1237, %v1271
        %1284 = vrot.lane.b32.xlu0 %v1256, 126
        %v1285 = vpop.permute.xlu0 %1284
        %1286 = vrot.lane.b32.xlu0 %v1257, 126
        %v1287 = vpop.permute.xlu0 %1286
        %1288 = vrot.lane.b32.xlu0 %v1258, 126
        %v1289 = vpop.permute.xlu0 %1288
        %1290 = vrot.lane.b32.xlu0 %v1259, 126
        %v1291 = vpop.permute.xlu0 %1290
        %v1296 = vadd.f32 %v1276, %v1285
        %v1297 = vadd.f32 %v1277, %v1287
        %v1298 = vadd.f32 %v1278, %v1289
        %v1299 = vadd.f32 %v1279, %v1291
        %v1300 = vmul.f32 %v1296, %v925
        %v1301 = vmul.f32 %v1297, %v926
        %v1302 = vmul.f32 %v1298, %v925
        %v1303 = vmul.f32 %v1299, %v926
        %v1304 = vsel %vm1074, %v1300, 0.0
        %v1305 = vsel %vm1074, %v1301, 0.0
        %v1306 = vadd.f32 %v1304, %v1305
        %v1307 = vsel %vm1074, %v1302, 0.0
        %v1308 = vadd.f32 %v1306, %v1307
        %v1309 = vsel %vm1074, %v1303, 0.0
        %v1310 = vadd.f32 %v1308, %v1309
        %1311 = vadd.xlane.f32.xlu0 %v1310
        %v1312 = vpop.xlane.xlu0 %1311
        %v1313 = vrot.slane %v1312, 4
        %v1314 = vadd.f32 %v1312, %v1313
        %v1315 = vrot.slane %v1314, 2
        %v1316 = vadd.f32 %v1314, %v1315
        %v1317 = vrot.slane %v1316, 1
        %v1318 = vadd.f32 %v1316, %v1317
        %s1319 = vtos %v1318
        %v1320 = vstv %s1319
        %v1321 = vmul.f32 %v1320, 0.0078125
        %v1322 = vsub.f32 %v1296, %v1321
        %v1323 = vsub.f32 %v1297, %v1321
        %v1324 = vsub.f32 %v1298, %v1321
        %v1325 = vsub.f32 %v1299, %v1321
        %v1326 = vmul.f32 %v1322, %v1322
        %v1327 = vmul.f32 %v1323, %v1323
        %v1328 = vmul.f32 %v1324, %v1324
        %v1329 = vmul.f32 %v1325, %v1325
        %v1330 = vmul.f32 %v1326, %v925
        %v1331 = vmul.f32 %v1327, %v926
        %v1332 = vmul.f32 %v1328, %v925
        %v1333 = vmul.f32 %v1329, %v926
        %v1334 = vsel %vm1074, %v1330, 0.0
        %v1335 = vsel %vm1074, %v1331, 0.0
        %v1336 = vadd.f32 %v1334, %v1335
        %v1337 = vsel %vm1074, %v1332, 0.0
        %v1338 = vadd.f32 %v1336, %v1337
        %v1339 = vsel %vm1074, %v1333, 0.0
        %v1340 = vadd.f32 %v1338, %v1339
        %1341 = vadd.xlane.f32.xlu0 %v1340
        %v1342 = vpop.xlane.xlu0 %1341
        %v1343 = vrot.slane %v1342, 4
        %v1344 = vadd.f32 %v1342, %v1343
        %v1345 = vrot.slane %v1344, 2
        %v1346 = vadd.f32 %v1344, %v1345
        %v1347 = vrot.slane %v1346, 1
        %v1348 = vadd.f32 %v1346, %v1347
        %s1349 = vtos %v1348
        %v1350 = vstv %s1349
        %v1351 = vmul.f32 %v1350, 0.0078125
        %s1352 = sld [smem:[#allocation9 + %s1157]]
        %v1353 = vadd.f32 %v1351, 1e-05
        %v1354 = vrsqrt.pop %v1353
        %v1355 = vmul.f32 %v1322, %v1354
        %v1356 = vmul.f32 %v1323, %v1354
        %v1357 = vmul.f32 %v1324, %v1354
        %v1358 = vmul.f32 %v1325, %v1354
        %v1359 = vstv %s1352
        %v1360 = vmul.f32 %v1359, %v1355
        %v1361 = vmul.f32 %v1359, %v1356
        %v1362 = vmul.f32 %v1359, %v1357
        %v1363 = vmul.f32 %v1359, %v1358
        %s1364 = sld [smem:[#allocation10 + %s1157]]
        %v1365 = vstv %s1364
        %v1366 = vadd.f32 %v1360, %v1365
        %v1367 = vadd.f32 %v1361, %v1365
        %v1368 = vadd.f32 %v1362, %v1365
        %v1369 = vadd.f32 %v1363, %v1365
        %vm1370 = vcmp.ge.f32.partialorder %v1366, 0.0
        %vm1371 = vcmp.ge.f32.partialorder %v1367, 0.0
        %vm1372 = vcmp.ge.f32.partialorder %v1368, 0.0
        %vm1373 = vcmp.ge.f32.partialorder %v1369, 0.0
        %v1374 = vmul.f32 %v1366, 0.1
        %v1375 = vmul.f32 %v1367, 0.1
        %v1376 = vmul.f32 %v1368, 0.1
        %v1377 = vmul.f32 %v1369, 0.1
        %v1378 = vsel %vm1370, %v1366, %v1374
        %v1379 = vsel %vm1371, %v1367, %v1375
        %v1380 = vsel %vm1372, %v1368, %v1376
        %v1381 = vsel %vm1373, %v1369, %v1377
        %s1382 = scalar_lea.vmem %s265, 16 [#allocation13]
        %1383 = vst.msk [vmem:[%s1382] sm:$0xff] %vm1074, %v1378
        %1384 = vst.msk [vmem:[%s1382 + $0x8] sm:$0xff] %vm1074, %v1379
        %1385 = vst.msk [vmem:[%s1382 + $0x40] sm:$0xff] %vm1074, %v1380
        %1386 = vst.msk [vmem:[%s1382 + $0x48] sm:$0xff] %vm1074, %v1381
        %s1387 = sadd.s32 %s927, 2
        %s1388 = smul.u32 %s1387, 9
        %s1389 = sld [smem:[#allocation7 + %s1388]]
        %v1390 = vstv %s1389
        %v1391 = vmul.f32 %v1390, %v867
        %v1392 = vmul.f32 %v1390, %v868
        %v1393 = vmul.f32 %v1390, %v869
        %v1394 = vmul.f32 %v1390, %v870
        %v1395 = vadd.f32 %v1391, 0.0
        %v1396 = vadd.f32 %v1392, 0.0
        %v1397 = vadd.f32 %v1393, 0.0
        %v1398 = vadd.f32 %v1394, 0.0
        %s1399 = sadd.s32 %s1388, 1
        %s1400 = sld [smem:[#allocation7 + %s1399]]
        %v1401 = vstv %s1400
        %v1402 = vmul.f32 %v1401, %v867
        %v1403 = vmul.f32 %v1401, %v868
        %v1404 = vmul.f32 %v1401, %v869
        %v1405 = vmul.f32 %v1401, %v870
        %v1406 = vadd.f32 %v1402, 0.0
        %v1407 = vadd.f32 %v1403, 0.0
        %v1408 = vadd.f32 %v1404, 0.0
        %v1409 = vadd.f32 %v1405, 0.0
        %s1410 = sadd.s32 %s1388, 2
        %s1411 = sld [smem:[#allocation7 + %s1410]]
        %v1412 = vstv %s1411
        %v1413 = vmul.f32 %v1412, %v867
        %v1414 = vmul.f32 %v1412, %v868
        %v1415 = vmul.f32 %v1412, %v869
        %v1416 = vmul.f32 %v1412, %v870
        %v1417 = vadd.f32 %v1413, 0.0
        %v1418 = vadd.f32 %v1414, 0.0
        %v1419 = vadd.f32 %v1415, 0.0
        %v1420 = vadd.f32 %v1416, 0.0
        %s1421 = smul.u32 %s1387, 3
        %s1422 = sadd.s32 %s1421, 1
        %s1423 = smul.u32 %s1422, 3
        %s1424 = sld [smem:[#allocation7 + %s1423]]
        %v1425 = vstv %s1424
        %v1426 = vmul.f32 %v1425, %v871
        %v1427 = vmul.f32 %v1425, %v872
        %v1428 = vmul.f32 %v1425, %v873
        %v1429 = vmul.f32 %v1425, %v874
        %v1430 = vadd.f32 %v1395, %v1426
        %v1431 = vadd.f32 %v1396, %v1427
        %v1432 = vadd.f32 %v1397, %v1428
        %v1433 = vadd.f32 %v1398, %v1429
        %s1434 = sadd.s32 %s1423, 1
        %s1435 = sld [smem:[#allocation7 + %s1434]]
        %v1436 = vstv %s1435
        %v1437 = vmul.f32 %v1436, %v871
        %v1438 = vmul.f32 %v1436, %v872
        %v1439 = vmul.f32 %v1436, %v873
        %v1440 = vmul.f32 %v1436, %v874
        %v1441 = vadd.f32 %v1406, %v1437
        %v1442 = vadd.f32 %v1407, %v1438
        %v1443 = vadd.f32 %v1408, %v1439
        %v1444 = vadd.f32 %v1409, %v1440
        %s1445 = sadd.s32 %s1423, 2
        %s1446 = sld [smem:[#allocation7 + %s1445]]
        %v1447 = vstv %s1446
        %v1448 = vmul.f32 %v1447, %v871
        %v1449 = vmul.f32 %v1447, %v872
        %v1450 = vmul.f32 %v1447, %v873
        %v1451 = vmul.f32 %v1447, %v874
        %v1452 = vadd.f32 %v1417, %v1448
        %v1453 = vadd.f32 %v1418, %v1449
        %v1454 = vadd.f32 %v1419, %v1450
        %v1455 = vadd.f32 %v1420, %v1451
        %s1456 = sadd.s32 %s1421, 2
        %s1457 = smul.u32 %s1456, 3
        %s1458 = sld [smem:[#allocation7 + %s1457]]
        %v1459 = vstv %s1458
        %v1460 = vmul.f32 %v1459, %v875
        %v1461 = vmul.f32 %v1459, %v876
        %v1462 = vmul.f32 %v1459, %v877
        %v1463 = vmul.f32 %v1459, %v878
        %v1464 = vadd.f32 %v1430, %v1460
        %v1465 = vadd.f32 %v1431, %v1461
        %v1466 = vadd.f32 %v1432, %v1462
        %v1467 = vadd.f32 %v1433, %v1463
        %s1468 = sadd.s32 %s1457, 1
        %s1469 = sld [smem:[#allocation7 + %s1468]]
        %v1470 = vstv %s1469
        %v1471 = vmul.f32 %v1470, %v875
        %v1472 = vmul.f32 %v1470, %v876
        %v1473 = vmul.f32 %v1470, %v877
        %v1474 = vmul.f32 %v1470, %v878
        %v1475 = vadd.f32 %v1441, %v1471
        %v1476 = vadd.f32 %v1442, %v1472
        %v1477 = vadd.f32 %v1443, %v1473
        %v1478 = vadd.f32 %v1444, %v1474
        %s1479 = sadd.s32 %s1457, 2
        %s1480 = sld [smem:[#allocation7 + %s1479]]
        %v1481 = vstv %s1480
        %v1482 = vmul.f32 %v1481, %v875
        %v1483 = vmul.f32 %v1481, %v876
        %v1484 = vmul.f32 %v1481, %v877
        %v1485 = vmul.f32 %v1481, %v878
        %v1486 = vadd.f32 %v1452, %v1482
        %v1487 = vadd.f32 %v1453, %v1483
        %v1488 = vadd.f32 %v1454, %v1484
        %v1489 = vadd.f32 %v1455, %v1485
        %1494 = vrot.lane.b32.xlu0 %v1475, 127
        %v1495 = vpop.permute.xlu0 %1494
        %1496 = vrot.lane.b32.xlu0 %v1476, 127
        %v1497 = vpop.permute.xlu0 %1496
        %1498 = vrot.lane.b32.xlu0 %v1477, 127
        %v1499 = vpop.permute.xlu0 %1498
        %1500 = vrot.lane.b32.xlu0 %v1478, 127
        %v1501 = vpop.permute.xlu0 %1500
        %v1506 = vadd.f32 %v1464, %v1495
        %v1507 = vadd.f32 %v1465, %v1497
        %v1508 = vadd.f32 %v1466, %v1499
        %v1509 = vadd.f32 %v1467, %v1501
        %1514 = vrot.lane.b32.xlu0 %v1486, 126
        %v1515 = vpop.permute.xlu0 %1514
        %1516 = vrot.lane.b32.xlu0 %v1487, 126
        %v1517 = vpop.permute.xlu0 %1516
        %1518 = vrot.lane.b32.xlu0 %v1488, 126
        %v1519 = vpop.permute.xlu0 %1518
        %1520 = vrot.lane.b32.xlu0 %v1489, 126
        %v1521 = vpop.permute.xlu0 %1520
        %v1526 = vadd.f32 %v1506, %v1515
        %v1527 = vadd.f32 %v1507, %v1517
        %v1528 = vadd.f32 %v1508, %v1519
        %v1529 = vadd.f32 %v1509, %v1521
        %v1530 = vmul.f32 %v1526, %v925
        %v1531 = vmul.f32 %v1527, %v926
        %v1532 = vmul.f32 %v1528, %v925
        %v1533 = vmul.f32 %v1529, %v926
        %v1534 = vsel %vm1074, %v1530, 0.0
        %v1535 = vsel %vm1074, %v1531, 0.0
        %v1536 = vadd.f32 %v1534, %v1535
        %v1537 = vsel %vm1074, %v1532, 0.0
        %v1538 = vadd.f32 %v1536, %v1537
        %v1539 = vsel %vm1074, %v1533, 0.0
        %v1540 = vadd.f32 %v1538, %v1539
        %1541 = vadd.xlane.f32.xlu0 %v1540
        %v1542 = vpop.xlane.xlu0 %1541
        %v1543 = vrot.slane %v1542, 4
        %v1544 = vadd.f32 %v1542, %v1543
        %v1545 = vrot.slane %v1544, 2
        %v1546 = vadd.f32 %v1544, %v1545
        %v1547 = vrot.slane %v1546, 1
        %v1548 = vadd.f32 %v1546, %v1547
        %s1549 = vtos %v1548
        %v1550 = vstv %s1549
        %v1551 = vmul.f32 %v1550, 0.0078125
        %v1552 = vsub.f32 %v1526, %v1551
        %v1553 = vsub.f32 %v1527, %v1551
        %v1554 = vsub.f32 %v1528, %v1551
        %v1555 = vsub.f32 %v1529, %v1551
        %v1556 = vmul.f32 %v1552, %v1552
        %v1557 = vmul.f32 %v1553, %v1553
        %v1558 = vmul.f32 %v1554, %v1554
        %v1559 = vmul.f32 %v1555, %v1555
        %v1560 = vmul.f32 %v1556, %v925
        %v1561 = vmul.f32 %v1557, %v926
        %v1562 = vmul.f32 %v1558, %v925
        %v1563 = vmul.f32 %v1559, %v926
        %v1564 = vsel %vm1074, %v1560, 0.0
        %v1565 = vsel %vm1074, %v1561, 0.0
        %v1566 = vadd.f32 %v1564, %v1565
        %v1567 = vsel %vm1074, %v1562, 0.0
        %v1568 = vadd.f32 %v1566, %v1567
        %v1569 = vsel %vm1074, %v1563, 0.0
        %v1570 = vadd.f32 %v1568, %v1569
        %1571 = vadd.xlane.f32.xlu0 %v1570
        %v1572 = vpop.xlane.xlu0 %1571
        %v1573 = vrot.slane %v1572, 4
        %v1574 = vadd.f32 %v1572, %v1573
        %v1575 = vrot.slane %v1574, 2
        %v1576 = vadd.f32 %v1574, %v1575
        %v1577 = vrot.slane %v1576, 1
        %v1578 = vadd.f32 %v1576, %v1577
        %s1579 = vtos %v1578
        %v1580 = vstv %s1579
        %v1581 = vmul.f32 %v1580, 0.0078125
        %s1582 = sld [smem:[#allocation9 + %s1387]]
        %v1583 = vadd.f32 %v1581, 1e-05
        %v1584 = vrsqrt.pop %v1583
        %v1585 = vmul.f32 %v1552, %v1584
        %v1586 = vmul.f32 %v1553, %v1584
        %v1587 = vmul.f32 %v1554, %v1584
        %v1588 = vmul.f32 %v1555, %v1584
        %v1589 = vstv %s1582
        %v1590 = vmul.f32 %v1589, %v1585
        %v1591 = vmul.f32 %v1589, %v1586
        %v1592 = vmul.f32 %v1589, %v1587
        %v1593 = vmul.f32 %v1589, %v1588
        %s1594 = sld [smem:[#allocation10 + %s1387]]
        %v1595 = vstv %s1594
        %v1596 = vadd.f32 %v1590, %v1595
        %v1597 = vadd.f32 %v1591, %v1595
        %v1598 = vadd.f32 %v1592, %v1595
        %v1599 = vadd.f32 %v1593, %v1595
        %vm1600 = vcmp.ge.f32.partialorder %v1596, 0.0
        %vm1601 = vcmp.ge.f32.partialorder %v1597, 0.0
        %vm1602 = vcmp.ge.f32.partialorder %v1598, 0.0
        %vm1603 = vcmp.ge.f32.partialorder %v1599, 0.0
        %v1604 = vmul.f32 %v1596, 0.1
        %v1605 = vmul.f32 %v1597, 0.1
        %v1606 = vmul.f32 %v1598, 0.1
        %v1607 = vmul.f32 %v1599, 0.1
        %v1608 = vsel %vm1600, %v1596, %v1604
        %v1609 = vsel %vm1601, %v1597, %v1605
        %v1610 = vsel %vm1602, %v1598, %v1606
        %v1611 = vsel %vm1603, %v1599, %v1607
        %s1612 = scalar_lea.vmem %s265, 32 [#allocation13]
        %1613 = vst.msk [vmem:[%s1612] sm:$0xff] %vm1074, %v1608
        %1614 = vst.msk [vmem:[%s1612 + $0x8] sm:$0xff] %vm1074, %v1609
        %1615 = vst.msk [vmem:[%s1612 + $0x40] sm:$0xff] %vm1074, %v1610
        %1616 = vst.msk [vmem:[%s1612 + $0x48] sm:$0xff] %vm1074, %v1611
        %s1617 = sadd.s32 %s927, 3
        %s1618 = smul.u32 %s1617, 9
        %s1619 = sld [smem:[#allocation7 + %s1618]]
        %v1620 = vstv %s1619
        %v1621 = vmul.f32 %v1620, %v867
        %v1622 = vmul.f32 %v1620, %v868
        %v1623 = vmul.f32 %v1620, %v869
        %v1624 = vmul.f32 %v1620, %v870
        %v1625 = vadd.f32 %v1621, 0.0
        %v1626 = vadd.f32 %v1622, 0.0
        %v1627 = vadd.f32 %v1623, 0.0
        %v1628 = vadd.f32 %v1624, 0.0
        %s1629 = sadd.s32 %s1618, 1
        %s1630 = sld [smem:[#allocation7 + %s1629]]
        %v1631 = vstv %s1630
        %v1632 = vmul.f32 %v1631, %v867
        %v1633 = vmul.f32 %v1631, %v868
        %v1634 = vmul.f32 %v1631, %v869
        %v1635 = vmul.f32 %v1631, %v870
        %v1636 = vadd.f32 %v1632, 0.0
        %v1637 = vadd.f32 %v1633, 0.0
        %v1638 = vadd.f32 %v1634, 0.0
        %v1639 = vadd.f32 %v1635, 0.0
        %s1640 = sadd.s32 %s1618, 2
        %s1641 = sld [smem:[#allocation7 + %s1640]]
        %v1642 = vstv %s1641
        %v1643 = vmul.f32 %v1642, %v867
        %v1644 = vmul.f32 %v1642, %v868
        %v1645 = vmul.f32 %v1642, %v869
        %v1646 = vmul.f32 %v1642, %v870
        %v1647 = vadd.f32 %v1643, 0.0
        %v1648 = vadd.f32 %v1644, 0.0
        %v1649 = vadd.f32 %v1645, 0.0
        %v1650 = vadd.f32 %v1646, 0.0
        %s1651 = smul.u32 %s1617, 3
        %s1652 = sadd.s32 %s1651, 1
        %s1653 = smul.u32 %s1652, 3
        %s1654 = sld [smem:[#allocation7 + %s1653]]
        %v1655 = vstv %s1654
        %v1656 = vmul.f32 %v1655, %v871
        %v1657 = vmul.f32 %v1655, %v872
        %v1658 = vmul.f32 %v1655, %v873
        %v1659 = vmul.f32 %v1655, %v874
        %v1660 = vadd.f32 %v1625, %v1656
        %v1661 = vadd.f32 %v1626, %v1657
        %v1662 = vadd.f32 %v1627, %v1658
        %v1663 = vadd.f32 %v1628, %v1659
        %s1664 = sadd.s32 %s1653, 1
        %s1665 = sld [smem:[#allocation7 + %s1664]]
        %v1666 = vstv %s1665
        %v1667 = vmul.f32 %v1666, %v871
        %v1668 = vmul.f32 %v1666, %v872
        %v1669 = vmul.f32 %v1666, %v873
        %v1670 = vmul.f32 %v1666, %v874
        %v1671 = vadd.f32 %v1636, %v1667
        %v1672 = vadd.f32 %v1637, %v1668
        %v1673 = vadd.f32 %v1638, %v1669
        %v1674 = vadd.f32 %v1639, %v1670
        %s1675 = sadd.s32 %s1653, 2
        %s1676 = sld [smem:[#allocation7 + %s1675]]
        %v1677 = vstv %s1676
        %v1678 = vmul.f32 %v1677, %v871
        %v1679 = vmul.f32 %v1677, %v872
        %v1680 = vmul.f32 %v1677, %v873
        %v1681 = vmul.f32 %v1677, %v874
        %v1682 = vadd.f32 %v1647, %v1678
        %v1683 = vadd.f32 %v1648, %v1679
        %v1684 = vadd.f32 %v1649, %v1680
        %v1685 = vadd.f32 %v1650, %v1681
        %s1686 = sadd.s32 %s1651, 2
        %s1687 = smul.u32 %s1686, 3
        %s1688 = sld [smem:[#allocation7 + %s1687]]
        %v1689 = vstv %s1688
        %v1690 = vmul.f32 %v1689, %v875
        %v1691 = vmul.f32 %v1689, %v876
        %v1692 = vmul.f32 %v1689, %v877
        %v1693 = vmul.f32 %v1689, %v878
        %v1694 = vadd.f32 %v1660, %v1690
        %v1695 = vadd.f32 %v1661, %v1691
        %v1696 = vadd.f32 %v1662, %v1692
        %v1697 = vadd.f32 %v1663, %v1693
        %s1698 = sadd.s32 %s1687, 1
        %s1699 = sld [smem:[#allocation7 + %s1698]]
        %v1700 = vstv %s1699
        %v1701 = vmul.f32 %v1700, %v875
        %v1702 = vmul.f32 %v1700, %v876
        %v1703 = vmul.f32 %v1700, %v877
        %v1704 = vmul.f32 %v1700, %v878
        %v1705 = vadd.f32 %v1671, %v1701
        %v1706 = vadd.f32 %v1672, %v1702
        %v1707 = vadd.f32 %v1673, %v1703
        %v1708 = vadd.f32 %v1674, %v1704
        %s1709 = sadd.s32 %s1687, 2
        %s1710 = sld [smem:[#allocation7 + %s1709]]
        %v1711 = vstv %s1710
        %v1712 = vmul.f32 %v1711, %v875
        %v1713 = vmul.f32 %v1711, %v876
        %v1714 = vmul.f32 %v1711, %v877
        %v1715 = vmul.f32 %v1711, %v878
        %v1716 = vadd.f32 %v1682, %v1712
        %v1717 = vadd.f32 %v1683, %v1713
        %v1718 = vadd.f32 %v1684, %v1714
        %v1719 = vadd.f32 %v1685, %v1715
        %1724 = vrot.lane.b32.xlu0 %v1705, 127
        %v1725 = vpop.permute.xlu0 %1724
        %1726 = vrot.lane.b32.xlu0 %v1706, 127
        %v1727 = vpop.permute.xlu0 %1726
        %1728 = vrot.lane.b32.xlu0 %v1707, 127
        %v1729 = vpop.permute.xlu0 %1728
        %1730 = vrot.lane.b32.xlu0 %v1708, 127
        %v1731 = vpop.permute.xlu0 %1730
        %v1736 = vadd.f32 %v1694, %v1725
        %v1737 = vadd.f32 %v1695, %v1727
        %v1738 = vadd.f32 %v1696, %v1729
        %v1739 = vadd.f32 %v1697, %v1731
        %1744 = vrot.lane.b32.xlu0 %v1716, 126
        %v1745 = vpop.permute.xlu0 %1744
        %1746 = vrot.lane.b32.xlu0 %v1717, 126
        %v1747 = vpop.permute.xlu0 %1746
        %1748 = vrot.lane.b32.xlu0 %v1718, 126
        %v1749 = vpop.permute.xlu0 %1748
        %1750 = vrot.lane.b32.xlu0 %v1719, 126
        %v1751 = vpop.permute.xlu0 %1750
        %v1756 = vadd.f32 %v1736, %v1745
        %v1757 = vadd.f32 %v1737, %v1747
        %v1758 = vadd.f32 %v1738, %v1749
        %v1759 = vadd.f32 %v1739, %v1751
        %v1760 = vmul.f32 %v1756, %v925
        %v1761 = vmul.f32 %v1757, %v926
        %v1762 = vmul.f32 %v1758, %v925
        %v1763 = vmul.f32 %v1759, %v926
        %v1764 = vsel %vm1074, %v1760, 0.0
        %v1765 = vsel %vm1074, %v1761, 0.0
        %v1766 = vadd.f32 %v1764, %v1765
        %v1767 = vsel %vm1074, %v1762, 0.0
        %v1768 = vadd.f32 %v1766, %v1767
        %v1769 = vsel %vm1074, %v1763, 0.0
        %v1770 = vadd.f32 %v1768, %v1769
        %1771 = vadd.xlane.f32.xlu0 %v1770
        %v1772 = vpop.xlane.xlu0 %1771
        %v1773 = vrot.slane %v1772, 4
        %v1774 = vadd.f32 %v1772, %v1773
        %v1775 = vrot.slane %v1774, 2
        %v1776 = vadd.f32 %v1774, %v1775
        %v1777 = vrot.slane %v1776, 1
        %v1778 = vadd.f32 %v1776, %v1777
        %s1779 = vtos %v1778
        %v1780 = vstv %s1779
        %v1781 = vmul.f32 %v1780, 0.0078125
        %v1782 = vsub.f32 %v1756, %v1781
        %v1783 = vsub.f32 %v1757, %v1781
        %v1784 = vsub.f32 %v1758, %v1781
        %v1785 = vsub.f32 %v1759, %v1781
        %v1786 = vmul.f32 %v1782, %v1782
        %v1787 = vmul.f32 %v1783, %v1783
        %v1788 = vmul.f32 %v1784, %v1784
        %v1789 = vmul.f32 %v1785, %v1785
        %v1790 = vmul.f32 %v1786, %v925
        %v1791 = vmul.f32 %v1787, %v926
        %v1792 = vmul.f32 %v1788, %v925
        %v1793 = vmul.f32 %v1789, %v926
        %v1794 = vsel %vm1074, %v1790, 0.0
        %v1795 = vsel %vm1074, %v1791, 0.0
        %v1796 = vadd.f32 %v1794, %v1795
        %v1797 = vsel %vm1074, %v1792, 0.0
        %v1798 = vadd.f32 %v1796, %v1797
        %v1799 = vsel %vm1074, %v1793, 0.0
        %v1800 = vadd.f32 %v1798, %v1799
        %1801 = vadd.xlane.f32.xlu0 %v1800
        %v1802 = vpop.xlane.xlu0 %1801
        %v1803 = vrot.slane %v1802, 4
        %v1804 = vadd.f32 %v1802, %v1803
        %v1805 = vrot.slane %v1804, 2
        %v1806 = vadd.f32 %v1804, %v1805
        %v1807 = vrot.slane %v1806, 1
        %v1808 = vadd.f32 %v1806, %v1807
        %s1809 = vtos %v1808
        %v1810 = vstv %s1809
        %v1811 = vmul.f32 %v1810, 0.0078125
        %s1812 = sld [smem:[#allocation9 + %s1617]]
        %v1813 = vadd.f32 %v1811, 1e-05
        %v1814 = vrsqrt.pop %v1813
        %v1815 = vmul.f32 %v1782, %v1814
        %v1816 = vmul.f32 %v1783, %v1814
        %v1817 = vmul.f32 %v1784, %v1814
        %v1818 = vmul.f32 %v1785, %v1814
        %v1819 = vstv %s1812
        %v1820 = vmul.f32 %v1819, %v1815
        %v1821 = vmul.f32 %v1819, %v1816
        %v1822 = vmul.f32 %v1819, %v1817
        %v1823 = vmul.f32 %v1819, %v1818
        %s1824 = sld [smem:[#allocation10 + %s1617]]
        %v1825 = vstv %s1824
        %v1826 = vadd.f32 %v1820, %v1825
        %v1827 = vadd.f32 %v1821, %v1825
        %v1828 = vadd.f32 %v1822, %v1825
        %v1829 = vadd.f32 %v1823, %v1825
        %vm1830 = vcmp.ge.f32.partialorder %v1826, 0.0
        %vm1831 = vcmp.ge.f32.partialorder %v1827, 0.0
        %vm1832 = vcmp.ge.f32.partialorder %v1828, 0.0
        %vm1833 = vcmp.ge.f32.partialorder %v1829, 0.0
        %v1834 = vmul.f32 %v1826, 0.1
        %v1835 = vmul.f32 %v1827, 0.1
        %v1836 = vmul.f32 %v1828, 0.1
        %v1837 = vmul.f32 %v1829, 0.1
        %v1838 = vsel %vm1830, %v1826, %v1834
        %v1839 = vsel %vm1831, %v1827, %v1835
        %v1840 = vsel %vm1832, %v1828, %v1836
        %v1841 = vsel %vm1833, %v1829, %v1837
        %s1842 = scalar_lea.vmem %s265, 48 [#allocation13]
        %1843 = vst.msk [vmem:[%s1842] sm:$0xff] %vm1074, %v1838
        %1844 = vst.msk [vmem:[%s1842 + $0x8] sm:$0xff] %vm1074, %v1839
        %1845 = vst.msk [vmem:[%s1842 + $0x40] sm:$0xff] %vm1074, %v1840
        %1846 = vst.msk [vmem:[%s1842 + $0x48] sm:$0xff] %vm1074, %v1841
        %s1847 = sand.u32 %s133, 1
        %s1848 = sand.u32 %s133, 1
        %s1849 = smul.addr %s1848, 128
        %s1850 = scalar_lea.vmem [#allocation13], %s1849
        // Predicated region
        $region61: #{tempro_spacial_forward.1} parent=39 // pred_check
          %p1851 = pneg %p143
        $region62: #{tempro_spacial_forward.1} parent=39 // pred_check_branch
          %1853 = sbr.rel (%p1851) target = $region64
        $region63: #{tempro_spacial_forward.1} parent=39 // pred_region
          %s1854 = smul.u32 4, %s20
          %s1855 = smul.addr %s1854, 2
          %s1856 = smul.addr %s1855, 8
          %s1857 = scalar_lea.vmem %s5, %s1856
          // Predicated region
          $region65: #{tempro_spacial_forward.1} parent=63 // pred_check
            _
          $region66: #{tempro_spacial_forward.1} parent=63 // pred_check_branch
            %1859 = sbr.rel (0) target = $region68
          $region67: #{tempro_spacial_forward.1} parent=63 // pred_region
            // Predicated region
            $region69: #{tempro_spacial_forward.1} parent=67 // pred_check
              _
            $region70: #{tempro_spacial_forward.1} parent=67 // pred_check_branch
              %1861 = sbr.rel (0) target = $region72
            $region71: #{tempro_spacial_forward.1} parent=67 // pred_region
              // Predicated region
              $region84: #{tempro_spacial_forward.1} parent=71 // pred_check
                _
              $region85: #{tempro_spacial_forward.1} parent=71 // pred_check_branch
                %1907 = sbr.rel (0) target = $region87
              $region86: #{tempro_spacial_forward.1} parent=71 // pred_region
                loop: start=0, step=1, limit=1
                $region88: #{tempro_spacial_forward.1} parent=86 // loop_pre_header
                  _
                $region89: #{tempro_spacial_forward.1} parent=86 // loop_header
                  %s1909 = sphi 0, %s1913
                  %p1910 = scmp.ge.s32.totalorder %s1909, 1
                  %s1914 = sphi %s1850, %s1850
                  %s1915 = sphi %s1857, %s1857
                $region90: #{tempro_spacial_forward.1} parent=86 // loop_header_branch
                  %1912 = sbr.rel (%p1910) target = $region94
                $region91: #{tempro_spacial_forward.1} parent=86 // loop_body
                  %v1916 = vld [vmem:[%s1914] sm:$0xff]
                  %1917 = vst [vmem:[%s1915] sm:$0xff] %v1916
                  %v1918 = vld [vmem:[%s1914 + $0x8] sm:$0xff]
                  %1919 = vst [vmem:[%s1915 + $0x8] sm:$0xff] %v1918
                  %v1920 = vld [vmem:[%s1914 + $0x10] sm:$0xff]
                  %1921 = vst [vmem:[%s1915 + $0x10] sm:$0xff] %v1920
                  %v1922 = vld [vmem:[%s1914 + $0x18] sm:$0xff]
                  %1923 = vst [vmem:[%s1915 + $0x18] sm:$0xff] %v1922
                  %v1924 = vld [vmem:[%s1914 + $0x20] sm:$0xff]
                  %1925 = vst [vmem:[%s1915 + $0x20] sm:$0xff] %v1924
                  %v1926 = vld [vmem:[%s1914 + $0x28] sm:$0xff]
                  %1927 = vst [vmem:[%s1915 + $0x28] sm:$0xff] %v1926
                  %v1928 = vld [vmem:[%s1914 + $0x30] sm:$0xff]
                  %1929 = vst [vmem:[%s1915 + $0x30] sm:$0xff] %v1928
                  %v1930 = vld [vmem:[%s1914 + $0x38] sm:$0xff]
                  %1931 = vst [vmem:[%s1915 + $0x38] sm:$0xff] %v1930
                  %v1932 = vld [vmem:[%s1914 + $0x40] sm:$0xff]
                  %1933 = vst [vmem:[%s1915 + $0x80] sm:$0xff] %v1932
                  %v1934 = vld [vmem:[%s1914 + $0x48] sm:$0xff]
                  %1935 = vst [vmem:[%s1915 + $0x88] sm:$0xff] %v1934
                  %v1936 = vld [vmem:[%s1914 + $0x50] sm:$0xff]
                  %1937 = vst [vmem:[%s1915 + $0x90] sm:$0xff] %v1936
                  %v1938 = vld [vmem:[%s1914 + $0x58] sm:$0xff]
                  %1939 = vst [vmem:[%s1915 + $0x98] sm:$0xff] %v1938
                  %v1940 = vld [vmem:[%s1914 + $0x60] sm:$0xff]
                  %1941 = vst [vmem:[%s1915 + $0xa0] sm:$0xff] %v1940
                  %v1942 = vld [vmem:[%s1914 + $0x68] sm:$0xff]
                  %1943 = vst [vmem:[%s1915 + $0xa8] sm:$0xff] %v1942
                  %v1944 = vld [vmem:[%s1914 + $0x70] sm:$0xff]
                  %1945 = vst [vmem:[%s1915 + $0xb0] sm:$0xff] %v1944
                  %v1946 = vld [vmem:[%s1914 + $0x78] sm:$0xff]
                  %1947 = vst [vmem:[%s1915 + $0xb8] sm:$0xff] %v1946
                $region92: #{tempro_spacial_forward.1} parent=86 // loop_footer
                  %s1913 = sadd.s32 1, %s1909
                $region93: #{tempro_spacial_forward.1} parent=86 // loop_footer_branch
                  %1908 = sbr.rel target = $region89
                $region94: #{tempro_spacial_forward.1} parent=86 // loop_exit
                  _
              $region87: #{tempro_spacial_forward.1} parent=71 // pred_fallthru
                _
              // Predicated region
              $region95: #{tempro_spacial_forward.1} parent=71 // pred_check
                _
              $region96: #{tempro_spacial_forward.1} parent=71 // pred_check_branch
                %1949 = sbr.rel target = $region98
              $region97: #{tempro_spacial_forward.1} parent=71 // pred_region
                _
              $region98: #{tempro_spacial_forward.1} parent=71 // pred_fallthru
                _
            $region72: #{tempro_spacial_forward.1} parent=67 // pred_fallthru
              _
            // Predicated region
            $region73: #{tempro_spacial_forward.1} parent=67 // pred_check
              _
            $region74: #{tempro_spacial_forward.1} parent=67 // pred_check_branch
              %1863 = sbr.rel target = $region76
            $region75: #{tempro_spacial_forward.1} parent=67 // pred_region
              %s1865 = ssub.s32 256, 1
              loop: start=0, step=1, limit=1
              $region77: #{tempro_spacial_forward.1} parent=75 // loop_pre_header
                _
              $region78: #{tempro_spacial_forward.1} parent=75 // loop_header
                %s1867 = sphi 0, %s1871
                %p1868 = scmp.ge.s32.totalorder %s1867, 1
                %s1872 = sphi %s1850, %s1850
                %s1873 = sphi %s1857, %s1857
              $region79: #{tempro_spacial_forward.1} parent=75 // loop_header_branch
                %1870 = sbr.rel (%p1868) target = $region83
              $region80: #{tempro_spacial_forward.1} parent=75 // loop_body
                %v1874 = vld [vmem:[%s1872] sm:%s1865]
                %1875 = vst [vmem:[%s1873] sm:%s1865] %v1874
                %v1876 = vld [vmem:[%s1872 + $0x8] sm:%s1865]
                %1877 = vst [vmem:[%s1873 + $0x8] sm:%s1865] %v1876
                %v1878 = vld [vmem:[%s1872 + $0x10] sm:%s1865]
                %1879 = vst [vmem:[%s1873 + $0x10] sm:%s1865] %v1878
                %v1880 = vld [vmem:[%s1872 + $0x18] sm:%s1865]
                %1881 = vst [vmem:[%s1873 + $0x18] sm:%s1865] %v1880
                %v1882 = vld [vmem:[%s1872 + $0x20] sm:%s1865]
                %1883 = vst [vmem:[%s1873 + $0x20] sm:%s1865] %v1882
                %v1884 = vld [vmem:[%s1872 + $0x28] sm:%s1865]
                %1885 = vst [vmem:[%s1873 + $0x28] sm:%s1865] %v1884
                %v1886 = vld [vmem:[%s1872 + $0x30] sm:%s1865]
                %1887 = vst [vmem:[%s1873 + $0x30] sm:%s1865] %v1886
                %v1888 = vld [vmem:[%s1872 + $0x38] sm:%s1865]
                %1889 = vst [vmem:[%s1873 + $0x38] sm:%s1865] %v1888
                %v1890 = vld [vmem:[%s1872 + $0x40] sm:%s1865]
                %1891 = vst [vmem:[%s1873 + $0x80] sm:%s1865] %v1890
                %v1892 = vld [vmem:[%s1872 + $0x48] sm:%s1865]
                %1893 = vst [vmem:[%s1873 + $0x88] sm:%s1865] %v1892
                %v1894 = vld [vmem:[%s1872 + $0x50] sm:%s1865]
                %1895 = vst [vmem:[%s1873 + $0x90] sm:%s1865] %v1894
                %v1896 = vld [vmem:[%s1872 + $0x58] sm:%s1865]
                %1897 = vst [vmem:[%s1873 + $0x98] sm:%s1865] %v1896
                %v1898 = vld [vmem:[%s1872 + $0x60] sm:%s1865]
                %1899 = vst [vmem:[%s1873 + $0xa0] sm:%s1865] %v1898
                %v1900 = vld [vmem:[%s1872 + $0x68] sm:%s1865]
                %1901 = vst [vmem:[%s1873 + $0xa8] sm:%s1865] %v1900
                %v1902 = vld [vmem:[%s1872 + $0x70] sm:%s1865]
                %1903 = vst [vmem:[%s1873 + $0xb0] sm:%s1865] %v1902
                %v1904 = vld [vmem:[%s1872 + $0x78] sm:%s1865]
                %1905 = vst [vmem:[%s1873 + $0xb8] sm:%s1865] %v1904
              $region81: #{tempro_spacial_forward.1} parent=75 // loop_footer
                %s1871 = sadd.s32 1, %s1867
              $region82: #{tempro_spacial_forward.1} parent=75 // loop_footer_branch
                %1866 = sbr.rel target = $region78
              $region83: #{tempro_spacial_forward.1} parent=75 // loop_exit
                _
            $region76: #{tempro_spacial_forward.1} parent=67 // pred_fallthru
              _
          $region68: #{tempro_spacial_forward.1} parent=63 // pred_fallthru
            _
          %1950 = vnop
        $region64: #{tempro_spacial_forward.1} parent=39 // pred_fallthru
          _
      $region40: #{tempro_spacial_forward.1} parent=5 // pred_fallthru
        _
      %p1951 = scmp.le.s32.totalorder 2, %s15
      // Predicated region
      $region99: #{tempro_spacial_forward.1} parent=5 // pred_check
        %p1952 = pneg %p1951
      $region100: #{tempro_spacial_forward.1} parent=5 // pred_check_branch
        %1954 = sbr.rel (%p1952) target = $region102
      $region101: #{tempro_spacial_forward.1} parent=5 // pred_region
        %s1955 = ssub.s32 %s15, 2
        // Predicated region
        $region103: #{tempro_spacial_forward.1} parent=101 // pred_check
          %p1956 = pneg %p149
        $region104: #{tempro_spacial_forward.1} parent=101 // pred_check_branch
          %1958 = sbr.rel (%p1956) target = $region106
        $region105: #{tempro_spacial_forward.1} parent=101 // pred_region
          %s1959 = sand.u32 %s134, 1
          %s1960 = sand.u32 %s134, 1
          %s1961 = smul.addr %s1960, 128
          %s1962 = scalar_lea.vmem [#allocation13], %s1961
        $region106: #{tempro_spacial_forward.1} parent=101 // pred_fallthru
          _
      $region102: #{tempro_spacial_forward.1} parent=5 // pred_fallthru
        _
    $region6: #{tempro_spacial_forward.1} parent=1 // loop_footer
      %s19 = sadd.s32 1, %s15
    $region7: #{tempro_spacial_forward.1} parent=1 // loop_footer_branch
      %14 = sbr.rel target = $region3
    $region8: #{tempro_spacial_forward.1} parent=1 // loop_exit
      _
    %1963 = vsyncpa [#allocation5], 1
    %s1964 = scalar_lea.sflag [#allocation5], 1
    %1965 = vsyncpa %s1964, 1
    %1966 = vsyncpa [#allocation6], 1
    %s1967 = scalar_lea.sflag [#allocation6], 1
    %1968 = vsyncpa %s1967, 1
    %1969 = vsyncpa [#allocation8], 1
    %1970 = vsyncpa [#allocation11], 1

</llo_original>
